<compile_context>
chip_gen: v7x
topology: tpu7x:2x2x1
jax: 0.10.0
libtpu: 0.0.40
codegen_flags: <defaults>
</compile_context>

<pallas_src>
import functools

import jax
import jax.numpy as jnp
from jax import lax
from jax.experimental import pallas as pl
from jax.experimental.pallas import tpu as pltpu


# ----------------------------- helpers (jnp, usable in/out of kernel) --------

def _l2norm(x, axis=-1, eps=1e-12):
    """torch.nn.functional.normalize(p=2) equivalent."""
    n = jnp.sqrt(jnp.sum(x * x, axis=axis, keepdims=True))
    return x / jnp.maximum(n, eps)


def _matmul_t(a, b):
    """a @ b.T on the MXU without materializing the transpose."""
    return lax.dot_general(a, b, (((1,), (1,)), ((), ())),
                           preferred_element_type=jnp.float32)


def _matmul_ta(a, b):
    """a.T @ b on the MXU without materializing the transpose."""
    return lax.dot_general(a, b, (((0,), (0,)), ((), ())),
                           preferred_element_type=jnp.float32)


def _find_idx(sim, valid, col, t_pos, t_neg):
    """Inferred find_idx(): per row, a one-hot selector of the least-similar
    positive slot (sim > t_pos), a one-hot selector of the most-similar
    negative slot (sim < t_neg), the thresholded positive scores, and
    existence indicators (+1 for positives, -1 for negatives).  `valid`
    (or None) masks out padded memory slots."""
    mp = sim.shape[-1]
    big = jnp.float32(1e30)

    pos_mask = sim > t_pos
    neg_mask = sim < t_neg
    if valid is not None:
        pos_mask = jnp.logical_and(pos_mask, valid)
        neg_mask = jnp.logical_and(neg_mask, valid)
    pos_score = jnp.where(pos_mask, sim, 0.0)

    sim_pos = jnp.where(pos_mask, sim, big)
    min_val = jnp.min(sim_pos, axis=-1, keepdims=True)
    min_col = jnp.min(jnp.where(sim_pos == min_val, col, mp), axis=-1, keepdims=True)
    oh_min = (col == min_col).astype(jnp.float32)

    sim_neg = jnp.where(neg_mask, sim, -big)
    max_val = jnp.max(sim_neg, axis=-1, keepdims=True)
    max_col = jnp.min(jnp.where(sim_neg == max_val, col, mp), axis=-1, keepdims=True)
    oh_max = (col == max_col).astype(jnp.float32)

    pos_s = jnp.max(pos_mask.astype(jnp.float32), axis=-1, keepdims=True)
    neg_s = -jnp.max(neg_mask.astype(jnp.float32), axis=-1, keepdims=True)
    return oh_min, oh_max, pos_score, pos_s, neg_s


# --------------------------------- the kernel --------------------------------

def memory_kernel(thresh_ref,                    # SMEM (4,) f32
                  emb_ref, glo_ref,              # VMEM (TB, D)
                  keys_ref, vals_ref,            # VMEM (Mp, D) f32, unit rows
                  o_emb_ref, o_glo_ref,          # VMEM (TB, D)
                  o_keys_ref, o_vals_ref,        # VMEM (Mp, D) per-shard sums
                  o_lk_ref, o_lv_ref, o_ls_ref,  # VMEM (1, 1)  per-shard sums
                  *, q_v, q_k, m_valid):
    j = pl.program_id(1)

    @pl.when(j == 0)
    def _init():
        o_keys_ref[...] = jnp.zeros_like(o_keys_ref)
        o_vals_ref[...] = jnp.zeros_like(o_vals_ref)
        o_lk_ref[...] = jnp.zeros_like(o_lk_ref)
        o_lv_ref[...] = jnp.zeros_like(o_lv_ref)
        o_ls_ref[...] = jnp.zeros_like(o_ls_ref)

    keys = keys_ref[...]
    vals = vals_ref[...]
    norm_emb = _l2norm(emb_ref[...].astype(jnp.float32))
    norm_glo = _l2norm(glo_ref[...].astype(jnp.float32))
    o_emb_ref[...] = norm_emb

    tb = norm_emb.shape[0]
    mp = keys.shape[0]
    ones_b = jnp.ones((tb, 1), jnp.float32)

    # Both cosine-similarity matrices up front ([TB, Mp], one MXU pass each).
    sim_kv = _matmul_t(norm_emb, keys)
    sim_vk = _matmul_t(norm_glo, vals)

    col = lax.broadcasted_iota(jnp.int32, sim_kv.shape, 1)
    # Padding mask is skipped statically when the memory is already lane-dense.
    valid = (col < m_valid) if m_valid < mp else None

    # ------------------- key -> value direction (loss_v, values update) -----
    oh_min, oh_max, pos_score, pos_s, neg_s = _find_idx(
        sim_kv, valid, col, thresh_ref[0], thresh_ref[1])

    # compute_loss assumed = cosine similarity; the gathered memory row is a
    # row of `vals`, so <vals[slot], norm_glo[b]> == sum(onehot * sim_vk, -1).
    # Fold pos/neg hinge terms into a single full reduce.
    o_lv_ref[...] += jnp.sum((pos_s * oh_min + neg_s * oh_max) * sim_vk)

    # values update: closed-form norm of (1-p)*vals[m] + p*glo[b] (both unit):
    #   ||.||^2 = 1 + 2*p*(1-p)*(sim - 1)
    pos_score_norm = pos_score / jnp.maximum(
        jnp.sum(jnp.abs(pos_score), axis=-1, keepdims=True), 1e-12)
    p_v = pos_score_norm * (1.0 - q_v)                       # [TB, Mp]
    r_v = 1.0 - p_v
    inv_v = lax.rsqrt(jnp.maximum(
        1.0 + 2.0 * (p_v * r_v) * (sim_vk - 1.0), 1e-24))
    o_vals_ref[...] += (_matmul_ta(r_v * inv_v, ones_b) * vals   # [Mp,1]*[Mp,D]
                        + _matmul_ta(p_v * inv_v, norm_glo))     # [Mp,D] MXU

    # ------------------- value -> key direction (loss_k, keys update) -------
    oh_min_k, oh_max_k, pos_score_k, pos_s_k, neg_s_k = _find_idx(
        sim_vk, valid, col, thresh_ref[2], thresh_ref[3])
    o_lk_ref[...] += jnp.sum((pos_s_k * oh_min_k + neg_s_k * oh_max_k) * sim_kv)

    # one-hot(argmax(pos_score_k)) then binarized -> p_k in {0, 1 - q_k}.
    kmax = jnp.max(pos_score_k, axis=-1, keepdims=True)
    kmax_col = jnp.min(jnp.where(pos_score_k == kmax, col, mp),
                       axis=-1, keepdims=True)
    onehot_k = (col == kmax_col).astype(jnp.float32)
    psk_bin = jnp.where(onehot_k * pos_score_k > 0.0, 1.0, 0.0)
    p_k = psk_bin * (1.0 - q_k)
    r_k = 1.0 - p_k
    inv_k = lax.rsqrt(jnp.maximum(
        1.0 + 2.0 * (p_k * r_k) * (sim_kv - 1.0), 1e-24))
    o_keys_ref[...] += (_matmul_ta(r_k * inv_k, ones_b) * keys
                        + _matmul_ta(p_k * inv_k, norm_emb))

    # ------------- weighted-sum global embedding + similarity MSE -----------
    glo_upd = norm_glo + jnp.dot(pos_score, vals, preferred_element_type=jnp.float32)
    o_glo_ref[...] = _l2norm(glo_upd)
    diff = sim_vk - sim_kv          # padded columns are exactly 0 on both sides
    o_ls_ref[...] += jnp.sum(diff * diff)


# --------------------------------- wrapper ------------------------------------

def _pick_row_tile(rows):
    for cand in (512, 256, 128, 64, 32, 16, 8):
        if rows % cand == 0:
            return cand
    return rows


class MemoryPallas:
    def __init__(self, n_way, emb_size, mem_size, q_v, q_k, margin, key):
        self.n_way = n_way
        self.emb_size = emb_size
        self.mem_size = mem_size
        self.q_v = float(q_v)
        self.q_k = float(q_k)
        self.margin = float(margin)
        k1, k2 = jax.random.split(key)
        # torch.rand -> uniform [0, 1), then L2-normalized rows.
        mk = jax.random.uniform(k1, (mem_size, emb_size), jnp.float32)
        mv = jax.random.uniform(k2, (mem_size, emb_size), jnp.float32)
        self.memory_keys = _l2norm(mk)
        self.memory_values = _l2norm(mv)

    def forward(self, embedding, embedding_global, thresh, tb=None, num_shards=1):
        # embedding / embedding_global: tuples of [T, Ns, D] and [T, Nq, D].
        emb = jnp.concatenate(embedding, axis=1)          # [T, N, D]
        glo = jnp.concatenate(embedding_global, axis=1)   # [T, N, D]
        T, N, D = emb.shape
        B = T * N
        M = self.mem_size
        Mp = ((max(M, 128) + 127) // 128) * 128            # lane-dense slot count

        assert B % num_shards == 0, "rows must split evenly across shards"
        rows = B // num_shards
        if tb is None:
            tb = _pick_row_tile(rows)                      # whole batch if tiny
        assert rows % tb == 0, "per-shard rows must be divisible by the row tile"
        n_tiles = rows // tb

        emb_flat = emb.reshape(B, D)                       # streamed in native dtype
        glo_flat = glo.reshape(B, D)
        thresh = jnp.asarray(thresh, jnp.float32).reshape(4)

        pad = Mp - M
        keys_p = self.memory_keys.astype(jnp.float32)
        vals_p = self.memory_values.astype(jnp.float32)
        if pad:
            zrows = jnp.zeros((pad, D), jnp.float32)
            keys_p = jnp.concatenate([keys_p, zrows], axis=0)
            vals_p = jnp.concatenate([vals_p, zrows], axis=0)

        kernel = functools.partial(memory_kernel, q_v=self.q_v, q_k=self.q_k,
                                   m_valid=M)

        row_map = lambda c, j: (c * n_tiles + j, 0)
        shard_map = lambda c, j: (c, 0, 0)
        const_map = lambda c, j: (0, 0)

        out_shapes = (
            jax.ShapeDtypeStruct((B, D), jnp.float32),               # norm_emb
            jax.ShapeDtypeStruct((B, D), jnp.float32),               # glo out
            jax.ShapeDtypeStruct((num_shards, Mp, D), jnp.float32),  # keys partial
            jax.ShapeDtypeStruct((num_shards, Mp, D), jnp.float32),  # vals partial
            jax.ShapeDtypeStruct((num_shards, 1, 1), jnp.float32),   # loss_k part
            jax.ShapeDtypeStruct((num_shards, 1, 1), jnp.float32),   # loss_v part
            jax.ShapeDtypeStruct((num_shards, 1, 1), jnp.float32),   # loss_s part
        )

        grid_spec = pltpu.PrefetchScalarGridSpec(
            num_scalar_prefetch=0,
            grid=(num_shards, n_tiles),
            in_specs=[
                pl.BlockSpec(memory_space=pltpu.MemorySpace.SMEM),   # thresh
                pl.BlockSpec((tb, D), row_map),                      # emb rows
                pl.BlockSpec((tb, D), row_map),                      # glo rows
                pl.BlockSpec((Mp, D), const_map),                    # memory keys
                pl.BlockSpec((Mp, D), const_map),                    # memory values
            ],
            out_specs=[
                pl.BlockSpec((tb, D), row_map),
                pl.BlockSpec((tb, D), row_map),
                pl.BlockSpec((None, Mp, D), shard_map),
                pl.BlockSpec((None, Mp, D), shard_map),
                pl.BlockSpec((None, 1, 1), shard_map),
                pl.BlockSpec((None, 1, 1), shard_map),
                pl.BlockSpec((None, 1, 1), shard_map),
            ],
        )

        outs = pl.pallas_call(
            kernel,
            out_shape=out_shapes,
            grid_spec=grid_spec,
            compiler_params=pltpu.CompilerParams(
                dimension_semantics=("parallel", "arbitrary")),
        )(thresh, emb_flat, glo_flat, keys_p, vals_p)

        (norm_emb, glo_out, keys_part, vals_part,
         lk_part, lv_part, ls_part) = outs

        # finalize: cross-shard sum + l2norm / hinge / MSE-mean (tiny XLA ops).
        keys_upd = _l2norm(jnp.sum(keys_part, axis=0))[:M]
        vals_upd = _l2norm(jnp.sum(vals_part, axis=0))[:M]
        loss_k = jnp.maximum(self.margin - jnp.sum(lk_part) / B, 0.0)
        loss_v = jnp.maximum(self.margin - jnp.sum(lv_part) / B, 0.0)
        loss_s = jnp.sum(ls_part) / (B * M)

        # in-place parameter updates (mirrors the .data assignments in torch).
        self.memory_keys = keys_upd
        self.memory_values = vals_upd

        return (norm_emb.reshape(T, N, D), glo_out.reshape(T, N, D),
                loss_k, loss_v, loss_s)


# ----------------------------------- main --------------------------------------

if __name__ == "__main__":
    key = jax.random.PRNGKey(0)
    t_task, n_way, k_shot, k_query = 2, 2, 4, 4
    emb_size, mem_size = 128, 64
    n_support = n_way * k_shot     # 8
    n_query = n_way * k_query      # 8

    k1, k2, k3, k4, kparam = jax.random.split(key, 5)
    emb_s = jax.random.normal(k1, (t_task, n_support, emb_size), jnp.float32)
    emb_q = jax.random.normal(k2, (t_task, n_query, emb_size), jnp.float32)
    glo_s = jax.random.normal(k3, (t_task, n_support, emb_size), jnp.float32)
    glo_q = jax.random.normal(k4, (t_task, n_query, emb_size), jnp.float32)

    # thresh_kv_pos, thresh_kv_neg, thresh_vk_pos, thresh_vk_neg
    thresh = [0.45, 0.3, 0.45, 0.3]

    # Default path: single shard, whole batch in one row tile (single grid step).
    mem_a = MemoryPallas(n_way=n_way, emb_size=emb_size, mem_size=mem_size,
                         q_v=0.5, q_k=0.5, margin=1.0, key=kparam)
    out_a = mem_a.forward((emb_s, emb_q), (glo_s, glo_q), thresh)
    state_a = (mem_a.memory_keys, mem_a.memory_values)
    jax.block_until_ready((out_a, state_a))

    # Same inputs through the sharded / multi-tile path (v7x two-core layout,
    # multi-step accumulation); must agree with the single-step run.
    mem_b = MemoryPallas(n_way=n_way, emb_size=emb_size, mem_size=mem_size,
                         q_v=0.5, q_k=0.5, margin=1.0, key=kparam)
    out_b = mem_b.forward((emb_s, emb_q), (glo_s, glo_q), thresh,
                          tb=8, num_shards=2)
    state_b = (mem_b.memory_keys, mem_b.memory_values)
    jax.block_until_ready((out_b, state_b))

    for a, b in zip(list(out_a) + list(state_a), list(out_b) + list(state_b)):
        assert jnp.allclose(a, b, rtol=1e-4, atol=1e-4), "shard/tile mismatch"

    print("KERNEL_OK")
</pallas_src>

<mosaic_0001>
module attributes {stable_mosaic.version = 11 : i64} {
  func.func @memory_kernel(%arg0: i32, %arg1: i32, %arg2: memref<4xf32, #tpu.memory_space<smem>>, %arg3: memref<32x128xf32, #tpu.memory_space<vmem>>, %arg4: memref<32x128xf32, #tpu.memory_space<vmem>>, %arg5: memref<128x128xf32, #tpu.memory_space<vmem>>, %arg6: memref<128x128xf32, #tpu.memory_space<vmem>>, %arg7: memref<32x128xf32, #tpu.memory_space<vmem>>, %arg8: memref<32x128xf32, #tpu.memory_space<vmem>>, %arg9: memref<1x128x128xf32, #tpu.memory_space<vmem>>, %arg10: memref<1x128x128xf32, #tpu.memory_space<vmem>>, %arg11: memref<1x1x1xf32, #tpu.memory_space<vmem>>, %arg12: memref<1x1x1xf32, #tpu.memory_space<vmem>>, %arg13: memref<1x1x1xf32, #tpu.memory_space<vmem>>) attributes {dimension_semantics = [#tpu.dimension_semantics<parallel>, #tpu.dimension_semantics<arbitrary>], iteration_bounds = array<i64: 1, 1>, scalar_prefetch = 0 : i64, scratch_operands = 0 : i64, tpu.core_type = #tpu.core_type<tc>, window_params = [{transform_indices = @transform_0, window_bounds = array<i64: 4>}, {transform_indices = @transform_1, window_bounds = array<i64: 32, 128>}, {transform_indices = @transform_2, window_bounds = array<i64: 32, 128>}, {pipeline_mode = #tpu.pipeline_mode<synchronous>, transform_indices = @transform_3, window_bounds = array<i64: 128, 128>}, {pipeline_mode = #tpu.pipeline_mode<synchronous>, transform_indices = @transform_4, window_bounds = array<i64: 128, 128>}, {transform_indices = @transform_5, window_bounds = array<i64: 32, 128>}, {transform_indices = @transform_6, window_bounds = array<i64: 32, 128>}, {transform_indices = @transform_7, window_bounds = array<i64: 1, 128, 128>}, {transform_indices = @transform_8, window_bounds = array<i64: 1, 128, 128>}, {transform_indices = @transform_9, window_bounds = array<i64: 1, 1, 1>}, {transform_indices = @transform_10, window_bounds = array<i64: 1, 1, 1>}, {transform_indices = @transform_11, window_bounds = array<i64: 1, 1, 1>}]} {
    %c0_i32 = arith.constant 0 : i32
    %0 = arith.cmpi eq, %arg1, %c0_i32 : i32
    %1 = arith.extui %0 : i1 to i32
    %c0_i32_0 = arith.constant 0 : i32
    %2 = arith.cmpi ne, %1, %c0_i32_0 : i32
    scf.if %2 {
      %cst_104 = arith.constant 0.000000e+00 : f32
      %267 = vector.broadcast %cst_104 : f32 to vector<128x128xf32>
      %c0_105 = arith.constant 0 : index
      %c0_106 = arith.constant 0 : index
      %c0_107 = arith.constant 0 : index
      %268 = vector.load %arg9[%c0_105, %c0_106, %c0_107] : memref<1x128x128xf32, #tpu.memory_space<vmem>>, vector<1x128x128xf32>
      %269 = vector.shape_cast %268 : vector<1x128x128xf32> to vector<128x128xf32>
      %270 = vector.shape_cast %267 : vector<128x128xf32> to vector<1x128x128xf32>
      tpu.vector_store %arg9[%c0_105, %c0_106, %c0_107], %270 {strides = array<i32>} : memref<1x128x128xf32, #tpu.memory_space<vmem>>, vector<1x128x128xf32>,
      %cst_108 = arith.constant 0.000000e+00 : f32
      %271 = vector.broadcast %cst_108 : f32 to vector<128x128xf32>
      %c0_109 = arith.constant 0 : index
      %c0_110 = arith.constant 0 : index
      %c0_111 = arith.constant 0 : index
      %272 = vector.load %arg10[%c0_109, %c0_110, %c0_111] : memref<1x128x128xf32, #tpu.memory_space<vmem>>, vector<1x128x128xf32>
      %273 = vector.shape_cast %272 : vector<1x128x128xf32> to vector<128x128xf32>
      %274 = vector.shape_cast %271 : vector<128x128xf32> to vector<1x128x128xf32>
      tpu.vector_store %arg10[%c0_109, %c0_110, %c0_111], %274 {strides = array<i32>} : memref<1x128x128xf32, #tpu.memory_space<vmem>>, vector<1x128x128xf32>,
      %cst_112 = arith.constant 0.000000e+00 : f32
      %275 = vector.broadcast %cst_112 : f32 to vector<1x1xf32>
      %c0_113 = arith.constant 0 : index
      %c0_114 = arith.constant 0 : index
      %c0_115 = arith.constant 0 : index
      %276 = vector.load %arg11[%c0_113, %c0_114, %c0_115] : memref<1x1x1xf32, #tpu.memory_space<vmem>>, vector<1x1x1xf32>
      %277 = vector.shape_cast %276 : vector<1x1x1xf32> to vector<1x1xf32>
      %278 = vector.shape_cast %275 : vector<1x1xf32> to vector<1x1x1xf32>
      tpu.vector_store %arg11[%c0_113, %c0_114, %c0_115], %278 {strides = array<i32>} : memref<1x1x1xf32, #tpu.memory_space<vmem>>, vector<1x1x1xf32>,
      %cst_116 = arith.constant 0.000000e+00 : f32
      %279 = vector.broadcast %cst_116 : f32 to vector<1x1xf32>
      %c0_117 = arith.constant 0 : index
      %c0_118 = arith.constant 0 : index
      %c0_119 = arith.constant 0 : index
      %280 = vector.load %arg12[%c0_117, %c0_118, %c0_119] : memref<1x1x1xf32, #tpu.memory_space<vmem>>, vector<1x1x1xf32>
      %281 = vector.shape_cast %280 : vector<1x1x1xf32> to vector<1x1xf32>
      %282 = vector.shape_cast %279 : vector<1x1xf32> to vector<1x1x1xf32>
      tpu.vector_store %arg12[%c0_117, %c0_118, %c0_119], %282 {strides = array<i32>} : memref<1x1x1xf32, #tpu.memory_space<vmem>>, vector<1x1x1xf32>,
      %cst_120 = arith.constant 0.000000e+00 : f32
      %283 = vector.broadcast %cst_120 : f32 to vector<1x1xf32>
      %c0_121 = arith.constant 0 : index
      %c0_122 = arith.constant 0 : index
      %c0_123 = arith.constant 0 : index
      %284 = vector.load %arg13[%c0_121, %c0_122, %c0_123] : memref<1x1x1xf32, #tpu.memory_space<vmem>>, vector<1x1x1xf32>
      %285 = vector.shape_cast %284 : vector<1x1x1xf32> to vector<1x1xf32>
      %286 = vector.shape_cast %283 : vector<1x1xf32> to vector<1x1x1xf32>
      tpu.vector_store %arg13[%c0_121, %c0_122, %c0_123], %286 {strides = array<i32>} : memref<1x1x1xf32, #tpu.memory_space<vmem>>, vector<1x1x1xf32>,
    } else {
    }
    %c0 = arith.constant 0 : index
    %c0_1 = arith.constant 0 : index
    %3 = vector.load %arg5[%c0, %c0_1] : memref<128x128xf32, #tpu.memory_space<vmem>>, vector<128x128xf32>
    %c0_2 = arith.constant 0 : index
    %c0_3 = arith.constant 0 : index
    %4 = vector.load %arg6[%c0_2, %c0_3] : memref<128x128xf32, #tpu.memory_space<vmem>>, vector<128x128xf32>
    %c0_4 = arith.constant 0 : index
    %c0_5 = arith.constant 0 : index
    %5 = vector.load %arg3[%c0_4, %c0_5] : memref<32x128xf32, #tpu.memory_space<vmem>>, vector<32x128xf32>
    %6 = arith.mulf %5, %5 : vector<32x128xf32>
    %cst = arith.constant dense<0.000000e+00> : vector<32xf32>
    %7 = vector.multi_reduction <add>, %6, %cst [1] : vector<32x128xf32> to vector<32xf32>
    %8 = vector.shape_cast %7 : vector<32xf32> to vector<32x1xf32>
    %9 = math.sqrt %8 : vector<32x1xf32>
    %cst_6 = arith.constant 9.99999996E-13 : f32
    %10 = vector.broadcast %cst_6 : f32 to vector<32x1xf32>
    %11 = arith.maximumf %9, %10 : vector<32x1xf32>
    %12 = vector.broadcast %11 : vector<32x1xf32> to vector<32x128xf32>
    %13 = arith.divf %5, %12 : vector<32x128xf32>
    %c0_7 = arith.constant 0 : index
    %c0_8 = arith.constant 0 : index
    %14 = vector.load %arg4[%c0_7, %c0_8] : memref<32x128xf32, #tpu.memory_space<vmem>>, vector<32x128xf32>
    %15 = arith.mulf %14, %14 : vector<32x128xf32>
    %cst_9 = arith.constant dense<0.000000e+00> : vector<32xf32>
    %16 = vector.multi_reduction <add>, %15, %cst_9 [1] : vector<32x128xf32> to vector<32xf32>
    %17 = vector.shape_cast %16 : vector<32xf32> to vector<32x1xf32>
    %18 = math.sqrt %17 : vector<32x1xf32>
    %cst_10 = arith.constant 9.99999996E-13 : f32
    %19 = vector.broadcast %cst_10 : f32 to vector<32x1xf32>
    %20 = arith.maximumf %18, %19 : vector<32x1xf32>
    %21 = vector.broadcast %20 : vector<32x1xf32> to vector<32x128xf32>
    %22 = arith.divf %14, %21 : vector<32x128xf32>
    %c0_11 = arith.constant 0 : index
    %c0_12 = arith.constant 0 : index
    %23 = vector.load %arg7[%c0_11, %c0_12] : memref<32x128xf32, #tpu.memory_space<vmem>>, vector<32x128xf32>
    tpu.vector_store %arg7[%c0_11, %c0_12], %13 {strides = array<i32>} : memref<32x128xf32, #tpu.memory_space<vmem>>, vector<32x128xf32>,
    %cst_13 = arith.constant 1.000000e+00 : f32
    %24 = vector.broadcast %cst_13 : f32 to vector<32x1xf32>
    %cst_14 = arith.constant dense<0.000000e+00> : vector<32x128xf32>
    %25 = tpu.matmul %13, %3, %cst_14 {dimension_numbers = #tpu.dot_dimension_numbers<[1], [1], [0], [0], [0, 0, 1, 0], [], []>} : vector<32x128xf32>, vector<128x128xf32>, vector<32x128xf32> -> vector<32x128xf32>
    %cst_15 = arith.constant dense<0.000000e+00> : vector<32x128xf32>
    %26 = tpu.matmul %22, %4, %cst_15 {dimension_numbers = #tpu.dot_dimension_numbers<[1], [1], [0], [0], [0, 0, 1, 0], [], []>} : vector<32x128xf32>, vector<128x128xf32>, vector<32x128xf32> -> vector<32x128xf32>
    %27 = tpu.iota {dimensions = array<i32: 1>} : vector<32x128xi32>
    %c64_i32 = arith.constant 64 : i32
    %28 = vector.broadcast %c64_i32 : i32 to vector<32x128xi32>
    %29 = arith.cmpi slt, %27, %28 : vector<32x128xi32>
    %c0_16 = arith.constant 0 : index
    %30 = memref.load %arg2[%c0_16] : memref<4xf32, #tpu.memory_space<smem>>
    %c1 = arith.constant 1 : index
    %31 = memref.load %arg2[%c1] : memref<4xf32, #tpu.memory_space<smem>>
    %32 = vector.broadcast %30 : f32 to vector<32x128xf32>
    %33 = arith.cmpf ogt, %25, %32 : vector<32x128xf32>
    %34 = vector.broadcast %31 : f32 to vector<32x128xf32>
    %35 = arith.cmpf olt, %25, %34 : vector<32x128xf32>
    %36 = arith.andi %33, %29 : vector<32x128xi1>
    %37 = arith.andi %35, %29 : vector<32x128xi1>
    %cst_17 = arith.constant 0.000000e+00 : f32
    %38 = vector.broadcast %cst_17 : f32 to vector<32x128xf32>
    %39 = arith.select %36, %25, %38 : vector<32x128xi1>, vector<32x128xf32>
    %cst_18 = arith.constant 1.000000e+30 : f32
    %40 = vector.broadcast %cst_18 : f32 to vector<32x128xf32>
    %41 = arith.select %36, %25, %40 : vector<32x128xi1>, vector<32x128xf32>
    %cst_19 = arith.constant dense<0x7F800000> : vector<32xf32>
    %42 = vector.multi_reduction <minimumf>, %41, %cst_19 [1] : vector<32x128xf32> to vector<32xf32>
    %43 = vector.shape_cast %42 : vector<32xf32> to vector<32x1xf32>
    %44 = vector.broadcast %43 : vector<32x1xf32> to vector<32x128xf32>
    %45 = arith.cmpf oeq, %41, %44 : vector<32x128xf32>
    %c128_i32 = arith.constant 128 : i32
    %46 = vector.broadcast %c128_i32 : i32 to vector<32x128xi32>
    %47 = arith.select %45, %27, %46 : vector<32x128xi1>, vector<32x128xi32>
    %cst_20 = arith.constant dense<2147483647> : vector<32xi32>
    %48 = vector.multi_reduction <minsi>, %47, %cst_20 [1] : vector<32x128xi32> to vector<32xi32>
    %49 = vector.shape_cast %48 : vector<32xi32> to vector<32x1xi32>
    %50 = vector.broadcast %49 : vector<32x1xi32> to vector<32x128xi32>
    %51 = arith.cmpi eq, %27, %50 : vector<32x128xi32>
    %52 = arith.extui %51 : vector<32x128xi1> to vector<32x128xi32>
    %53 = arith.sitofp %52 : vector<32x128xi32> to vector<32x128xf32>
    %cst_21 = arith.constant 0.000000e+00 : f32
    %cst_22 = arith.constant 1.000000e+30 : f32
    %54 = arith.subf %cst_21, %cst_22 : f32
    %55 = vector.broadcast %54 : f32 to vector<32x128xf32>
    %56 = arith.select %37, %25, %55 : vector<32x128xi1>, vector<32x128xf32>
    %cst_23 = arith.constant dense<0xFF800000> : vector<32xf32>
    %57 = vector.multi_reduction <maximumf>, %56, %cst_23 [1] : vector<32x128xf32> to vector<32xf32>
    %58 = vector.shape_cast %57 : vector<32xf32> to vector<32x1xf32>
    %59 = vector.broadcast %58 : vector<32x1xf32> to vector<32x128xf32>
    %60 = arith.cmpf oeq, %56, %59 : vector<32x128xf32>
    %c128_i32_24 = arith.constant 128 : i32
    %61 = vector.broadcast %c128_i32_24 : i32 to vector<32x128xi32>
    %62 = arith.select %60, %27, %61 : vector<32x128xi1>, vector<32x128xi32>
    %cst_25 = arith.constant dense<2147483647> : vector<32xi32>
    %63 = vector.multi_reduction <minsi>, %62, %cst_25 [1] : vector<32x128xi32> to vector<32xi32>
    %64 = vector.shape_cast %63 : vector<32xi32> to vector<32x1xi32>
    %65 = vector.broadcast %64 : vector<32x1xi32> to vector<32x128xi32>
    %66 = arith.cmpi eq, %27, %65 : vector<32x128xi32>
    %67 = arith.extui %66 : vector<32x128xi1> to vector<32x128xi32>
    %68 = arith.sitofp %67 : vector<32x128xi32> to vector<32x128xf32>
    %69 = arith.extui %36 : vector<32x128xi1> to vector<32x128xi32>
    %70 = arith.sitofp %69 : vector<32x128xi32> to vector<32x128xf32>
    %cst_26 = arith.constant dense<0xFF800000> : vector<32xf32>
    %71 = vector.multi_reduction <maximumf>, %70, %cst_26 [1] : vector<32x128xf32> to vector<32xf32>
    %72 = vector.shape_cast %71 : vector<32xf32> to vector<32x1xf32>
    %73 = arith.extui %37 : vector<32x128xi1> to vector<32x128xi32>
    %74 = arith.sitofp %73 : vector<32x128xi32> to vector<32x128xf32>
    %cst_27 = arith.constant dense<0xFF800000> : vector<32xf32>
    %75 = vector.multi_reduction <maximumf>, %74, %cst_27 [1] : vector<32x128xf32> to vector<32xf32>
    %76 = vector.shape_cast %75 : vector<32xf32> to vector<32x1xf32>
    %cst_28 = arith.constant 0.000000e+00 : f32
    %77 = vector.broadcast %cst_28 : f32 to vector<32x1xf32>
    %78 = arith.subf %77, %76 : vector<32x1xf32>
    %c0_29 = arith.constant 0 : index
    %c0_30 = arith.constant 0 : index
    %c0_31 = arith.constant 0 : index
    %79 = vector.load %arg12[%c0_29, %c0_30, %c0_31] : memref<1x1x1xf32, #tpu.memory_space<vmem>>, vector<1x1x1xf32>
    %80 = vector.shape_cast %79 : vector<1x1x1xf32> to vector<1x1xf32>
    %81 = vector.broadcast %72 : vector<32x1xf32> to vector<32x128xf32>
    %82 = arith.mulf %81, %53 : vector<32x128xf32>
    %83 = vector.broadcast %78 : vector<32x1xf32> to vector<32x128xf32>
    %84 = arith.mulf %83, %68 : vector<32x128xf32>
    %85 = arith.addf %82, %84 : vector<32x128xf32>
    %86 = arith.mulf %85, %26 : vector<32x128xf32>
    %87 = vector.shape_cast %86 : vector<32x128xf32> to vector<1x32x128xf32>
    %cst_32 = arith.constant dense<0.000000e+00> : vector<1xf32>
    %88 = vector.multi_reduction <add>, %87, %cst_32 [1, 2] : vector<1x32x128xf32> to vector<1xf32>
    %89 = vector.shape_cast %88 : vector<1xf32> to vector<1x1x1xf32>
    %90 = vector.extract %89[0, 0, 0] : f32 from vector<1x1x1xf32>
    %91 = vector.broadcast %90 : f32 to vector<1x1xf32>
    %92 = arith.addf %80, %91 : vector<1x1xf32>
    %c0_33 = arith.constant 0 : index
    %c0_34 = arith.constant 0 : index
    %c0_35 = arith.constant 0 : index
    %93 = vector.load %arg12[%c0_33, %c0_34, %c0_35] : memref<1x1x1xf32, #tpu.memory_space<vmem>>, vector<1x1x1xf32>
    %94 = vector.shape_cast %93 : vector<1x1x1xf32> to vector<1x1xf32>
    %95 = vector.shape_cast %92 : vector<1x1xf32> to vector<1x1x1xf32>
    tpu.vector_store %arg12[%c0_33, %c0_34, %c0_35], %95 {strides = array<i32>} : memref<1x1x1xf32, #tpu.memory_space<vmem>>, vector<1x1x1xf32>,
    %96 = math.absf %39 : vector<32x128xf32>
    %cst_36 = arith.constant dense<0.000000e+00> : vector<32xf32>
    %97 = vector.multi_reduction <add>, %96, %cst_36 [1] : vector<32x128xf32> to vector<32xf32>
    %98 = vector.shape_cast %97 : vector<32xf32> to vector<32x1xf32>
    %cst_37 = arith.constant 9.99999996E-13 : f32
    %99 = vector.broadcast %cst_37 : f32 to vector<32x1xf32>
    %100 = arith.maximumf %98, %99 : vector<32x1xf32>
    %101 = vector.broadcast %100 : vector<32x1xf32> to vector<32x128xf32>
    %102 = arith.divf %39, %101 : vector<32x128xf32>
    %cst_38 = arith.constant 5.000000e-01 : f32
    %103 = vector.broadcast %cst_38 : f32 to vector<32x128xf32>
    %104 = arith.mulf %102, %103 : vector<32x128xf32>
    %cst_39 = arith.constant 1.000000e+00 : f32
    %105 = vector.broadcast %cst_39 : f32 to vector<32x128xf32>
    %106 = arith.subf %105, %104 : vector<32x128xf32>
    %107 = arith.mulf %104, %106 : vector<32x128xf32>
    %cst_40 = arith.constant 2.000000e+00 : f32
    %108 = vector.broadcast %cst_40 : f32 to vector<32x128xf32>
    %109 = arith.mulf %108, %107 : vector<32x128xf32>
    %cst_41 = arith.constant 1.000000e+00 : f32
    %110 = vector.broadcast %cst_41 : f32 to vector<32x128xf32>
    %111 = arith.subf %26, %110 : vector<32x128xf32>
    %112 = arith.mulf %109, %111 : vector<32x128xf32>
    %cst_42 = arith.constant 1.000000e+00 : f32
    %113 = vector.broadcast %cst_42 : f32 to vector<32x128xf32>
    %114 = arith.addf %113, %112 : vector<32x128xf32>
    %cst_43 = arith.constant 1.000000e-24 : f32
    %115 = vector.broadcast %cst_43 : f32 to vector<32x128xf32>
    %116 = arith.maximumf %114, %115 : vector<32x128xf32>
    %117 = math.rsqrt %116 : vector<32x128xf32>
    %c0_44 = arith.constant 0 : index
    %c0_45 = arith.constant 0 : index
    %c0_46 = arith.constant 0 : index
    %118 = vector.load %arg10[%c0_44, %c0_45, %c0_46] : memref<1x128x128xf32, #tpu.memory_space<vmem>>, vector<1x128x128xf32>
    %119 = vector.shape_cast %118 : vector<1x128x128xf32> to vector<128x128xf32>
    %120 = arith.mulf %106, %117 : vector<32x128xf32>
    %cst_47 = arith.constant dense<0.000000e+00> : vector<128x1xf32>
    %121 = tpu.matmul %120, %24, %cst_47 {dimension_numbers = #tpu.dot_dimension_numbers<[0], [0], [1], [1], [0, 1, 1, 1], [], []>} : vector<32x128xf32>, vector<32x1xf32>, vector<128x1xf32> -> vector<128x1xf32>
    %122 = vector.broadcast %121 : vector<128x1xf32> to vector<128x128xf32>
    %123 = arith.mulf %122, %4 : vector<128x128xf32>
    %124 = arith.mulf %104, %117 : vector<32x128xf32>
    %cst_48 = arith.constant dense<0.000000e+00> : vector<128x128xf32>
    %125 = tpu.matmul %124, %22, %cst_48 {dimension_numbers = #tpu.dot_dimension_numbers<[0], [0], [1], [1], [0, 1, 1, 1], [], []>} : vector<32x128xf32>, vector<32x128xf32>, vector<128x128xf32> -> vector<128x128xf32>
    %126 = arith.addf %123, %125 : vector<128x128xf32>
    %127 = arith.addf %119, %126 : vector<128x128xf32>
    %c0_49 = arith.constant 0 : index
    %c0_50 = arith.constant 0 : index
    %c0_51 = arith.constant 0 : index
    %128 = vector.load %arg10[%c0_49, %c0_50, %c0_51] : memref<1x128x128xf32, #tpu.memory_space<vmem>>, vector<1x128x128xf32>
    %129 = vector.shape_cast %128 : vector<1x128x128xf32> to vector<128x128xf32>
    %130 = vector.shape_cast %127 : vector<128x128xf32> to vector<1x128x128xf32>
    tpu.vector_store %arg10[%c0_49, %c0_50, %c0_51], %130 {strides = array<i32>} : memref<1x128x128xf32, #tpu.memory_space<vmem>>, vector<1x128x128xf32>,
    %c2 = arith.constant 2 : index
    %131 = memref.load %arg2[%c2] : memref<4xf32, #tpu.memory_space<smem>>
    %c3 = arith.constant 3 : index
    %132 = memref.load %arg2[%c3] : memref<4xf32, #tpu.memory_space<smem>>
    %133 = vector.broadcast %131 : f32 to vector<32x128xf32>
    %134 = arith.cmpf ogt, %26, %133 : vector<32x128xf32>
    %135 = vector.broadcast %132 : f32 to vector<32x128xf32>
    %136 = arith.cmpf olt, %26, %135 : vector<32x128xf32>
    %137 = arith.andi %134, %29 : vector<32x128xi1>
    %138 = arith.andi %136, %29 : vector<32x128xi1>
    %cst_52 = arith.constant 0.000000e+00 : f32
    %139 = vector.broadcast %cst_52 : f32 to vector<32x128xf32>
    %140 = arith.select %137, %26, %139 : vector<32x128xi1>, vector<32x128xf32>
    %cst_53 = arith.constant 1.000000e+30 : f32
    %141 = vector.broadcast %cst_53 : f32 to vector<32x128xf32>
    %142 = arith.select %137, %26, %141 : vector<32x128xi1>, vector<32x128xf32>
    %cst_54 = arith.constant dense<0x7F800000> : vector<32xf32>
    %143 = vector.multi_reduction <minimumf>, %142, %cst_54 [1] : vector<32x128xf32> to vector<32xf32>
    %144 = vector.shape_cast %143 : vector<32xf32> to vector<32x1xf32>
    %145 = vector.broadcast %144 : vector<32x1xf32> to vector<32x128xf32>
    %146 = arith.cmpf oeq, %142, %145 : vector<32x128xf32>
    %c128_i32_55 = arith.constant 128 : i32
    %147 = vector.broadcast %c128_i32_55 : i32 to vector<32x128xi32>
    %148 = arith.select %146, %27, %147 : vector<32x128xi1>, vector<32x128xi32>
    %cst_56 = arith.constant dense<2147483647> : vector<32xi32>
    %149 = vector.multi_reduction <minsi>, %148, %cst_56 [1] : vector<32x128xi32> to vector<32xi32>
    %150 = vector.shape_cast %149 : vector<32xi32> to vector<32x1xi32>
    %151 = vector.broadcast %150 : vector<32x1xi32> to vector<32x128xi32>
    %152 = arith.cmpi eq, %27, %151 : vector<32x128xi32>
    %153 = arith.extui %152 : vector<32x128xi1> to vector<32x128xi32>
    %154 = arith.sitofp %153 : vector<32x128xi32> to vector<32x128xf32>
    %cst_57 = arith.constant 0.000000e+00 : f32
    %cst_58 = arith.constant 1.000000e+30 : f32
    %155 = arith.subf %cst_57, %cst_58 : f32
    %156 = vector.broadcast %155 : f32 to vector<32x128xf32>
    %157 = arith.select %138, %26, %156 : vector<32x128xi1>, vector<32x128xf32>
    %cst_59 = arith.constant dense<0xFF800000> : vector<32xf32>
    %158 = vector.multi_reduction <maximumf>, %157, %cst_59 [1] : vector<32x128xf32> to vector<32xf32>
    %159 = vector.shape_cast %158 : vector<32xf32> to vector<32x1xf32>
    %160 = vector.broadcast %159 : vector<32x1xf32> to vector<32x128xf32>
    %161 = arith.cmpf oeq, %157, %160 : vector<32x128xf32>
    %c128_i32_60 = arith.constant 128 : i32
    %162 = vector.broadcast %c128_i32_60 : i32 to vector<32x128xi32>
    %163 = arith.select %161, %27, %162 : vector<32x128xi1>, vector<32x128xi32>
    %cst_61 = arith.constant dense<2147483647> : vector<32xi32>
    %164 = vector.multi_reduction <minsi>, %163, %cst_61 [1] : vector<32x128xi32> to vector<32xi32>
    %165 = vector.shape_cast %164 : vector<32xi32> to vector<32x1xi32>
    %166 = vector.broadcast %165 : vector<32x1xi32> to vector<32x128xi32>
    %167 = arith.cmpi eq, %27, %166 : vector<32x128xi32>
    %168 = arith.extui %167 : vector<32x128xi1> to vector<32x128xi32>
    %169 = arith.sitofp %168 : vector<32x128xi32> to vector<32x128xf32>
    %170 = arith.extui %137 : vector<32x128xi1> to vector<32x128xi32>
    %171 = arith.sitofp %170 : vector<32x128xi32> to vector<32x128xf32>
    %cst_62 = arith.constant dense<0xFF800000> : vector<32xf32>
    %172 = vector.multi_reduction <maximumf>, %171, %cst_62 [1] : vector<32x128xf32> to vector<32xf32>
    %173 = vector.shape_cast %172 : vector<32xf32> to vector<32x1xf32>
    %174 = arith.extui %138 : vector<32x128xi1> to vector<32x128xi32>
    %175 = arith.sitofp %174 : vector<32x128xi32> to vector<32x128xf32>
    %cst_63 = arith.constant dense<0xFF800000> : vector<32xf32>
    %176 = vector.multi_reduction <maximumf>, %175, %cst_63 [1] : vector<32x128xf32> to vector<32xf32>
    %177 = vector.shape_cast %176 : vector<32xf32> to vector<32x1xf32>
    %cst_64 = arith.constant 0.000000e+00 : f32
    %178 = vector.broadcast %cst_64 : f32 to vector<32x1xf32>
    %179 = arith.subf %178, %177 : vector<32x1xf32>
    %c0_65 = arith.constant 0 : index
    %c0_66 = arith.constant 0 : index
    %c0_67 = arith.constant 0 : index
    %180 = vector.load %arg11[%c0_65, %c0_66, %c0_67] : memref<1x1x1xf32, #tpu.memory_space<vmem>>, vector<1x1x1xf32>
    %181 = vector.shape_cast %180 : vector<1x1x1xf32> to vector<1x1xf32>
    %182 = vector.broadcast %173 : vector<32x1xf32> to vector<32x128xf32>
    %183 = arith.mulf %182, %154 : vector<32x128xf32>
    %184 = vector.broadcast %179 : vector<32x1xf32> to vector<32x128xf32>
    %185 = arith.mulf %184, %169 : vector<32x128xf32>
    %186 = arith.addf %183, %185 : vector<32x128xf32>
    %187 = arith.mulf %186, %25 : vector<32x128xf32>
    %188 = vector.shape_cast %187 : vector<32x128xf32> to vector<1x32x128xf32>
    %cst_68 = arith.constant dense<0.000000e+00> : vector<1xf32>
    %189 = vector.multi_reduction <add>, %188, %cst_68 [1, 2] : vector<1x32x128xf32> to vector<1xf32>
    %190 = vector.shape_cast %189 : vector<1xf32> to vector<1x1x1xf32>
    %191 = vector.extract %190[0, 0, 0] : f32 from vector<1x1x1xf32>
    %192 = vector.broadcast %191 : f32 to vector<1x1xf32>
    %193 = arith.addf %181, %192 : vector<1x1xf32>
    %c0_69 = arith.constant 0 : index
    %c0_70 = arith.constant 0 : index
    %c0_71 = arith.constant 0 : index
    %194 = vector.load %arg11[%c0_69, %c0_70, %c0_71] : memref<1x1x1xf32, #tpu.memory_space<vmem>>, vector<1x1x1xf32>
    %195 = vector.shape_cast %194 : vector<1x1x1xf32> to vector<1x1xf32>
    %196 = vector.shape_cast %193 : vector<1x1xf32> to vector<1x1x1xf32>
    tpu.vector_store %arg11[%c0_69, %c0_70, %c0_71], %196 {strides = array<i32>} : memref<1x1x1xf32, #tpu.memory_space<vmem>>, vector<1x1x1xf32>,
    %cst_72 = arith.constant dense<0xFF800000> : vector<32xf32>
    %197 = vector.multi_reduction <maximumf>, %140, %cst_72 [1] : vector<32x128xf32> to vector<32xf32>
    %198 = vector.shape_cast %197 : vector<32xf32> to vector<32x1xf32>
    %199 = vector.broadcast %198 : vector<32x1xf32> to vector<32x128xf32>
    %200 = arith.cmpf oeq, %140, %199 : vector<32x128xf32>
    %c128_i32_73 = arith.constant 128 : i32
    %201 = vector.broadcast %c128_i32_73 : i32 to vector<32x128xi32>
    %202 = arith.select %200, %27, %201 : vector<32x128xi1>, vector<32x128xi32>
    %cst_74 = arith.constant dense<2147483647> : vector<32xi32>
    %203 = vector.multi_reduction <minsi>, %202, %cst_74 [1] : vector<32x128xi32> to vector<32xi32>
    %204 = vector.shape_cast %203 : vector<32xi32> to vector<32x1xi32>
    %205 = vector.broadcast %204 : vector<32x1xi32> to vector<32x128xi32>
    %206 = arith.cmpi eq, %27, %205 : vector<32x128xi32>
    %207 = arith.extui %206 : vector<32x128xi1> to vector<32x128xi32>
    %208 = arith.sitofp %207 : vector<32x128xi32> to vector<32x128xf32>
    %209 = arith.mulf %208, %140 : vector<32x128xf32>
    %cst_75 = arith.constant 0.000000e+00 : f32
    %210 = vector.broadcast %cst_75 : f32 to vector<32x128xf32>
    %211 = arith.cmpf ogt, %209, %210 : vector<32x128xf32>
    %cst_76 = arith.constant 1.000000e+00 : f32
    %cst_77 = arith.constant 0.000000e+00 : f32
    %212 = vector.broadcast %cst_76 : f32 to vector<32x128xf32>
    %213 = vector.broadcast %cst_77 : f32 to vector<32x128xf32>
    %214 = arith.select %211, %212, %213 : vector<32x128xi1>, vector<32x128xf32>
    %cst_78 = arith.constant 5.000000e-01 : f32
    %215 = vector.broadcast %cst_78 : f32 to vector<32x128xf32>
    %216 = arith.mulf %214, %215 : vector<32x128xf32>
    %cst_79 = arith.constant 1.000000e+00 : f32
    %217 = vector.broadcast %cst_79 : f32 to vector<32x128xf32>
    %218 = arith.subf %217, %216 : vector<32x128xf32>
    %219 = arith.mulf %216, %218 : vector<32x128xf32>
    %cst_80 = arith.constant 2.000000e+00 : f32
    %220 = vector.broadcast %cst_80 : f32 to vector<32x128xf32>
    %221 = arith.mulf %220, %219 : vector<32x128xf32>
    %cst_81 = arith.constant 1.000000e+00 : f32
    %222 = vector.broadcast %cst_81 : f32 to vector<32x128xf32>
    %223 = arith.subf %25, %222 : vector<32x128xf32>
    %224 = arith.mulf %221, %223 : vector<32x128xf32>
    %cst_82 = arith.constant 1.000000e+00 : f32
    %225 = vector.broadcast %cst_82 : f32 to vector<32x128xf32>
    %226 = arith.addf %225, %224 : vector<32x128xf32>
    %cst_83 = arith.constant 1.000000e-24 : f32
    %227 = vector.broadcast %cst_83 : f32 to vector<32x128xf32>
    %228 = arith.maximumf %226, %227 : vector<32x128xf32>
    %229 = math.rsqrt %228 : vector<32x128xf32>
    %c0_84 = arith.constant 0 : index
    %c0_85 = arith.constant 0 : index
    %c0_86 = arith.constant 0 : index
    %230 = vector.load %arg9[%c0_84, %c0_85, %c0_86] : memref<1x128x128xf32, #tpu.memory_space<vmem>>, vector<1x128x128xf32>
    %231 = vector.shape_cast %230 : vector<1x128x128xf32> to vector<128x128xf32>
    %232 = arith.mulf %218, %229 : vector<32x128xf32>
    %cst_87 = arith.constant dense<0.000000e+00> : vector<128x1xf32>
    %233 = tpu.matmul %232, %24, %cst_87 {dimension_numbers = #tpu.dot_dimension_numbers<[0], [0], [1], [1], [0, 1, 1, 1], [], []>} : vector<32x128xf32>, vector<32x1xf32>, vector<128x1xf32> -> vector<128x1xf32>
    %234 = vector.broadcast %233 : vector<128x1xf32> to vector<128x128xf32>
    %235 = arith.mulf %234, %3 : vector<128x128xf32>
    %236 = arith.mulf %216, %229 : vector<32x128xf32>
    %cst_88 = arith.constant dense<0.000000e+00> : vector<128x128xf32>
    %237 = tpu.matmul %236, %13, %cst_88 {dimension_numbers = #tpu.dot_dimension_numbers<[0], [0], [1], [1], [0, 1, 1, 1], [], []>} : vector<32x128xf32>, vector<32x128xf32>, vector<128x128xf32> -> vector<128x128xf32>
    %238 = arith.addf %235, %237 : vector<128x128xf32>
    %239 = arith.addf %231, %238 : vector<128x128xf32>
    %c0_89 = arith.constant 0 : index
    %c0_90 = arith.constant 0 : index
    %c0_91 = arith.constant 0 : index
    %240 = vector.load %arg9[%c0_89, %c0_90, %c0_91] : memref<1x128x128xf32, #tpu.memory_space<vmem>>, vector<1x128x128xf32>
    %241 = vector.shape_cast %240 : vector<1x128x128xf32> to vector<128x128xf32>
    %242 = vector.shape_cast %239 : vector<128x128xf32> to vector<1x128x128xf32>
    tpu.vector_store %arg9[%c0_89, %c0_90, %c0_91], %242 {strides = array<i32>} : memref<1x128x128xf32, #tpu.memory_space<vmem>>, vector<1x128x128xf32>,
    %cst_92 = arith.constant dense<0.000000e+00> : vector<32x128xf32>
    %243 = tpu.matmul %39, %4, %cst_92 {dimension_numbers = #tpu.dot_dimension_numbers<[1], [0], [0], [1], [0, 0, 1, 1], [], []>} : vector<32x128xf32>, vector<128x128xf32>, vector<32x128xf32> -> vector<32x128xf32>
    %244 = arith.addf %22, %243 : vector<32x128xf32>
    %245 = arith.mulf %244, %244 : vector<32x128xf32>
    %cst_93 = arith.constant dense<0.000000e+00> : vector<32xf32>
    %246 = vector.multi_reduction <add>, %245, %cst_93 [1] : vector<32x128xf32> to vector<32xf32>
    %247 = vector.shape_cast %246 : vector<32xf32> to vector<32x1xf32>
    %248 = math.sqrt %247 : vector<32x1xf32>
    %cst_94 = arith.constant 9.99999996E-13 : f32
    %249 = vector.broadcast %cst_94 : f32 to vector<32x1xf32>
    %250 = arith.maximumf %248, %249 : vector<32x1xf32>
    %251 = vector.broadcast %250 : vector<32x1xf32> to vector<32x128xf32>
    %252 = arith.divf %244, %251 : vector<32x128xf32>
    %c0_95 = arith.constant 0 : index
    %c0_96 = arith.constant 0 : index
    %253 = vector.load %arg8[%c0_95, %c0_96] : memref<32x128xf32, #tpu.memory_space<vmem>>, vector<32x128xf32>
    tpu.vector_store %arg8[%c0_95, %c0_96], %252 {strides = array<i32>} : memref<32x128xf32, #tpu.memory_space<vmem>>, vector<32x128xf32>,
    %254 = arith.subf %26, %25 : vector<32x128xf32>
    %c0_97 = arith.constant 0 : index
    %c0_98 = arith.constant 0 : index
    %c0_99 = arith.constant 0 : index
    %255 = vector.load %arg13[%c0_97, %c0_98, %c0_99] : memref<1x1x1xf32, #tpu.memory_space<vmem>>, vector<1x1x1xf32>
    %256 = vector.shape_cast %255 : vector<1x1x1xf32> to vector<1x1xf32>
    %257 = arith.mulf %254, %254 : vector<32x128xf32>
    %258 = vector.shape_cast %257 : vector<32x128xf32> to vector<1x32x128xf32>
    %cst_100 = arith.constant dense<0.000000e+00> : vector<1xf32>
    %259 = vector.multi_reduction <add>, %258, %cst_100 [1, 2] : vector<1x32x128xf32> to vector<1xf32>
    %260 = vector.shape_cast %259 : vector<1xf32> to vector<1x1x1xf32>
    %261 = vector.extract %260[0, 0, 0] : f32 from vector<1x1x1xf32>
    %262 = vector.broadcast %261 : f32 to vector<1x1xf32>
    %263 = arith.addf %256, %262 : vector<1x1xf32>
    %c0_101 = arith.constant 0 : index
    %c0_102 = arith.constant 0 : index
    %c0_103 = arith.constant 0 : index
    %264 = vector.load %arg13[%c0_101, %c0_102, %c0_103] : memref<1x1x1xf32, #tpu.memory_space<vmem>>, vector<1x1x1xf32>
    %265 = vector.shape_cast %264 : vector<1x1x1xf32> to vector<1x1xf32>
    %266 = vector.shape_cast %263 : vector<1x1xf32> to vector<1x1x1xf32>
    tpu.vector_store %arg13[%c0_101, %c0_102, %c0_103], %266 {strides = array<i32>} : memref<1x1x1xf32, #tpu.memory_space<vmem>>, vector<1x1x1xf32>,
    return
  }
  func.func @transform_0(%arg0: i32, %arg1: i32) -> i32 {
    %c0_i32 = arith.constant 0 : i32
    %c0_i32_0 = arith.constant 0 : i32
    return %c0_i32 : i32
  }
  func.func @transform_1(%arg0: i32, %arg1: i32) -> (i32, i32) {
    %c1_i32 = arith.constant 1 : i32
    %0 = arith.muli %arg0, %c1_i32 : i32
    %1 = arith.addi %0, %arg1 : i32
    %c0_i32 = arith.constant 0 : i32
    %c0_i32_0 = arith.constant 0 : i32
    return %1, %c0_i32 : i32, i32
  }
  func.func @transform_2(%arg0: i32, %arg1: i32) -> (i32, i32) {
    %c1_i32 = arith.constant 1 : i32
    %0 = arith.muli %arg0, %c1_i32 : i32
    %1 = arith.addi %0, %arg1 : i32
    %c0_i32 = arith.constant 0 : i32
    %c0_i32_0 = arith.constant 0 : i32
    return %1, %c0_i32 : i32, i32
  }
  func.func @transform_3(%arg0: i32, %arg1: i32) -> (i32, i32) {
    %c0_i32 = arith.constant 0 : i32
    %c0_i32_0 = arith.constant 0 : i32
    %c0_i32_1 = arith.constant 0 : i32
    return %c0_i32, %c0_i32_0 : i32, i32
  }
  func.func @transform_4(%arg0: i32, %arg1: i32) -> (i32, i32) {
    %c0_i32 = arith.constant 0 : i32
    %c0_i32_0 = arith.constant 0 : i32
    %c0_i32_1 = arith.constant 0 : i32
    return %c0_i32, %c0_i32_0 : i32, i32
  }
  func.func @transform_5(%arg0: i32, %arg1: i32) -> (i32, i32) {
    %c1_i32 = arith.constant 1 : i32
    %0 = arith.muli %arg0, %c1_i32 : i32
    %1 = arith.addi %0, %arg1 : i32
    %c0_i32 = arith.constant 0 : i32
    %c0_i32_0 = arith.constant 0 : i32
    return %1, %c0_i32 : i32, i32
  }
  func.func @transform_6(%arg0: i32, %arg1: i32) -> (i32, i32) {
    %c1_i32 = arith.constant 1 : i32
    %0 = arith.muli %arg0, %c1_i32 : i32
    %1 = arith.addi %0, %arg1 : i32
    %c0_i32 = arith.constant 0 : i32
    %c0_i32_0 = arith.constant 0 : i32
    return %1, %c0_i32 : i32, i32
  }
  func.func @transform_7(%arg0: i32, %arg1: i32) -> (i32, i32, i32) {
    %c0_i32 = arith.constant 0 : i32
    %c0_i32_0 = arith.constant 0 : i32
    %c0_i32_1 = arith.constant 0 : i32
    return %arg0, %c0_i32, %c0_i32_0 : i32, i32, i32
  }
  func.func @transform_8(%arg0: i32, %arg1: i32) -> (i32, i32, i32) {
    %c0_i32 = arith.constant 0 : i32
    %c0_i32_0 = arith.constant 0 : i32
    %c0_i32_1 = arith.constant 0 : i32
    return %arg0, %c0_i32, %c0_i32_0 : i32, i32, i32
  }
  func.func @transform_9(%arg0: i32, %arg1: i32) -> (i32, i32, i32) {
    %c0_i32 = arith.constant 0 : i32
    %c0_i32_0 = arith.constant 0 : i32
    %c0_i32_1 = arith.constant 0 : i32
    return %arg0, %c0_i32, %c0_i32_0 : i32, i32, i32
  }
  func.func @transform_10(%arg0: i32, %arg1: i32) -> (i32, i32, i32) {
    %c0_i32 = arith.constant 0 : i32
    %c0_i32_0 = arith.constant 0 : i32
    %c0_i32_1 = arith.constant 0 : i32
    return %arg0, %c0_i32, %c0_i32_0 : i32, i32, i32
  }
  func.func @transform_11(%arg0: i32, %arg1: i32) -> (i32, i32, i32) {
    %c0_i32 = arith.constant 0 : i32
    %c0_i32_0 = arith.constant 0 : i32
    %c0_i32_1 = arith.constant 0 : i32
    return %arg0, %c0_i32, %c0_i32_0 : i32, i32, i32
  }
}

</mosaic_0001>

<llo_original>
// kernel: tpu_custom_call.1
$region0: #{tpu_custom_call.1}
  #allocation0 [shape = 'u32[]', space=smem, size = 0x4, offset = 0x4, fixed_abs, tag = 'smem constant byte address 0x4 - core index']
  #allocation1 [shape = 'u32[144,128]{1,0:T(1,128)}', space=vmem, size = 0x12000, scoped, tag = 'internal scratch']
  %s0 = inlined_call_operand.hbm [shape: f32[4], index: 0, kind: input, shape index: {}]
  %s1 = inlined_call_operand.hbm [shape: f32[32,128], index: 1, kind: input, shape index: {}]
  %s2 = inlined_call_operand.hbm [shape: f32[32,128], index: 2, kind: input, shape index: {}]
  %s3 = inlined_call_operand.hbm [shape: f32[128,128], index: 3, kind: input, shape index: {}]
  %s4 = inlined_call_operand.hbm [shape: f32[128,128], index: 4, kind: input, shape index: {}]
  %s5 = inlined_call_operand.hbm [shape: f32[32,128], index: 5, kind: output, shape index: {0}]
  %s6 = inlined_call_operand.hbm [shape: f32[32,128], index: 6, kind: output, shape index: {1}]
  %s7 = inlined_call_operand.hbm [shape: f32[1,128,128], index: 7, kind: output, shape index: {2}]
  %s8 = inlined_call_operand.hbm [shape: f32[1,128,128], index: 8, kind: output, shape index: {3}]
  %s9 = inlined_call_operand.hbm [shape: f32[1,1,1], index: 9, kind: output, shape index: {4}]
  %s10 = inlined_call_operand.hbm [shape: f32[1,1,1], index: 10, kind: output, shape index: {5}]
  %s11 = inlined_call_operand.hbm [shape: f32[1,1,1], index: 11, kind: output, shape index: {6}]
  %12 = xla_tuple %s5, %s6, %s7, %s8, %s9, %s10, %s11
  %s13 = sld [smem:[#allocation0]]
  $region102: #{tpu_custom_call.1} parent=0
    _
  %s15 = ssub.s32 1, %s13
  %s16 = scalar_select 0, %s15, %s13
  $region1: #{tpu_custom_call.1} parent=0
    #allocation2 [shape = 'u8[512]{0}', space=smem, size = 0x200, scoped, tag = 'input window, operand 0, single buffered']
    #allocation3 [shape = 's32[1]{0}', space=sflag, size = 0x4, scoped, tag = 'scoped memory for tpu_custom_call.1']
    #allocation4 [shape = 's32[1]{0}', space=sflag, size = 0x4, scoped, tag = 'scoped memory for tpu_custom_call.1']
    #allocation5 [shape = 's32[1]{0}', space=sflag, size = 0x4, scoped, tag = 'scoped memory for tpu_custom_call.1']
    #allocation6 [shape = 'u8[16384]{0}', space=vmem, size = 0x4000, scoped, tag = 'input window, operand 1, single buffered']
    #allocation7 [shape = 'u8[16384]{0}', space=vmem, size = 0x4000, scoped, tag = 'input window, operand 2, single buffered']
    #allocation8 [shape = 's32[1]{0}', space=sflag, size = 0x4, scoped, tag = 'scoped memory for tpu_custom_call.1']
    #allocation9 [shape = 'u8[65536]{0}', space=vmem, size = 0x10000, scoped, tag = 'input window, operand 3, single buffered']
    #allocation10 [shape = 'u8[65536]{0}', space=vmem, size = 0x10000, scoped, tag = 'input window, operand 4, single buffered']
    #allocation11 [shape = 's32[1]{0}', space=sflag, size = 0x4, scoped, tag = 'scoped memory for tpu_custom_call.1']
    #allocation12 [shape = 'u8[16384]{0}', space=vmem, size = 0x4000, scoped, tag = 'output window, operand 0, single buffered']
    #allocation13 [shape = 'u8[16384]{0}', space=vmem, size = 0x4000, scoped, tag = 'output window, operand 1, single buffered']
    #allocation14 [shape = 's32[1]{0}', space=sflag, size = 0x4, scoped, tag = 'scoped memory for tpu_custom_call.1']
    #allocation15 [shape = 'u8[65536]{0}', space=vmem, size = 0x10000, scoped, tag = 'output window, operand 2, single buffered']
    #allocation16 [shape = 'u8[65536]{0}', space=vmem, size = 0x10000, scoped, tag = 'output window, operand 3, single buffered']
    #allocation17 [shape = 's32[1]{0}', space=sflag, size = 0x4, scoped, tag = 'scoped memory for tpu_custom_call.1']
    #allocation18 [shape = 'u8[512]{0}', space=vmem, size = 0x400, scoped, tag = 'output window, operand 4, single buffered']
    #allocation19 [shape = 'u8[512]{0}', space=vmem, size = 0x400, scoped, tag = 'output window, operand 5, single buffered']
    #allocation20 [shape = 's32[1]{0}', space=sflag, size = 0x4, scoped, tag = 'scoped memory for tpu_custom_call.1']
    #allocation21 [shape = 'u8[512]{0}', space=vmem, size = 0x400, scoped, tag = 'output window, operand 6, single buffered']
    %17 = vsyncpa [#allocation5], 0
    %18 = vsyncpa [#allocation3], 0
    %19 = vsyncpa [#allocation8], 0
    %20 = vsyncpa [#allocation11], 0
    %21 = vsyncpa [#allocation4], 0
    %22 = vsyncpa [#allocation14], 0
    %23 = vsyncpa [#allocation17], 0
    %24 = vsyncpa [#allocation20], 0
    // Predicated region
    $region2: #{tpu_custom_call.1} parent=1 // pred_check
      _
    $region3: #{tpu_custom_call.1} parent=1 // pred_check_branch
      %26 = sbr.rel (0) target = $region5
    $region4: #{tpu_custom_call.1} parent=1 // pred_region
      %s28 = ssub.s32 16, 16
      %29 = vsyncadd [#allocation5], %s28
      %32 = dma.hbm_to_smem %s0, 16, [#allocation2], [#allocation5]
    $region5: #{tpu_custom_call.1} parent=1 // pred_fallthru
      _
    // Predicated region
    $region6: #{tpu_custom_call.1} parent=1 // pred_check
      _
    $region7: #{tpu_custom_call.1} parent=1 // pred_check_branch
      %34 = sbr.rel (0) target = $region9
    $region8: #{tpu_custom_call.1} parent=1 // pred_region
      %s35 = sadd.s32 0, 0
      %s36 = smul.u32 4, %s35
      %s38 = ssub.s32 512, 512
      %39 = vsyncadd [#allocation3], %s38
      %s40 = smul.addr %s36, 128
      %s41 = scalar_lea.hbm %s1, %s40
      %s42 = sshll.u32 [#allocation6], 4
      %s43 = int_to_ptr.vmem [resolvable:$true] %s42
      %48 = dma.hbm_to_vmem [thread:$0]  %s41, 512, %s43, [#allocation3], 128, 128, 8
    $region9: #{tpu_custom_call.1} parent=1 // pred_fallthru
      _
    // Predicated region
    $region10: #{tpu_custom_call.1} parent=1 // pred_check
      _
    $region11: #{tpu_custom_call.1} parent=1 // pred_check_branch
      %50 = sbr.rel (0) target = $region13
    $region12: #{tpu_custom_call.1} parent=1 // pred_region
      %s51 = sadd.s32 0, 0
      %s52 = smul.u32 4, %s51
      %s54 = ssub.s32 512, 512
      %55 = vsyncadd [#allocation8], %s54
      %s56 = smul.addr %s52, 128
      %s57 = scalar_lea.hbm %s2, %s56
      %s58 = sshll.u32 [#allocation7], 4
      %s59 = int_to_ptr.vmem [resolvable:$true] %s58
      %64 = dma.hbm_to_vmem [thread:$0]  %s57, 512, %s59, [#allocation8], 128, 128, 8
    $region13: #{tpu_custom_call.1} parent=1 // pred_fallthru
      _
    // Predicated region
    $region14: #{tpu_custom_call.1} parent=1 // pred_check
      _
    $region15: #{tpu_custom_call.1} parent=1 // pred_check_branch
      %66 = sbr.rel (0) target = $region17
    $region16: #{tpu_custom_call.1} parent=1 // pred_region
      %s68 = ssub.s32 2048, 2048
      %69 = vsyncadd [#allocation8], %s68
      %s70 = sshll.u32 [#allocation9], 4
      %s71 = int_to_ptr.vmem [resolvable:$true] %s70
      %76 = dma.hbm_to_vmem [thread:$0]  %s3, 2048, %s71, [#allocation8], 128, 128, 8
    $region17: #{tpu_custom_call.1} parent=1 // pred_fallthru
      _
    // Predicated region
    $region18: #{tpu_custom_call.1} parent=1 // pred_check
      _
    $region19: #{tpu_custom_call.1} parent=1 // pred_check_branch
      %78 = sbr.rel (0) target = $region21
    $region20: #{tpu_custom_call.1} parent=1 // pred_region
      %s80 = ssub.s32 2048, 2048
      %81 = vsyncadd [#allocation11], %s80
      %s82 = sshll.u32 [#allocation10], 4
      %s83 = int_to_ptr.vmem [resolvable:$true] %s82
      %88 = dma.hbm_to_vmem [thread:$0]  %s4, 2048, %s83, [#allocation11], 128, 128, 8
    $region21: #{tpu_custom_call.1} parent=1 // pred_fallthru
      _
    // Predicated region
    $region22: #{tpu_custom_call.1} parent=1 // pred_check
      _
    $region23: #{tpu_custom_call.1} parent=1 // pred_check_branch
      %90 = sbr.rel (0) target = $region25
    $region24: #{tpu_custom_call.1} parent=1 // pred_region
      %91 = dma.done [#allocation5], 16
    $region25: #{tpu_custom_call.1} parent=1 // pred_fallthru
      _
    // Predicated region
    $region26: #{tpu_custom_call.1} parent=1 // pred_check
      _
    $region27: #{tpu_custom_call.1} parent=1 // pred_check_branch
      %93 = sbr.rel (0) target = $region29
    $region28: #{tpu_custom_call.1} parent=1 // pred_region
      %94 = dma.done [#allocation3], 512
    $region29: #{tpu_custom_call.1} parent=1 // pred_fallthru
      _
    // Predicated region
    $region30: #{tpu_custom_call.1} parent=1 // pred_check
      _
    $region31: #{tpu_custom_call.1} parent=1 // pred_check_branch
      %96 = sbr.rel (0) target = $region33
    $region32: #{tpu_custom_call.1} parent=1 // pred_region
      %97 = dma.done [#allocation8], 512
    $region33: #{tpu_custom_call.1} parent=1 // pred_fallthru
      _
    // Predicated region
    $region34: #{tpu_custom_call.1} parent=1 // pred_check
      _
    $region35: #{tpu_custom_call.1} parent=1 // pred_check_branch
      %99 = sbr.rel (0) target = $region37
    $region36: #{tpu_custom_call.1} parent=1 // pred_region
      %100 = dma.done [#allocation8], 2048
    $region37: #{tpu_custom_call.1} parent=1 // pred_fallthru
      _
    // Predicated region
    $region38: #{tpu_custom_call.1} parent=1 // pred_check
      _
    $region39: #{tpu_custom_call.1} parent=1 // pred_check_branch
      %102 = sbr.rel (0) target = $region41
    $region40: #{tpu_custom_call.1} parent=1 // pred_region
      %103 = dma.done [#allocation11], 2048
    $region41: #{tpu_custom_call.1} parent=1 // pred_fallthru
      _
    %104 = sfence
    %s105 = sadd.s32 0, 0
    %s106 = smul.u32 4, %s105
    %s107 = sadd.s32 0, 0
    %s108 = smul.u32 4, %s107
    %s109 = sadd.s32 0, 0
    %s110 = smul.u32 4, %s109
    %s111 = sadd.s32 0, 0
    %s112 = smul.u32 4, %s111
    %p113 = scmp.eq.s32.totalorder 0, 0
    // Predicated region
    $region42: #{tpu_custom_call.1} parent=1 // pred_check
      %p114 = pneg %p113
    $region43: #{tpu_custom_call.1} parent=1 // pred_check_branch
      %116 = sbr.rel (%p114) target = $region45
    $region44: #{tpu_custom_call.1} parent=1 // pred_region
      %117 = vst [vmem:[#allocation15] sm:$0xff] 0.0
      %118 = vst [vmem:[#allocation15 + $0x8] sm:$0xff] 0.0
      %119 = vst [vmem:[#allocation15 + $0x10] sm:$0xff] 0.0
      %120 = vst [vmem:[#allocation15 + $0x18] sm:$0xff] 0.0
      %121 = vst [vmem:[#allocation15 + $0x20] sm:$0xff] 0.0
      %122 = vst [vmem:[#allocation15 + $0x28] sm:$0xff] 0.0
      %123 = vst [vmem:[#allocation15 + $0x30] sm:$0xff] 0.0
      %124 = vst [vmem:[#allocation15 + $0x38] sm:$0xff] 0.0
      %125 = vst [vmem:[#allocation15 + $0x40] sm:$0xff] 0.0
      %126 = vst [vmem:[#allocation15 + $0x48] sm:$0xff] 0.0
      %127 = vst [vmem:[#allocation15 + $0x50] sm:$0xff] 0.0
      %128 = vst [vmem:[#allocation15 + $0x58] sm:$0xff] 0.0
      %129 = vst [vmem:[#allocation15 + $0x60] sm:$0xff] 0.0
      %130 = vst [vmem:[#allocation15 + $0x68] sm:$0xff] 0.0
      %131 = vst [vmem:[#allocation15 + $0x70] sm:$0xff] 0.0
      %132 = vst [vmem:[#allocation15 + $0x78] sm:$0xff] 0.0
      %133 = vst [vmem:[#allocation16] sm:$0xff] 0.0
      %134 = vst [vmem:[#allocation16 + $0x8] sm:$0xff] 0.0
      %135 = vst [vmem:[#allocation16 + $0x10] sm:$0xff] 0.0
      %136 = vst [vmem:[#allocation16 + $0x18] sm:$0xff] 0.0
      %137 = vst [vmem:[#allocation16 + $0x20] sm:$0xff] 0.0
      %138 = vst [vmem:[#allocation16 + $0x28] sm:$0xff] 0.0
      %139 = vst [vmem:[#allocation16 + $0x30] sm:$0xff] 0.0
      %140 = vst [vmem:[#allocation16 + $0x38] sm:$0xff] 0.0
      %141 = vst [vmem:[#allocation16 + $0x40] sm:$0xff] 0.0
      %142 = vst [vmem:[#allocation16 + $0x48] sm:$0xff] 0.0
      %143 = vst [vmem:[#allocation16 + $0x50] sm:$0xff] 0.0
      %144 = vst [vmem:[#allocation16 + $0x58] sm:$0xff] 0.0
      %145 = vst [vmem:[#allocation16 + $0x60] sm:$0xff] 0.0
      %146 = vst [vmem:[#allocation16 + $0x68] sm:$0xff] 0.0
      %147 = vst [vmem:[#allocation16 + $0x70] sm:$0xff] 0.0
      %148 = vst [vmem:[#allocation16 + $0x78] sm:$0xff] 0.0
      %vm149 = vcmask 0
      %150 = vst.msk [vmem:[#allocation18] sm:$0x1] %vm149, 0.0
      %151 = vst.msk [vmem:[#allocation19] sm:$0x1] %vm149, 0.0
      %152 = vst.msk [vmem:[#allocation21] sm:$0x1] %vm149, 0.0
    $region45: #{tpu_custom_call.1} parent=1 // pred_fallthru
      _
    %v153 = vld [vmem:[#allocation9] sm:$0xff]
    %v154 = vld [vmem:[#allocation9 + $0x8] sm:$0xff]
    %v155 = vld [vmem:[#allocation9 + $0x10] sm:$0xff]
    %v156 = vld [vmem:[#allocation9 + $0x18] sm:$0xff]
    %v157 = vld [vmem:[#allocation9 + $0x20] sm:$0xff]
    %v158 = vld [vmem:[#allocation9 + $0x28] sm:$0xff]
    %v159 = vld [vmem:[#allocation9 + $0x30] sm:$0xff]
    %v160 = vld [vmem:[#allocation9 + $0x38] sm:$0xff]
    %v161 = vld [vmem:[#allocation9 + $0x40] sm:$0xff]
    %v162 = vld [vmem:[#allocation9 + $0x48] sm:$0xff]
    %v163 = vld [vmem:[#allocation9 + $0x50] sm:$0xff]
    %v164 = vld [vmem:[#allocation9 + $0x58] sm:$0xff]
    %v165 = vld [vmem:[#allocation9 + $0x60] sm:$0xff]
    %v166 = vld [vmem:[#allocation9 + $0x68] sm:$0xff]
    %v167 = vld [vmem:[#allocation9 + $0x70] sm:$0xff]
    %v168 = vld [vmem:[#allocation9 + $0x78] sm:$0xff]
    %v169 = vld [vmem:[#allocation10] sm:$0xff]
    %v170 = vld [vmem:[#allocation10 + $0x8] sm:$0xff]
    %v171 = vld [vmem:[#allocation10 + $0x10] sm:$0xff]
    %v172 = vld [vmem:[#allocation10 + $0x18] sm:$0xff]
    %v173 = vld [vmem:[#allocation10 + $0x20] sm:$0xff]
    %v174 = vld [vmem:[#allocation10 + $0x28] sm:$0xff]
    %v175 = vld [vmem:[#allocation10 + $0x30] sm:$0xff]
    %v176 = vld [vmem:[#allocation10 + $0x38] sm:$0xff]
    %v177 = vld [vmem:[#allocation10 + $0x40] sm:$0xff]
    %v178 = vld [vmem:[#allocation10 + $0x48] sm:$0xff]
    %v179 = vld [vmem:[#allocation10 + $0x50] sm:$0xff]
    %v180 = vld [vmem:[#allocation10 + $0x58] sm:$0xff]
    %v181 = vld [vmem:[#allocation10 + $0x60] sm:$0xff]
    %v182 = vld [vmem:[#allocation10 + $0x68] sm:$0xff]
    %v183 = vld [vmem:[#allocation10 + $0x70] sm:$0xff]
    %v184 = vld [vmem:[#allocation10 + $0x78] sm:$0xff]
    %v185 = vld [vmem:[#allocation6] sm:$0xff]
    %v186 = vld [vmem:[#allocation6 + $0x8] sm:$0xff]
    %v187 = vld [vmem:[#allocation6 + $0x10] sm:$0xff]
    %v188 = vld [vmem:[#allocation6 + $0x18] sm:$0xff]
    %v189 = vmul.f32 %v185, %v185
    %v190 = vmul.f32 %v186, %v186
    %v191 = vmul.f32 %v187, %v187
    %v192 = vmul.f32 %v188, %v188
    %193 = vadd.xlane.f32.xlu0 %v189
    %v194 = vpop.xlane.xlu0 %193
    %195 = vadd.xlane.f32.xlu0 %v190
    %v196 = vpop.xlane.xlu0 %195
    %197 = vadd.xlane.f32.xlu0 %v191
    %v198 = vpop.xlane.xlu0 %197
    %199 = vadd.xlane.f32.xlu0 %v192
    %v200 = vpop.xlane.xlu0 %199
    %v201 = vrsqrt.pop %v194
    %v202 = vmul.f32 %v194, %v201
    %vm203 = vcmp.eq.f32.partialorder %v194, inf
    %v204 = vsel %vm203, %v194, %v202
    %vm205 = vcmp.eq.f32.partialorder %v194, 0.0
    %v206 = vand.u32 %v194, 2147483648
    %v207 = vsel %vm205, %v206, %v204
    %v208 = vrsqrt.pop %v196
    %v209 = vmul.f32 %v196, %v208
    %vm210 = vcmp.eq.f32.partialorder %v196, inf
    %v211 = vsel %vm210, %v196, %v209
    %vm212 = vcmp.eq.f32.partialorder %v196, 0.0
    %v213 = vand.u32 %v196, 2147483648
    %v214 = vsel %vm212, %v213, %v211
    %v215 = vrsqrt.pop %v198
    %v216 = vmul.f32 %v198, %v215
    %vm217 = vcmp.eq.f32.partialorder %v198, inf
    %v218 = vsel %vm217, %v198, %v216
    %vm219 = vcmp.eq.f32.partialorder %v198, 0.0
    %v220 = vand.u32 %v198, 2147483648
    %v221 = vsel %vm219, %v220, %v218
    %v222 = vrsqrt.pop %v200
    %v223 = vmul.f32 %v200, %v222
    %vm224 = vcmp.eq.f32.partialorder %v200, inf
    %v225 = vsel %vm224, %v200, %v223
    %vm226 = vcmp.eq.f32.partialorder %v200, 0.0
    %v227 = vand.u32 %v200, 2147483648
    %v228 = vsel %vm226, %v227, %v225
    %v229 = vmax.f32 %v207, 1e-12
    %v230 = vmax.f32 %v214, 1e-12
    %v231 = vmax.f32 %v221, 1e-12
    %v232 = vmax.f32 %v228, 1e-12
    %v233 = vrcp.pop %v229
    %v234 = vmul.f32 %v185, %v233
    %v235 = vrcp.pop %v230
    %v236 = vmul.f32 %v186, %v235
    %v237 = vrcp.pop %v231
    %v238 = vmul.f32 %v187, %v237
    %v239 = vrcp.pop %v232
    %v240 = vmul.f32 %v188, %v239
    %v241 = vld [vmem:[#allocation7] sm:$0xff]
    %v242 = vld [vmem:[#allocation7 + $0x8] sm:$0xff]
    %v243 = vld [vmem:[#allocation7 + $0x10] sm:$0xff]
    %v244 = vld [vmem:[#allocation7 + $0x18] sm:$0xff]
    %v245 = vmul.f32 %v241, %v241
    %v246 = vmul.f32 %v242, %v242
    %v247 = vmul.f32 %v243, %v243
    %v248 = vmul.f32 %v244, %v244
    %249 = vadd.xlane.f32.xlu0 %v245
    %v250 = vpop.xlane.xlu0 %249
    %251 = vadd.xlane.f32.xlu0 %v246
    %v252 = vpop.xlane.xlu0 %251
    %253 = vadd.xlane.f32.xlu0 %v247
    %v254 = vpop.xlane.xlu0 %253
    %255 = vadd.xlane.f32.xlu0 %v248
    %v256 = vpop.xlane.xlu0 %255
    %v257 = vrsqrt.pop %v250
    %v258 = vmul.f32 %v250, %v257
    %vm259 = vcmp.eq.f32.partialorder %v250, inf
    %v260 = vsel %vm259, %v250, %v258
    %vm261 = vcmp.eq.f32.partialorder %v250, 0.0
    %v262 = vand.u32 %v250, 2147483648
    %v263 = vsel %vm261, %v262, %v260
    %v264 = vrsqrt.pop %v252
    %v265 = vmul.f32 %v252, %v264
    %vm266 = vcmp.eq.f32.partialorder %v252, inf
    %v267 = vsel %vm266, %v252, %v265
    %vm268 = vcmp.eq.f32.partialorder %v252, 0.0
    %v269 = vand.u32 %v252, 2147483648
    %v270 = vsel %vm268, %v269, %v267
    %v271 = vrsqrt.pop %v254
    %v272 = vmul.f32 %v254, %v271
    %vm273 = vcmp.eq.f32.partialorder %v254, inf
    %v274 = vsel %vm273, %v254, %v272
    %vm275 = vcmp.eq.f32.partialorder %v254, 0.0
    %v276 = vand.u32 %v254, 2147483648
    %v277 = vsel %vm275, %v276, %v274
    %v278 = vrsqrt.pop %v256
    %v279 = vmul.f32 %v256, %v278
    %vm280 = vcmp.eq.f32.partialorder %v256, inf
    %v281 = vsel %vm280, %v256, %v279
    %vm282 = vcmp.eq.f32.partialorder %v256, 0.0
    %v283 = vand.u32 %v256, 2147483648
    %v284 = vsel %vm282, %v283, %v281
    %v285 = vmax.f32 %v263, 1e-12
    %v286 = vmax.f32 %v270, 1e-12
    %v287 = vmax.f32 %v277, 1e-12
    %v288 = vmax.f32 %v284, 1e-12
    %v289 = vrcp.pop %v285
    %v290 = vmul.f32 %v241, %v289
    %v291 = vrcp.pop %v286
    %v292 = vmul.f32 %v242, %v291
    %v293 = vrcp.pop %v287
    %v294 = vmul.f32 %v243, %v293
    %v295 = vrcp.pop %v288
    %v296 = vmul.f32 %v244, %v295
    %297 = vst [vmem:[#allocation12] sm:$0xff] %v234
    %298 = vst [vmem:[#allocation12 + $0x8] sm:$0xff] %v236
    %299 = vst [vmem:[#allocation12 + $0x10] sm:$0xff] %v238
    %300 = vst [vmem:[#allocation12 + $0x18] sm:$0xff] %v240
    %301 = vmatprep.subr.mxu0 0.0
    %302 = vmatpush1.xpose.msra.mxu0 %v153
    %303 = vmatprep.subr.mxu0 0.0
    %304 = vmatpush1.xpose.msra.mxu0 %v154
    %305 = vmatprep.subr.mxu0 0.0
    %306 = vmatpush1.xpose.msra.mxu0 %v155
    %307 = vmatprep.subr.mxu0 0.0
    %308 = vmatpush1.xpose.msra.mxu0 %v156
    %309 = vmatprep.subr.mxu0 0.0
    %310 = vmatpush1.xpose.msra.mxu0 %v157
    %311 = vmatprep.subr.mxu0 0.0
    %312 = vmatpush1.xpose.msra.mxu0 %v158
    %313 = vmatprep.subr.mxu0 0.0
    %314 = vmatpush1.xpose.msra.mxu0 %v159
    %315 = vmatprep.subr.mxu0 0.0
    %316 = vmatpush1.xpose.msra.mxu0 %v160
    %317 = vmatprep.subr.mxu0 0.0
    %318 = vmatpush1.xpose.msra.mxu0 %v161
    %319 = vmatprep.subr.mxu0 0.0
    %320 = vmatpush1.xpose.msra.mxu0 %v162
    %321 = vmatprep.subr.mxu0 0.0
    %322 = vmatpush1.xpose.msra.mxu0 %v163
    %323 = vmatprep.subr.mxu0 0.0
    %324 = vmatpush1.xpose.msra.mxu0 %v164
    %325 = vmatprep.subr.mxu0 0.0
    %326 = vmatpush1.xpose.msra.mxu0 %v165
    %327 = vmatprep.subr.mxu0 0.0
    %328 = vmatpush1.xpose.msra.mxu0 %v166
    %329 = vmatprep.subr.mxu0 0.0
    %330 = vmatpush1.xpose.msra.mxu0 %v167
    %331 = vmatprep.subr.mxu0 0.0
    %332 = vmatpush1.xpose.msra.mxu0 %v168
    %333 = vmatprep.subr.mxu0 0.0
    %334 = vmatpush1.xpose.msra.mxu0 0.0
    %335 = vmatprep.subr.mxu0 0.0
    %336 = vmatpush1.xpose.msra.mxu0 0.0
    %337 = vmatprep.subr.mxu0 0.0
    %338 = vmatpush1.xpose.msra.mxu0 0.0
    %339 = vmatprep.subr.mxu0 0.0
    %340 = vmatpush1.xpose.msra.mxu0 0.0
    %341 = vmatprep.subr.mxu0 0.0
    %342 = vmatpush1.xpose.msra.mxu0 0.0
    %343 = vmatprep.subr.mxu0 0.0
    %344 = vmatpush1.xpose.msra.mxu0 0.0
    %345 = vmatprep.subr.mxu0 0.0
    %346 = vmatpush1.xpose.msra.mxu0 0.0
    %347 = vmatprep.subr.mxu0 0.0
    %348 = vmatpush1.xpose.msra.mxu0 0.0
    %349 = vmatprep.subr.mxu0 0.0
    %350 = vmatpush1.xpose.msra.mxu0 0.0
    %351 = vmatprep.subr.mxu0 0.0
    %352 = vmatpush1.xpose.msra.mxu0 0.0
    %353 = vmatprep.subr.mxu0 0.0
    %354 = vmatpush1.xpose.msra.mxu0 0.0
    %355 = vmatprep.subr.mxu0 0.0
    %356 = vmatpush1.xpose.msra.mxu0 0.0
    %357 = vmatprep.subr.mxu0 0.0
    %358 = vmatpush1.xpose.msra.mxu0 0.0
    %359 = vmatprep.subr.mxu0 0.0
    %360 = vmatpush1.xpose.msra.mxu0 0.0
    %361 = vmatprep.subr.mxu0 0.0
    %362 = vmatpush1.xpose.msra.mxu0 0.0
    %363 = vmatprep.subr.mxu0 0.0
    %364 = vmatpush1.xpose.msra.mxu0 0.0
    %365 = vmatprep.mubr.f32.mxu0 0.0
    %366 = vmatmul.mubr.f32.gmra.mrb[0].mxu0 %v234
    %v367 = vpop.f32.mrb[0].mxu0
    %v368 = vadd.f32 0.0, %v367
    %v369 = vpop.f32.mrb[0].mxu0
    %370 = vmatprep.mubr.f32.mxu0 0.0
    %371 = vmatmul.mubr.f32.gmra.mrb[0].mxu0 %v236
    %v372 = vpop.f32.mrb[0].mxu0
    %v373 = vadd.f32 0.0, %v372
    %v374 = vpop.f32.mrb[0].mxu0
    %375 = vmatprep.mubr.f32.mxu0 0.0
    %376 = vmatmul.mubr.f32.gmra.mrb[0].mxu0 %v238
    %v377 = vpop.f32.mrb[0].mxu0
    %v378 = vadd.f32 0.0, %v377
    %v379 = vpop.f32.mrb[0].mxu0
    %380 = vmatprep.mubr.f32.mxu0 0.0
    %381 = vmatmul.mubr.f32.gmra.mrb[0].mxu0 %v240
    %v382 = vpop.f32.mrb[0].mxu0
    %v383 = vadd.f32 0.0, %v382
    %v384 = vpop.f32.mrb[0].mxu0
    %385 = vdwg.mxu0
    %386 = vmatprep.subr.mxu0 0.0
    %387 = vmatpush1.xpose.msra.mxu0 %v169
    %388 = vmatprep.subr.mxu0 0.0
    %389 = vmatpush1.xpose.msra.mxu0 %v170
    %390 = vmatprep.subr.mxu0 0.0
    %391 = vmatpush1.xpose.msra.mxu0 %v171
    %392 = vmatprep.subr.mxu0 0.0
    %393 = vmatpush1.xpose.msra.mxu0 %v172
    %394 = vmatprep.subr.mxu0 0.0
    %395 = vmatpush1.xpose.msra.mxu0 %v173
    %396 = vmatprep.subr.mxu0 0.0
    %397 = vmatpush1.xpose.msra.mxu0 %v174
    %398 = vmatprep.subr.mxu0 0.0
    %399 = vmatpush1.xpose.msra.mxu0 %v175
    %400 = vmatprep.subr.mxu0 0.0
    %401 = vmatpush1.xpose.msra.mxu0 %v176
    %402 = vmatprep.subr.mxu0 0.0
    %403 = vmatpush1.xpose.msra.mxu0 %v177
    %404 = vmatprep.subr.mxu0 0.0
    %405 = vmatpush1.xpose.msra.mxu0 %v178
    %406 = vmatprep.subr.mxu0 0.0
    %407 = vmatpush1.xpose.msra.mxu0 %v179
    %408 = vmatprep.subr.mxu0 0.0
    %409 = vmatpush1.xpose.msra.mxu0 %v180
    %410 = vmatprep.subr.mxu0 0.0
    %411 = vmatpush1.xpose.msra.mxu0 %v181
    %412 = vmatprep.subr.mxu0 0.0
    %413 = vmatpush1.xpose.msra.mxu0 %v182
    %414 = vmatprep.subr.mxu0 0.0
    %415 = vmatpush1.xpose.msra.mxu0 %v183
    %416 = vmatprep.subr.mxu0 0.0
    %417 = vmatpush1.xpose.msra.mxu0 %v184
    %418 = vmatprep.subr.mxu0 0.0
    %419 = vmatpush1.xpose.msra.mxu0 0.0
    %420 = vmatprep.subr.mxu0 0.0
    %421 = vmatpush1.xpose.msra.mxu0 0.0
    %422 = vmatprep.subr.mxu0 0.0
    %423 = vmatpush1.xpose.msra.mxu0 0.0
    %424 = vmatprep.subr.mxu0 0.0
    %425 = vmatpush1.xpose.msra.mxu0 0.0
    %426 = vmatprep.subr.mxu0 0.0
    %427 = vmatpush1.xpose.msra.mxu0 0.0
    %428 = vmatprep.subr.mxu0 0.0
    %429 = vmatpush1.xpose.msra.mxu0 0.0
    %430 = vmatprep.subr.mxu0 0.0
    %431 = vmatpush1.xpose.msra.mxu0 0.0
    %432 = vmatprep.subr.mxu0 0.0
    %433 = vmatpush1.xpose.msra.mxu0 0.0
    %434 = vmatprep.subr.mxu0 0.0
    %435 = vmatpush1.xpose.msra.mxu0 0.0
    %436 = vmatprep.subr.mxu0 0.0
    %437 = vmatpush1.xpose.msra.mxu0 0.0
    %438 = vmatprep.subr.mxu0 0.0
    %439 = vmatpush1.xpose.msra.mxu0 0.0
    %440 = vmatprep.subr.mxu0 0.0
    %441 = vmatpush1.xpose.msra.mxu0 0.0
    %442 = vmatprep.subr.mxu0 0.0
    %443 = vmatpush1.xpose.msra.mxu0 0.0
    %444 = vmatprep.subr.mxu0 0.0
    %445 = vmatpush1.xpose.msra.mxu0 0.0
    %446 = vmatprep.subr.mxu0 0.0
    %447 = vmatpush1.xpose.msra.mxu0 0.0
    %448 = vmatprep.subr.mxu0 0.0
    %449 = vmatpush1.xpose.msra.mxu0 0.0
    %450 = vmatprep.mubr.f32.mxu0 0.0
    %451 = vmatmul.mubr.f32.gmra.mrb[0].mxu0 %v290
    %v452 = vpop.f32.mrb[0].mxu0
    %v453 = vadd.f32 0.0, %v452
    %v454 = vpop.f32.mrb[0].mxu0
    %455 = vmatprep.mubr.f32.mxu0 0.0
    %456 = vmatmul.mubr.f32.gmra.mrb[0].mxu0 %v292
    %v457 = vpop.f32.mrb[0].mxu0
    %v458 = vadd.f32 0.0, %v457
    %v459 = vpop.f32.mrb[0].mxu0
    %460 = vmatprep.mubr.f32.mxu0 0.0
    %461 = vmatmul.mubr.f32.gmra.mrb[0].mxu0 %v294
    %v462 = vpop.f32.mrb[0].mxu0
    %v463 = vadd.f32 0.0, %v462
    %v464 = vpop.f32.mrb[0].mxu0
    %465 = vmatprep.mubr.f32.mxu0 0.0
    %466 = vmatmul.mubr.f32.gmra.mrb[0].mxu0 %v296
    %v467 = vpop.f32.mrb[0].mxu0
    %v468 = vadd.f32 0.0, %v467
    %v469 = vpop.f32.mrb[0].mxu0
    %470 = vdwg.mxu0
    %v471 = vlaneseq
    %v472 = vand.u32 %v471, 127
    %vm473 = vcmp.lt.s32.totalorder %v472, 64
    %s474 = sld [smem:[#allocation2]]
    %s475 = sld [smem:[#allocation2 + $0x1]]
    %v476 = vstv %s474
    %vm477 = vcmp.gt.f32.partialorder %v368, %v476
    %vm478 = vcmp.gt.f32.partialorder %v373, %v476
    %vm479 = vcmp.gt.f32.partialorder %v378, %v476
    %vm480 = vcmp.gt.f32.partialorder %v383, %v476
    %v481 = vstv %s475
    %vm482 = vcmp.lt.f32.partialorder %v368, %v481
    %vm483 = vcmp.lt.f32.partialorder %v373, %v481
    %vm484 = vcmp.lt.f32.partialorder %v378, %v481
    %vm485 = vcmp.lt.f32.partialorder %v383, %v481
    %vm486 = vmand %vm477, %vm473
    %vm487 = vmand %vm478, %vm473
    %vm488 = vmand %vm479, %vm473
    %vm489 = vmand %vm480, %vm473
    %vm490 = vmand %vm482, %vm473
    %vm491 = vmand %vm483, %vm473
    %vm492 = vmand %vm484, %vm473
    %vm493 = vmand %vm485, %vm473
    %v494 = vsel %vm486, %v368, 0.0
    %v495 = vsel %vm487, %v373, 0.0
    %v496 = vsel %vm488, %v378, 0.0
    %v497 = vsel %vm489, %v383, 0.0
    %v498 = vsel %vm486, %v368, 1e+30
    %v499 = vsel %vm487, %v373, 1e+30
    %v500 = vsel %vm488, %v378, 1e+30
    %v501 = vsel %vm489, %v383, 1e+30
    %502 = vmin.xlane.f32.xlu0 %v498
    %v503 = vpop.xlane.xlu0 %502
    %504 = vmin.xlane.f32.xlu0 %v499
    %v505 = vpop.xlane.xlu0 %504
    %506 = vmin.xlane.f32.xlu0 %v500
    %v507 = vpop.xlane.xlu0 %506
    %508 = vmin.xlane.f32.xlu0 %v501
    %v509 = vpop.xlane.xlu0 %508
    %vm510 = vcmp.eq.f32.partialorder %v498, %v503
    %vm511 = vcmp.eq.f32.partialorder %v499, %v505
    %vm512 = vcmp.eq.f32.partialorder %v500, %v507
    %vm513 = vcmp.eq.f32.partialorder %v501, %v509
    %v514 = vsel %vm510, %v472, 128
    %v515 = vsel %vm511, %v472, 128
    %v516 = vsel %vm512, %v472, 128
    %v517 = vsel %vm513, %v472, 128
    %v518 = vand.u32 %v514, 65535
    %v519 = vshra.s32 %v514, 16
    %v520 = vcvt.s32.f32 %v518
    %v521 = vcvt.s32.f32 %v519
    %522 = vmin.xlane.f32.xlu0 %v521
    %v523 = vpop.xlane.xlu0 %522
    %vm524 = vcmp.eq.f32.partialorder %v521, %v523
    %v525 = vsel %vm524, %v520, inf
    %526 = vmin.xlane.f32.xlu0 %v525
    %v527 = vpop.xlane.xlu0 %526
    %v528 = vcvt.f32.s32 %v527
    %v529 = vcvt.f32.s32 %v523
    %v530 = vshll.u32 %v529, 16
    %v531 = vadd.s32 %v530, %v528
    %v532 = vand.u32 %v515, 65535
    %v533 = vshra.s32 %v515, 16
    %v534 = vcvt.s32.f32 %v532
    %v535 = vcvt.s32.f32 %v533
    %536 = vmin.xlane.f32.xlu0 %v535
    %v537 = vpop.xlane.xlu0 %536
    %vm538 = vcmp.eq.f32.partialorder %v535, %v537
    %v539 = vsel %vm538, %v534, inf
    %540 = vmin.xlane.f32.xlu0 %v539
    %v541 = vpop.xlane.xlu0 %540
    %v542 = vcvt.f32.s32 %v541
    %v543 = vcvt.f32.s32 %v537
    %v544 = vshll.u32 %v543, 16
    %v545 = vadd.s32 %v544, %v542
    %v546 = vand.u32 %v516, 65535
    %v547 = vshra.s32 %v516, 16
    %v548 = vcvt.s32.f32 %v546
    %v549 = vcvt.s32.f32 %v547
    %550 = vmin.xlane.f32.xlu0 %v549
    %v551 = vpop.xlane.xlu0 %550
    %vm552 = vcmp.eq.f32.partialorder %v549, %v551
    %v553 = vsel %vm552, %v548, inf
    %554 = vmin.xlane.f32.xlu0 %v553
    %v555 = vpop.xlane.xlu0 %554
    %v556 = vcvt.f32.s32 %v555
    %v557 = vcvt.f32.s32 %v551
    %v558 = vshll.u32 %v557, 16
    %v559 = vadd.s32 %v558, %v556
    %v560 = vand.u32 %v517, 65535
    %v561 = vshra.s32 %v517, 16
    %v562 = vcvt.s32.f32 %v560
    %v563 = vcvt.s32.f32 %v561
    %564 = vmin.xlane.f32.xlu0 %v563
    %v565 = vpop.xlane.xlu0 %564
    %vm566 = vcmp.eq.f32.partialorder %v563, %v565
    %v567 = vsel %vm566, %v562, inf
    %568 = vmin.xlane.f32.xlu0 %v567
    %v569 = vpop.xlane.xlu0 %568
    %v570 = vcvt.f32.s32 %v569
    %v571 = vcvt.f32.s32 %v565
    %v572 = vshll.u32 %v571, 16
    %v573 = vadd.s32 %v572, %v570
    %vm574 = vcmp.eq.s32.totalorder %v472, %v531
    %vm575 = vcmp.eq.s32.totalorder %v472, %v545
    %vm576 = vcmp.eq.s32.totalorder %v472, %v559
    %vm577 = vcmp.eq.s32.totalorder %v472, %v573
    %v578 = vsel %vm574, 1, 0
    %v579 = vsel %vm575, 1, 0
    %v580 = vsel %vm576, 1, 0
    %v581 = vsel %vm577, 1, 0
    %v582 = vcvt.s32.f32 %v578
    %v583 = vcvt.s32.f32 %v579
    %v584 = vcvt.s32.f32 %v580
    %v585 = vcvt.s32.f32 %v581
    %v586 = vsel %vm490, %v368, -1e+30
    %v587 = vsel %vm491, %v373, -1e+30
    %v588 = vsel %vm492, %v378, -1e+30
    %v589 = vsel %vm493, %v383, -1e+30
    %590 = vmax.xlane.f32.xlu0 %v586
    %v591 = vpop.xlane.xlu0 %590
    %592 = vmax.xlane.f32.xlu0 %v587
    %v593 = vpop.xlane.xlu0 %592
    %594 = vmax.xlane.f32.xlu0 %v588
    %v595 = vpop.xlane.xlu0 %594
    %596 = vmax.xlane.f32.xlu0 %v589
    %v597 = vpop.xlane.xlu0 %596
    %vm598 = vcmp.eq.f32.partialorder %v586, %v591
    %vm599 = vcmp.eq.f32.partialorder %v587, %v593
    %vm600 = vcmp.eq.f32.partialorder %v588, %v595
    %vm601 = vcmp.eq.f32.partialorder %v589, %v597
    %v602 = vsel %vm598, %v472, 128
    %v603 = vsel %vm599, %v472, 128
    %v604 = vsel %vm600, %v472, 128
    %v605 = vsel %vm601, %v472, 128
    %v606 = vand.u32 %v602, 65535
    %v607 = vshra.s32 %v602, 16
    %v608 = vcvt.s32.f32 %v606
    %v609 = vcvt.s32.f32 %v607
    %610 = vmin.xlane.f32.xlu0 %v609
    %v611 = vpop.xlane.xlu0 %610
    %vm612 = vcmp.eq.f32.partialorder %v609, %v611
    %v613 = vsel %vm612, %v608, inf
    %614 = vmin.xlane.f32.xlu0 %v613
    %v615 = vpop.xlane.xlu0 %614
    %v616 = vcvt.f32.s32 %v615
    %v617 = vcvt.f32.s32 %v611
    %v618 = vshll.u32 %v617, 16
    %v619 = vadd.s32 %v618, %v616
    %v620 = vand.u32 %v603, 65535
    %v621 = vshra.s32 %v603, 16
    %v622 = vcvt.s32.f32 %v620
    %v623 = vcvt.s32.f32 %v621
    %624 = vmin.xlane.f32.xlu0 %v623
    %v625 = vpop.xlane.xlu0 %624
    %vm626 = vcmp.eq.f32.partialorder %v623, %v625
    %v627 = vsel %vm626, %v622, inf
    %628 = vmin.xlane.f32.xlu0 %v627
    %v629 = vpop.xlane.xlu0 %628
    %v630 = vcvt.f32.s32 %v629
    %v631 = vcvt.f32.s32 %v625
    %v632 = vshll.u32 %v631, 16
    %v633 = vadd.s32 %v632, %v630
    %v634 = vand.u32 %v604, 65535
    %v635 = vshra.s32 %v604, 16
    %v636 = vcvt.s32.f32 %v634
    %v637 = vcvt.s32.f32 %v635
    %638 = vmin.xlane.f32.xlu0 %v637
    %v639 = vpop.xlane.xlu0 %638
    %vm640 = vcmp.eq.f32.partialorder %v637, %v639
    %v641 = vsel %vm640, %v636, inf
    %642 = vmin.xlane.f32.xlu0 %v641
    %v643 = vpop.xlane.xlu0 %642
    %v644 = vcvt.f32.s32 %v643
    %v645 = vcvt.f32.s32 %v639
    %v646 = vshll.u32 %v645, 16
    %v647 = vadd.s32 %v646, %v644
    %v648 = vand.u32 %v605, 65535
    %v649 = vshra.s32 %v605, 16
    %v650 = vcvt.s32.f32 %v648
    %v651 = vcvt.s32.f32 %v649
    %652 = vmin.xlane.f32.xlu0 %v651
    %v653 = vpop.xlane.xlu0 %652
    %vm654 = vcmp.eq.f32.partialorder %v651, %v653
    %v655 = vsel %vm654, %v650, inf
    %656 = vmin.xlane.f32.xlu0 %v655
    %v657 = vpop.xlane.xlu0 %656
    %v658 = vcvt.f32.s32 %v657
    %v659 = vcvt.f32.s32 %v653
    %v660 = vshll.u32 %v659, 16
    %v661 = vadd.s32 %v660, %v658
    %vm662 = vcmp.eq.s32.totalorder %v472, %v619
    %vm663 = vcmp.eq.s32.totalorder %v472, %v633
    %vm664 = vcmp.eq.s32.totalorder %v472, %v647
    %vm665 = vcmp.eq.s32.totalorder %v472, %v661
    %v666 = vsel %vm662, 1, 0
    %v667 = vsel %vm663, 1, 0
    %v668 = vsel %vm664, 1, 0
    %v669 = vsel %vm665, 1, 0
    %v670 = vcvt.s32.f32 %v666
    %v671 = vcvt.s32.f32 %v667
    %v672 = vcvt.s32.f32 %v668
    %v673 = vcvt.s32.f32 %v669
    %v674 = vsel %vm486, 1, 0
    %v675 = vsel %vm487, 1, 0
    %v676 = vsel %vm488, 1, 0
    %v677 = vsel %vm489, 1, 0
    %v678 = vcvt.s32.f32 %v674
    %v679 = vcvt.s32.f32 %v675
    %v680 = vcvt.s32.f32 %v676
    %v681 = vcvt.s32.f32 %v677
    %682 = vmax.xlane.f32.xlu0 %v678
    %v683 = vpop.xlane.xlu0 %682
    %684 = vmax.xlane.f32.xlu0 %v679
    %v685 = vpop.xlane.xlu0 %684
    %686 = vmax.xlane.f32.xlu0 %v680
    %v687 = vpop.xlane.xlu0 %686
    %688 = vmax.xlane.f32.xlu0 %v681
    %v689 = vpop.xlane.xlu0 %688
    %v690 = vsel %vm490, 1, 0
    %v691 = vsel %vm491, 1, 0
    %v692 = vsel %vm492, 1, 0
    %v693 = vsel %vm493, 1, 0
    %v694 = vcvt.s32.f32 %v690
    %v695 = vcvt.s32.f32 %v691
    %v696 = vcvt.s32.f32 %v692
    %v697 = vcvt.s32.f32 %v693
    %698 = vmax.xlane.f32.xlu0 %v694
    %v699 = vpop.xlane.xlu0 %698
    %700 = vmax.xlane.f32.xlu0 %v695
    %v701 = vpop.xlane.xlu0 %700
    %702 = vmax.xlane.f32.xlu0 %v696
    %v703 = vpop.xlane.xlu0 %702
    %704 = vmax.xlane.f32.xlu0 %v697
    %v705 = vpop.xlane.xlu0 %704
    %v706 = vsub.f32 0.0, %v699
    %v707 = vsub.f32 0.0, %v701
    %v708 = vsub.f32 0.0, %v703
    %v709 = vsub.f32 0.0, %v705
    %v710 = vld [vmem:[#allocation19] sm:$0x1]
    %v711 = vmul.f32 %v683, %v582
    %v712 = vmul.f32 %v685, %v583
    %v713 = vmul.f32 %v687, %v584
    %v714 = vmul.f32 %v689, %v585
    %v715 = vmul.f32 %v706, %v670
    %v716 = vmul.f32 %v707, %v671
    %v717 = vmul.f32 %v708, %v672
    %v718 = vmul.f32 %v709, %v673
    %v719 = vadd.f32 %v711, %v715
    %v720 = vadd.f32 %v712, %v716
    %v721 = vadd.f32 %v713, %v717
    %v722 = vadd.f32 %v714, %v718
    %v723 = vmul.f32 %v719, %v453
    %v724 = vmul.f32 %v720, %v458
    %v725 = vmul.f32 %v721, %v463
    %v726 = vmul.f32 %v722, %v468
    %v727 = vadd.f32 %v723, %v724
    %v728 = vadd.f32 %v727, %v725
    %v729 = vadd.f32 %v728, %v726
    %730 = vadd.xlane.f32.xlu0 %v729
    %v731 = vpop.xlane.xlu0 %730
    %v732 = vrot.slane %v731, 4
    %v733 = vadd.f32 %v731, %v732
    %v734 = vrot.slane %v733, 2
    %v735 = vadd.f32 %v733, %v734
    %v736 = vrot.slane %v735, 1
    %v737 = vadd.f32 %v735, %v736
    %s738 = vtos %v737
    %v739 = vstv %s738
    %v740 = vadd.f32 %v710, %v739
    %vm741 = vcmask 0
    %742 = vst.msk [vmem:[#allocation19] sm:$0x1] %vm741, %v740
    %v743 = vand.u32 2147483647, %v494
    %v744 = vand.u32 2147483647, %v495
    %v745 = vand.u32 2147483647, %v496
    %v746 = vand.u32 2147483647, %v497
    %747 = vadd.xlane.f32.xlu0 %v743
    %v748 = vpop.xlane.xlu0 %747
    %749 = vadd.xlane.f32.xlu0 %v744
    %v750 = vpop.xlane.xlu0 %749
    %751 = vadd.xlane.f32.xlu0 %v745
    %v752 = vpop.xlane.xlu0 %751
    %753 = vadd.xlane.f32.xlu0 %v746
    %v754 = vpop.xlane.xlu0 %753
    %v755 = vmax.f32 %v748, 1e-12
    %v756 = vmax.f32 %v750, 1e-12
    %v757 = vmax.f32 %v752, 1e-12
    %v758 = vmax.f32 %v754, 1e-12
    %v759 = vrcp.pop %v755
    %v760 = vmul.f32 %v494, %v759
    %v761 = vrcp.pop %v756
    %v762 = vmul.f32 %v495, %v761
    %v763 = vrcp.pop %v757
    %v764 = vmul.f32 %v496, %v763
    %v765 = vrcp.pop %v758
    %v766 = vmul.f32 %v497, %v765
    %v767 = vmul.f32 %v760, 0.5
    %v768 = vmul.f32 %v762, 0.5
    %v769 = vmul.f32 %v764, 0.5
    %v770 = vmul.f32 %v766, 0.5
    %v771 = vsub.f32 1.0, %v767
    %v772 = vsub.f32 1.0, %v768
    %v773 = vsub.f32 1.0, %v769
    %v774 = vsub.f32 1.0, %v770
    %v775 = vmul.f32 %v767, %v771
    %v776 = vmul.f32 %v768, %v772
    %v777 = vmul.f32 %v769, %v773
    %v778 = vmul.f32 %v770, %v774
    %v779 = vmul.f32 %v775, 2.0
    %v780 = vmul.f32 %v776, 2.0
    %v781 = vmul.f32 %v777, 2.0
    %v782 = vmul.f32 %v778, 2.0
    %v783 = vsub.f32 %v453, 1.0
    %v784 = vsub.f32 %v458, 1.0
    %v785 = vsub.f32 %v463, 1.0
    %v786 = vsub.f32 %v468, 1.0
    %v787 = vmul.f32 %v779, %v783
    %v788 = vmul.f32 %v780, %v784
    %v789 = vmul.f32 %v781, %v785
    %v790 = vmul.f32 %v782, %v786
    %v791 = vadd.f32 %v787, 1.0
    %v792 = vadd.f32 %v788, 1.0
    %v793 = vadd.f32 %v789, 1.0
    %v794 = vadd.f32 %v790, 1.0
    %v795 = vmax.f32 %v791, 1e-24
    %v796 = vmax.f32 %v792, 1e-24
    %v797 = vmax.f32 %v793, 1e-24
    %v798 = vmax.f32 %v794, 1e-24
    %v799 = vrsqrt.pop %v795
    %v800 = vrsqrt.pop %v796
    %v801 = vrsqrt.pop %v797
    %v802 = vrsqrt.pop %v798
    %v803 = vld [vmem:[#allocation16] sm:$0xff]
    %v804 = vld [vmem:[#allocation16 + $0x8] sm:$0xff]
    %v805 = vld [vmem:[#allocation16 + $0x10] sm:$0xff]
    %v806 = vld [vmem:[#allocation16 + $0x18] sm:$0xff]
    %v807 = vld [vmem:[#allocation16 + $0x20] sm:$0xff]
    %v808 = vld [vmem:[#allocation16 + $0x28] sm:$0xff]
    %v809 = vld [vmem:[#allocation16 + $0x30] sm:$0xff]
    %v810 = vld [vmem:[#allocation16 + $0x38] sm:$0xff]
    %v811 = vld [vmem:[#allocation16 + $0x40] sm:$0xff]
    %v812 = vld [vmem:[#allocation16 + $0x48] sm:$0xff]
    %v813 = vld [vmem:[#allocation16 + $0x50] sm:$0xff]
    %v814 = vld [vmem:[#allocation16 + $0x58] sm:$0xff]
    %v815 = vld [vmem:[#allocation16 + $0x60] sm:$0xff]
    %v816 = vld [vmem:[#allocation16 + $0x68] sm:$0xff]
    %v817 = vld [vmem:[#allocation16 + $0x70] sm:$0xff]
    %v818 = vld [vmem:[#allocation16 + $0x78] sm:$0xff]
    %v819 = vmul.f32 %v771, %v799
    %v820 = vmul.f32 %v772, %v800
    %v821 = vmul.f32 %v773, %v801
    %v822 = vmul.f32 %v774, %v802
    %823 = vxpose.xlu0.b32.start [1/16] %v819, 128
    %824 = vxpose.xlu0.b32.cont [2/16] %v820, 128
    %825 = vxpose.xlu0.b32.cont [3/16] %v821, 128
    %826 = vxpose.xlu0.b32.cont [4/16] %v822, 128
    %827 = vxpose.xlu0.b32.cont [5/16] 0.0, 128
    %828 = vxpose.xlu0.b32.cont [6/16] 0.0, 128
    %829 = vxpose.xlu0.b32.cont [7/16] 0.0, 128
    %830 = vxpose.xlu0.b32.cont [8/16] 0.0, 128
    %831 = vxpose.xlu0.b32.cont [9/16] 0.0, 128
    %832 = vxpose.xlu0.b32.cont [10/16] 0.0, 128
    %833 = vxpose.xlu0.b32.cont [11/16] 0.0, 128
    %834 = vxpose.xlu0.b32.cont [12/16] 0.0, 128
    %835 = vxpose.xlu0.b32.cont [13/16] 0.0, 128
    %836 = vxpose.xlu0.b32.cont [14/16] 0.0, 128
    %837 = vxpose.xlu0.b32.cont [15/16] 0.0, 128
    %838 = vxpose.xlu0.b32.end [16/16] 0.0, 128
    %v839 = vpop.trf.xlu0
    %v840 = vpop.trf.xlu0
    %v841 = vpop.trf.xlu0
    %v842 = vpop.trf.xlu0
    %v843 = vpop.trf.xlu0
    %v844 = vpop.trf.xlu0
    %v845 = vpop.trf.xlu0
    %v846 = vpop.trf.xlu0
    %v847 = vpop.trf.xlu0
    %v848 = vpop.trf.xlu0
    %v849 = vpop.trf.xlu0
    %v850 = vpop.trf.xlu0
    %v851 = vpop.trf.xlu0
    %v852 = vpop.trf.xlu0
    %v853 = vpop.trf.xlu0
    %v854 = vpop.trf.xlu0
    %vm855 = vcmask 261120
    %v857 = vsel %vm855, %v839, 0
    %v860 = vsel %vm855, %v840, 0
    %v863 = vsel %vm855, %v841, 0
    %v866 = vsel %vm855, %v842, 0
    %v869 = vsel %vm855, %v843, 0
    %v872 = vsel %vm855, %v844, 0
    %v875 = vsel %vm855, %v845, 0
    %v878 = vsel %vm855, %v846, 0
    %v881 = vsel %vm855, %v847, 0
    %v884 = vsel %vm855, %v848, 0
    %v887 = vsel %vm855, %v849, 0
    %v890 = vsel %vm855, %v850, 0
    %v893 = vsel %vm855, %v851, 0
    %v896 = vsel %vm855, %v852, 0
    %v899 = vsel %vm855, %v853, 0
    %v902 = vsel %vm855, %v854, 0
    %904 = vmatprep.subr.mxu0 0.0
    %905 = vmatpush1.msra.mxu0 1.0
    %906 = vmatprep.subr.mxu0 0.0
    %907 = vmatpush1.msra.mxu0 1.0
    %908 = vmatprep.subr.mxu0 0.0
    %909 = vmatpush1.msra.mxu0 1.0
    %910 = vmatprep.subr.mxu0 0.0
    %911 = vmatpush1.msra.mxu0 1.0
    %912 = vmatprep.subr.mxu0 0.0
    %913 = vmatpush1.msra.mxu0 0.0
    %914 = vmatprep.subr.mxu0 0.0
    %915 = vmatpush1.msra.mxu0 0.0
    %916 = vmatprep.subr.mxu0 0.0
    %917 = vmatpush1.msra.mxu0 0.0
    %918 = vmatprep.subr.mxu0 0.0
    %919 = vmatpush1.msra.mxu0 0.0
    %920 = vmatprep.subr.mxu0 0.0
    %921 = vmatpush1.msra.mxu0 0.0
    %922 = vmatprep.subr.mxu0 0.0
    %923 = vmatpush1.msra.mxu0 0.0
    %924 = vmatprep.subr.mxu0 0.0
    %925 = vmatpush1.msra.mxu0 0.0
    %926 = vmatprep.subr.mxu0 0.0
    %927 = vmatpush1.msra.mxu0 0.0
    %928 = vmatprep.subr.mxu0 0.0
    %929 = vmatpush1.msra.mxu0 0.0
    %930 = vmatprep.subr.mxu0 0.0
    %931 = vmatpush1.msra.mxu0 0.0
    %932 = vmatprep.subr.mxu0 0.0
    %933 = vmatpush1.msra.mxu0 0.0
    %934 = vmatprep.subr.mxu0 0.0
    %935 = vmatpush1.msra.mxu0 0.0
    %936 = vmatprep.subr.mxu0 0.0
    %937 = vmatpush1.msra.mxu0 0.0
    %938 = vmatprep.subr.mxu0 0.0
    %939 = vmatpush1.msra.mxu0 0.0
    %940 = vmatprep.subr.mxu0 0.0
    %941 = vmatpush1.msra.mxu0 0.0
    %942 = vmatprep.subr.mxu0 0.0
    %943 = vmatpush1.msra.mxu0 0.0
    %944 = vmatprep.subr.mxu0 0.0
    %945 = vmatpush1.msra.mxu0 0.0
    %946 = vmatprep.subr.mxu0 0.0
    %947 = vmatpush1.msra.mxu0 0.0
    %948 = vmatprep.subr.mxu0 0.0
    %949 = vmatpush1.msra.mxu0 0.0
    %950 = vmatprep.subr.mxu0 0.0
    %951 = vmatpush1.msra.mxu0 0.0
    %952 = vmatprep.subr.mxu0 0.0
    %953 = vmatpush1.msra.mxu0 0.0
    %954 = vmatprep.subr.mxu0 0.0
    %955 = vmatpush1.msra.mxu0 0.0
    %956 = vmatprep.subr.mxu0 0.0
    %957 = vmatpush1.msra.mxu0 0.0
    %958 = vmatprep.subr.mxu0 0.0
    %959 = vmatpush1.msra.mxu0 0.0
    %960 = vmatprep.subr.mxu0 0.0
    %961 = vmatpush1.msra.mxu0 0.0
    %962 = vmatprep.subr.mxu0 0.0
    %963 = vmatpush1.msra.mxu0 0.0
    %964 = vmatprep.subr.mxu0 0.0
    %965 = vmatpush1.msra.mxu0 0.0
    %966 = vmatprep.subr.mxu0 0.0
    %967 = vmatpush1.msra.mxu0 0.0
    %968 = vmatprep.mubr.f32.mxu0 0.0
    %969 = vmatmul.mubr.f32.gmra.mrb[0].mxu0 %v857
    %v970 = vpop.f32.mrb[0].mxu0
    %v971 = vadd.f32 0.0, %v970
    %v972 = vpop.f32.mrb[0].mxu0
    %973 = vmatprep.mubr.f32.mxu0 0.0
    %974 = vmatmul.mubr.f32.gmra.mrb[0].mxu0 %v860
    %v975 = vpop.f32.mrb[0].mxu0
    %v976 = vadd.f32 0.0, %v975
    %v977 = vpop.f32.mrb[0].mxu0
    %978 = vmatprep.mubr.f32.mxu0 0.0
    %979 = vmatmul.mubr.f32.gmra.mrb[0].mxu0 %v863
    %v980 = vpop.f32.mrb[0].mxu0
    %v981 = vadd.f32 0.0, %v980
    %v982 = vpop.f32.mrb[0].mxu0
    %983 = vmatprep.mubr.f32.mxu0 0.0
    %984 = vmatmul.mubr.f32.gmra.mrb[0].mxu0 %v866
    %v985 = vpop.f32.mrb[0].mxu0
    %v986 = vadd.f32 0.0, %v985
    %v987 = vpop.f32.mrb[0].mxu0
    %988 = vmatprep.mubr.f32.mxu0 0.0
    %989 = vmatmul.mubr.f32.gmra.mrb[0].mxu0 %v869
    %v990 = vpop.f32.mrb[0].mxu0
    %v991 = vadd.f32 0.0, %v990
    %v992 = vpop.f32.mrb[0].mxu0
    %993 = vmatprep.mubr.f32.mxu0 0.0
    %994 = vmatmul.mubr.f32.gmra.mrb[0].mxu0 %v872
    %v995 = vpop.f32.mrb[0].mxu0
    %v996 = vadd.f32 0.0, %v995
    %v997 = vpop.f32.mrb[0].mxu0
    %998 = vmatprep.mubr.f32.mxu0 0.0
    %999 = vmatmul.mubr.f32.gmra.mrb[0].mxu0 %v875
    %v1000 = vpop.f32.mrb[0].mxu0
    %v1001 = vadd.f32 0.0, %v1000
    %v1002 = vpop.f32.mrb[0].mxu0
    %1003 = vmatprep.mubr.f32.mxu0 0.0
    %1004 = vmatmul.mubr.f32.gmra.mrb[0].mxu0 %v878
    %v1005 = vpop.f32.mrb[0].mxu0
    %v1006 = vadd.f32 0.0, %v1005
    %v1007 = vpop.f32.mrb[0].mxu0
    %1008 = vmatprep.mubr.f32.mxu0 0.0
    %1009 = vmatmul.mubr.f32.gmra.mrb[0].mxu0 %v881
    %v1010 = vpop.f32.mrb[0].mxu0
    %v1011 = vadd.f32 0.0, %v1010
    %v1012 = vpop.f32.mrb[0].mxu0
    %1013 = vmatprep.mubr.f32.mxu0 0.0
    %1014 = vmatmul.mubr.f32.gmra.mrb[0].mxu0 %v884
    %v1015 = vpop.f32.mrb[0].mxu0
    %v1016 = vadd.f32 0.0, %v1015
    %v1017 = vpop.f32.mrb[0].mxu0
    %1018 = vmatprep.mubr.f32.mxu0 0.0
    %1019 = vmatmul.mubr.f32.gmra.mrb[0].mxu0 %v887
    %v1020 = vpop.f32.mrb[0].mxu0
    %v1021 = vadd.f32 0.0, %v1020
    %v1022 = vpop.f32.mrb[0].mxu0
    %1023 = vmatprep.mubr.f32.mxu0 0.0
    %1024 = vmatmul.mubr.f32.gmra.mrb[0].mxu0 %v890
    %v1025 = vpop.f32.mrb[0].mxu0
    %v1026 = vadd.f32 0.0, %v1025
    %v1027 = vpop.f32.mrb[0].mxu0
    %1028 = vmatprep.mubr.f32.mxu0 0.0
    %1029 = vmatmul.mubr.f32.gmra.mrb[0].mxu0 %v893
    %v1030 = vpop.f32.mrb[0].mxu0
    %v1031 = vadd.f32 0.0, %v1030
    %v1032 = vpop.f32.mrb[0].mxu0
    %1033 = vmatprep.mubr.f32.mxu0 0.0
    %1034 = vmatmul.mubr.f32.gmra.mrb[0].mxu0 %v896
    %v1035 = vpop.f32.mrb[0].mxu0
    %v1036 = vadd.f32 0.0, %v1035
    %v1037 = vpop.f32.mrb[0].mxu0
    %1038 = vmatprep.mubr.f32.mxu0 0.0
    %1039 = vmatmul.mubr.f32.gmra.mrb[0].mxu0 %v899
    %v1040 = vpop.f32.mrb[0].mxu0
    %v1041 = vadd.f32 0.0, %v1040
    %v1042 = vpop.f32.mrb[0].mxu0
    %1043 = vmatprep.mubr.f32.mxu0 0.0
    %1044 = vmatmul.mubr.f32.gmra.mrb[0].mxu0 %v902
    %v1045 = vpop.f32.mrb[0].mxu0
    %v1046 = vadd.f32 0.0, %v1045
    %v1047 = vpop.f32.mrb[0].mxu0
    %1048 = vdwg.mxu0
    %1050 = vset.pattern.permute.xlu0 0
    %1051 = vperm.xlu0 %1050, %v971
    %v1052 = vpop.permute.xlu0 %1051
    %1055 = vset.pattern.permute.xlu0 0
    %1056 = vperm.xlu0 %1055, %v976
    %v1057 = vpop.permute.xlu0 %1056
    %1060 = vset.pattern.permute.xlu0 0
    %1061 = vperm.xlu0 %1060, %v981
    %v1062 = vpop.permute.xlu0 %1061
    %1065 = vset.pattern.permute.xlu0 0
    %1066 = vperm.xlu0 %1065, %v986
    %v1067 = vpop.permute.xlu0 %1066
    %1070 = vset.pattern.permute.xlu0 0
    %1071 = vperm.xlu0 %1070, %v991
    %v1072 = vpop.permute.xlu0 %1071
    %1075 = vset.pattern.permute.xlu0 0
    %1076 = vperm.xlu0 %1075, %v996
    %v1077 = vpop.permute.xlu0 %1076
    %1080 = vset.pattern.permute.xlu0 0
    %1081 = vperm.xlu0 %1080, %v1001
    %v1082 = vpop.permute.xlu0 %1081
    %1085 = vset.pattern.permute.xlu0 0
    %1086 = vperm.xlu0 %1085, %v1006
    %v1087 = vpop.permute.xlu0 %1086
    %1090 = vset.pattern.permute.xlu0 0
    %1091 = vperm.xlu0 %1090, %v1011
    %v1092 = vpop.permute.xlu0 %1091
    %1095 = vset.pattern.permute.xlu0 0
    %1096 = vperm.xlu0 %1095, %v1016
    %v1097 = vpop.permute.xlu0 %1096
    %1100 = vset.pattern.permute.xlu0 0
    %1101 = vperm.xlu0 %1100, %v1021
    %v1102 = vpop.permute.xlu0 %1101
    %1105 = vset.pattern.permute.xlu0 0
    %1106 = vperm.xlu0 %1105, %v1026
    %v1107 = vpop.permute.xlu0 %1106
    %1110 = vset.pattern.permute.xlu0 0
    %1111 = vperm.xlu0 %1110, %v1031
    %v1112 = vpop.permute.xlu0 %1111
    %1115 = vset.pattern.permute.xlu0 0
    %1116 = vperm.xlu0 %1115, %v1036
    %v1117 = vpop.permute.xlu0 %1116
    %1120 = vset.pattern.permute.xlu0 0
    %1121 = vperm.xlu0 %1120, %v1041
    %v1122 = vpop.permute.xlu0 %1121
    %1125 = vset.pattern.permute.xlu0 0
    %1126 = vperm.xlu0 %1125, %v1046
    %v1127 = vpop.permute.xlu0 %1126
    %v1129 = vmul.f32 %v1052, %v169
    %v1130 = vmul.f32 %v1057, %v170
    %v1131 = vmul.f32 %v1062, %v171
    %v1132 = vmul.f32 %v1067, %v172
    %v1133 = vmul.f32 %v1072, %v173
    %v1134 = vmul.f32 %v1077, %v174
    %v1135 = vmul.f32 %v1082, %v175
    %v1136 = vmul.f32 %v1087, %v176
    %v1137 = vmul.f32 %v1092, %v177
    %v1138 = vmul.f32 %v1097, %v178
    %v1139 = vmul.f32 %v1102, %v179
    %v1140 = vmul.f32 %v1107, %v180
    %v1141 = vmul.f32 %v1112, %v181
    %v1142 = vmul.f32 %v1117, %v182
    %v1143 = vmul.f32 %v1122, %v183
    %v1144 = vmul.f32 %v1127, %v184
    %v1145 = vmul.f32 %v767, %v799
    %v1146 = vmul.f32 %v768, %v800
    %v1147 = vmul.f32 %v769, %v801
    %v1148 = vmul.f32 %v770, %v802
    %1149 = vxpose.xlu0.b32.start [1/16] %v1145, 128
    %1150 = vxpose.xlu0.b32.cont [2/16] %v1146, 128
    %1151 = vxpose.xlu0.b32.cont [3/16] %v1147, 128
    %1152 = vxpose.xlu0.b32.cont [4/16] %v1148, 128
    %1153 = vxpose.xlu0.b32.cont [5/16] 0.0, 128
    %1154 = vxpose.xlu0.b32.cont [6/16] 0.0, 128
    %1155 = vxpose.xlu0.b32.cont [7/16] 0.0, 128
    %1156 = vxpose.xlu0.b32.cont [8/16] 0.0, 128
    %1157 = vxpose.xlu0.b32.cont [9/16] 0.0, 128
    %1158 = vxpose.xlu0.b32.cont [10/16] 0.0, 128
    %1159 = vxpose.xlu0.b32.cont [11/16] 0.0, 128
    %1160 = vxpose.xlu0.b32.cont [12/16] 0.0, 128
    %1161 = vxpose.xlu0.b32.cont [13/16] 0.0, 128
    %1162 = vxpose.xlu0.b32.cont [14/16] 0.0, 128
    %1163 = vxpose.xlu0.b32.cont [15/16] 0.0, 128
    %1164 = vxpose.xlu0.b32.end [16/16] 0.0, 128
    %v1165 = vpop.trf.xlu0
    %v1166 = vpop.trf.xlu0
    %v1167 = vpop.trf.xlu0
    %v1168 = vpop.trf.xlu0
    %v1169 = vpop.trf.xlu0
    %v1170 = vpop.trf.xlu0
    %v1171 = vpop.trf.xlu0
    %v1172 = vpop.trf.xlu0
    %v1173 = vpop.trf.xlu0
    %v1174 = vpop.trf.xlu0
    %v1175 = vpop.trf.xlu0
    %v1176 = vpop.trf.xlu0
    %v1177 = vpop.trf.xlu0
    %v1178 = vpop.trf.xlu0
    %v1179 = vpop.trf.xlu0
    %v1180 = vpop.trf.xlu0
    %v1182 = vsel %vm855, %v1165, 0
    %v1185 = vsel %vm855, %v1166, 0
    %v1188 = vsel %vm855, %v1167, 0
    %v1191 = vsel %vm855, %v1168, 0
    %v1194 = vsel %vm855, %v1169, 0
    %v1197 = vsel %vm855, %v1170, 0
    %v1200 = vsel %vm855, %v1171, 0
    %v1203 = vsel %vm855, %v1172, 0
    %v1206 = vsel %vm855, %v1173, 0
    %v1209 = vsel %vm855, %v1174, 0
    %v1212 = vsel %vm855, %v1175, 0
    %v1215 = vsel %vm855, %v1176, 0
    %v1218 = vsel %vm855, %v1177, 0
    %v1221 = vsel %vm855, %v1178, 0
    %v1224 = vsel %vm855, %v1179, 0
    %v1227 = vsel %vm855, %v1180, 0
    %1229 = vmatprep.subr.mxu0 0.0
    %1230 = vmatpush1.msra.mxu0 %v290
    %1231 = vmatprep.subr.mxu0 0.0
    %1232 = vmatpush1.msra.mxu0 %v292
    %1233 = vmatprep.subr.mxu0 0.0
    %1234 = vmatpush1.msra.mxu0 %v294
    %1235 = vmatprep.subr.mxu0 0.0
    %1236 = vmatpush1.msra.mxu0 %v296
    %1237 = vmatprep.subr.mxu0 0.0
    %1238 = vmatpush1.msra.mxu0 0.0
    %1239 = vmatprep.subr.mxu0 0.0
    %1240 = vmatpush1.msra.mxu0 0.0
    %1241 = vmatprep.subr.mxu0 0.0
    %1242 = vmatpush1.msra.mxu0 0.0
    %1243 = vmatprep.subr.mxu0 0.0
    %1244 = vmatpush1.msra.mxu0 0.0
    %1245 = vmatprep.subr.mxu0 0.0
    %1246 = vmatpush1.msra.mxu0 0.0
    %1247 = vmatprep.subr.mxu0 0.0
    %1248 = vmatpush1.msra.mxu0 0.0
    %1249 = vmatprep.subr.mxu0 0.0
    %1250 = vmatpush1.msra.mxu0 0.0
    %1251 = vmatprep.subr.mxu0 0.0
    %1252 = vmatpush1.msra.mxu0 0.0
    %1253 = vmatprep.subr.mxu0 0.0
    %1254 = vmatpush1.msra.mxu0 0.0
    %1255 = vmatprep.subr.mxu0 0.0
    %1256 = vmatpush1.msra.mxu0 0.0
    %1257 = vmatprep.subr.mxu0 0.0
    %1258 = vmatpush1.msra.mxu0 0.0
    %1259 = vmatprep.subr.mxu0 0.0
    %1260 = vmatpush1.msra.mxu0 0.0
    %1261 = vmatprep.subr.mxu0 0.0
    %1262 = vmatpush1.msra.mxu0 0.0
    %1263 = vmatprep.subr.mxu0 0.0
    %1264 = vmatpush1.msra.mxu0 0.0
    %1265 = vmatprep.subr.mxu0 0.0
    %1266 = vmatpush1.msra.mxu0 0.0
    %1267 = vmatprep.subr.mxu0 0.0
    %1268 = vmatpush1.msra.mxu0 0.0
    %1269 = vmatprep.subr.mxu0 0.0
    %1270 = vmatpush1.msra.mxu0 0.0
    %1271 = vmatprep.subr.mxu0 0.0
    %1272 = vmatpush1.msra.mxu0 0.0
    %1273 = vmatprep.subr.mxu0 0.0
    %1274 = vmatpush1.msra.mxu0 0.0
    %1275 = vmatprep.subr.mxu0 0.0
    %1276 = vmatpush1.msra.mxu0 0.0
    %1277 = vmatprep.subr.mxu0 0.0
    %1278 = vmatpush1.msra.mxu0 0.0
    %1279 = vmatprep.subr.mxu0 0.0
    %1280 = vmatpush1.msra.mxu0 0.0
    %1281 = vmatprep.subr.mxu0 0.0
    %1282 = vmatpush1.msra.mxu0 0.0
    %1283 = vmatprep.subr.mxu0 0.0
    %1284 = vmatpush1.msra.mxu0 0.0
    %1285 = vmatprep.subr.mxu0 0.0
    %1286 = vmatpush1.msra.mxu0 0.0
    %1287 = vmatprep.subr.mxu0 0.0
    %1288 = vmatpush1.msra.mxu0 0.0
    %1289 = vmatprep.subr.mxu0 0.0
    %1290 = vmatpush1.msra.mxu0 0.0
    %1291 = vmatprep.subr.mxu0 0.0
    %1292 = vmatpush1.msra.mxu0 0.0
    %1293 = vmatprep.mubr.f32.mxu0 0.0
    %1294 = vmatmul.mubr.f32.gmra.mrb[0].mxu0 %v1182
    %v1295 = vpop.f32.mrb[0].mxu0
    %v1296 = vadd.f32 0.0, %v1295
    %v1297 = vpop.f32.mrb[0].mxu0
    %1298 = vmatprep.mubr.f32.mxu0 0.0
    %1299 = vmatmul.mubr.f32.gmra.mrb[0].mxu0 %v1185
    %v1300 = vpop.f32.mrb[0].mxu0
    %v1301 = vadd.f32 0.0, %v1300
    %v1302 = vpop.f32.mrb[0].mxu0
    %1303 = vmatprep.mubr.f32.mxu0 0.0
    %1304 = vmatmul.mubr.f32.gmra.mrb[0].mxu0 %v1188
    %v1305 = vpop.f32.mrb[0].mxu0
    %v1306 = vadd.f32 0.0, %v1305
    %v1307 = vpop.f32.mrb[0].mxu0
    %1308 = vmatprep.mubr.f32.mxu0 0.0
    %1309 = vmatmul.mubr.f32.gmra.mrb[0].mxu0 %v1191
    %v1310 = vpop.f32.mrb[0].mxu0
    %v1311 = vadd.f32 0.0, %v1310
    %v1312 = vpop.f32.mrb[0].mxu0
    %1313 = vmatprep.mubr.f32.mxu0 0.0
    %1314 = vmatmul.mubr.f32.gmra.mrb[0].mxu0 %v1194
    %v1315 = vpop.f32.mrb[0].mxu0
    %v1316 = vadd.f32 0.0, %v1315
    %v1317 = vpop.f32.mrb[0].mxu0
    %1318 = vmatprep.mubr.f32.mxu0 0.0
    %1319 = vmatmul.mubr.f32.gmra.mrb[0].mxu0 %v1197
    %v1320 = vpop.f32.mrb[0].mxu0
    %v1321 = vadd.f32 0.0, %v1320
    %v1322 = vpop.f32.mrb[0].mxu0
    %1323 = vmatprep.mubr.f32.mxu0 0.0
    %1324 = vmatmul.mubr.f32.gmra.mrb[0].mxu0 %v1200
    %v1325 = vpop.f32.mrb[0].mxu0
    %v1326 = vadd.f32 0.0, %v1325
    %v1327 = vpop.f32.mrb[0].mxu0
    %1328 = vmatprep.mubr.f32.mxu0 0.0
    %1329 = vmatmul.mubr.f32.gmra.mrb[0].mxu0 %v1203
    %v1330 = vpop.f32.mrb[0].mxu0
    %v1331 = vadd.f32 0.0, %v1330
    %v1332 = vpop.f32.mrb[0].mxu0
    %1333 = vmatprep.mubr.f32.mxu0 0.0
    %1334 = vmatmul.mubr.f32.gmra.mrb[0].mxu0 %v1206
    %v1335 = vpop.f32.mrb[0].mxu0
    %v1336 = vadd.f32 0.0, %v1335
    %v1337 = vpop.f32.mrb[0].mxu0
    %1338 = vmatprep.mubr.f32.mxu0 0.0
    %1339 = vmatmul.mubr.f32.gmra.mrb[0].mxu0 %v1209
    %v1340 = vpop.f32.mrb[0].mxu0
    %v1341 = vadd.f32 0.0, %v1340
    %v1342 = vpop.f32.mrb[0].mxu0
    %1343 = vmatprep.mubr.f32.mxu0 0.0
    %1344 = vmatmul.mubr.f32.gmra.mrb[0].mxu0 %v1212
    %v1345 = vpop.f32.mrb[0].mxu0
    %v1346 = vadd.f32 0.0, %v1345
    %v1347 = vpop.f32.mrb[0].mxu0
    %1348 = vmatprep.mubr.f32.mxu0 0.0
    %1349 = vmatmul.mubr.f32.gmra.mrb[0].mxu0 %v1215
    %v1350 = vpop.f32.mrb[0].mxu0
    %v1351 = vadd.f32 0.0, %v1350
    %v1352 = vpop.f32.mrb[0].mxu0
    %1353 = vmatprep.mubr.f32.mxu0 0.0
    %1354 = vmatmul.mubr.f32.gmra.mrb[0].mxu0 %v1218
    %v1355 = vpop.f32.mrb[0].mxu0
    %v1356 = vadd.f32 0.0, %v1355
    %v1357 = vpop.f32.mrb[0].mxu0
    %1358 = vmatprep.mubr.f32.mxu0 0.0
    %1359 = vmatmul.mubr.f32.gmra.mrb[0].mxu0 %v1221
    %v1360 = vpop.f32.mrb[0].mxu0
    %v1361 = vadd.f32 0.0, %v1360
    %v1362 = vpop.f32.mrb[0].mxu0
    %1363 = vmatprep.mubr.f32.mxu0 0.0
    %1364 = vmatmul.mubr.f32.gmra.mrb[0].mxu0 %v1224
    %v1365 = vpop.f32.mrb[0].mxu0
    %v1366 = vadd.f32 0.0, %v1365
    %v1367 = vpop.f32.mrb[0].mxu0
    %1368 = vmatprep.mubr.f32.mxu0 0.0
    %1369 = vmatmul.mubr.f32.gmra.mrb[0].mxu0 %v1227
    %v1370 = vpop.f32.mrb[0].mxu0
    %v1371 = vadd.f32 0.0, %v1370
    %v1372 = vpop.f32.mrb[0].mxu0
    %1373 = vdwg.mxu0
    %v1374 = vadd.f32 %v1129, %v1296
    %v1375 = vadd.f32 %v1130, %v1301
    %v1376 = vadd.f32 %v1131, %v1306
    %v1377 = vadd.f32 %v1132, %v1311
    %v1378 = vadd.f32 %v1133, %v1316
    %v1379 = vadd.f32 %v1134, %v1321
    %v1380 = vadd.f32 %v1135, %v1326
    %v1381 = vadd.f32 %v1136, %v1331
    %v1382 = vadd.f32 %v1137, %v1336
    %v1383 = vadd.f32 %v1138, %v1341
    %v1384 = vadd.f32 %v1139, %v1346
    %v1385 = vadd.f32 %v1140, %v1351
    %v1386 = vadd.f32 %v1141, %v1356
    %v1387 = vadd.f32 %v1142, %v1361
    %v1388 = vadd.f32 %v1143, %v1366
    %v1389 = vadd.f32 %v1144, %v1371
    %v1390 = vadd.f32 %v803, %v1374
    %v1391 = vadd.f32 %v804, %v1375
    %v1392 = vadd.f32 %v805, %v1376
    %v1393 = vadd.f32 %v806, %v1377
    %v1394 = vadd.f32 %v807, %v1378
    %v1395 = vadd.f32 %v808, %v1379
    %v1396 = vadd.f32 %v809, %v1380
    %v1397 = vadd.f32 %v810, %v1381
    %v1398 = vadd.f32 %v811, %v1382
    %v1399 = vadd.f32 %v812, %v1383
    %v1400 = vadd.f32 %v813, %v1384
    %v1401 = vadd.f32 %v814, %v1385
    %v1402 = vadd.f32 %v815, %v1386
    %v1403 = vadd.f32 %v816, %v1387
    %v1404 = vadd.f32 %v817, %v1388
    %v1405 = vadd.f32 %v818, %v1389
    %1406 = vst [vmem:[#allocation16] sm:$0xff] %v1390
    %1407 = vst [vmem:[#allocation16 + $0x8] sm:$0xff] %v1391
    %1408 = vst [vmem:[#allocation16 + $0x10] sm:$0xff] %v1392
    %1409 = vst [vmem:[#allocation16 + $0x18] sm:$0xff] %v1393
    %1410 = vst [vmem:[#allocation16 + $0x20] sm:$0xff] %v1394
    %1411 = vst [vmem:[#allocation16 + $0x28] sm:$0xff] %v1395
    %1412 = vst [vmem:[#allocation16 + $0x30] sm:$0xff] %v1396
    %1413 = vst [vmem:[#allocation16 + $0x38] sm:$0xff] %v1397
    %1414 = vst [vmem:[#allocation16 + $0x40] sm:$0xff] %v1398
    %1415 = vst [vmem:[#allocation16 + $0x48] sm:$0xff] %v1399
    %1416 = vst [vmem:[#allocation16 + $0x50] sm:$0xff] %v1400
    %1417 = vst [vmem:[#allocation16 + $0x58] sm:$0xff] %v1401
    %1418 = vst [vmem:[#allocation16 + $0x60] sm:$0xff] %v1402
    %1419 = vst [vmem:[#allocation16 + $0x68] sm:$0xff] %v1403
    %1420 = vst [vmem:[#allocation16 + $0x70] sm:$0xff] %v1404
    %1421 = vst [vmem:[#allocation16 + $0x78] sm:$0xff] %v1405
    %s1422 = sld [smem:[#allocation2 + $0x2]]
    %s1423 = sld [smem:[#allocation2 + $0x3]]
    %v1424 = vstv %s1422
    %vm1425 = vcmp.gt.f32.partialorder %v453, %v1424
    %vm1426 = vcmp.gt.f32.partialorder %v458, %v1424
    %vm1427 = vcmp.gt.f32.partialorder %v463, %v1424
    %vm1428 = vcmp.gt.f32.partialorder %v468, %v1424
    %v1429 = vstv %s1423
    %vm1430 = vcmp.lt.f32.partialorder %v453, %v1429
    %vm1431 = vcmp.lt.f32.partialorder %v458, %v1429
    %vm1432 = vcmp.lt.f32.partialorder %v463, %v1429
    %vm1433 = vcmp.lt.f32.partialorder %v468, %v1429
    %vm1434 = vmand %vm1425, %vm473
    %vm1435 = vmand %vm1426, %vm473
    %vm1436 = vmand %vm1427, %vm473
    %vm1437 = vmand %vm1428, %vm473
    %vm1438 = vmand %vm1430, %vm473
    %vm1439 = vmand %vm1431, %vm473
    %vm1440 = vmand %vm1432, %vm473
    %vm1441 = vmand %vm1433, %vm473
    %v1442 = vsel %vm1434, %v453, 0.0
    %v1443 = vsel %vm1435, %v458, 0.0
    %v1444 = vsel %vm1436, %v463, 0.0
    %v1445 = vsel %vm1437, %v468, 0.0
    %v1446 = vsel %vm1434, %v453, 1e+30
    %v1447 = vsel %vm1435, %v458, 1e+30
    %v1448 = vsel %vm1436, %v463, 1e+30
    %v1449 = vsel %vm1437, %v468, 1e+30
    %1450 = vmin.xlane.f32.xlu0 %v1446
    %v1451 = vpop.xlane.xlu0 %1450
    %1452 = vmin.xlane.f32.xlu0 %v1447
    %v1453 = vpop.xlane.xlu0 %1452
    %1454 = vmin.xlane.f32.xlu0 %v1448
    %v1455 = vpop.xlane.xlu0 %1454
    %1456 = vmin.xlane.f32.xlu0 %v1449
    %v1457 = vpop.xlane.xlu0 %1456
    %vm1458 = vcmp.eq.f32.partialorder %v1446, %v1451
    %vm1459 = vcmp.eq.f32.partialorder %v1447, %v1453
    %vm1460 = vcmp.eq.f32.partialorder %v1448, %v1455
    %vm1461 = vcmp.eq.f32.partialorder %v1449, %v1457
    %v1462 = vsel %vm1458, %v472, 128
    %v1463 = vsel %vm1459, %v472, 128
    %v1464 = vsel %vm1460, %v472, 128
    %v1465 = vsel %vm1461, %v472, 128
    %v1466 = vand.u32 %v1462, 65535
    %v1467 = vshra.s32 %v1462, 16
    %v1468 = vcvt.s32.f32 %v1466
    %v1469 = vcvt.s32.f32 %v1467
    %1470 = vmin.xlane.f32.xlu0 %v1469
    %v1471 = vpop.xlane.xlu0 %1470
    %vm1472 = vcmp.eq.f32.partialorder %v1469, %v1471
    %v1473 = vsel %vm1472, %v1468, inf
    %1474 = vmin.xlane.f32.xlu0 %v1473
    %v1475 = vpop.xlane.xlu0 %1474
    %v1476 = vcvt.f32.s32 %v1475
    %v1477 = vcvt.f32.s32 %v1471
    %v1478 = vshll.u32 %v1477, 16
    %v1479 = vadd.s32 %v1478, %v1476
    %v1480 = vand.u32 %v1463, 65535
    %v1481 = vshra.s32 %v1463, 16
    %v1482 = vcvt.s32.f32 %v1480
    %v1483 = vcvt.s32.f32 %v1481
    %1484 = vmin.xlane.f32.xlu0 %v1483
    %v1485 = vpop.xlane.xlu0 %1484
    %vm1486 = vcmp.eq.f32.partialorder %v1483, %v1485
    %v1487 = vsel %vm1486, %v1482, inf
    %1488 = vmin.xlane.f32.xlu0 %v1487
    %v1489 = vpop.xlane.xlu0 %1488
    %v1490 = vcvt.f32.s32 %v1489
    %v1491 = vcvt.f32.s32 %v1485
    %v1492 = vshll.u32 %v1491, 16
    %v1493 = vadd.s32 %v1492, %v1490
    %v1494 = vand.u32 %v1464, 65535
    %v1495 = vshra.s32 %v1464, 16
    %v1496 = vcvt.s32.f32 %v1494
    %v1497 = vcvt.s32.f32 %v1495
    %1498 = vmin.xlane.f32.xlu0 %v1497
    %v1499 = vpop.xlane.xlu0 %1498
    %vm1500 = vcmp.eq.f32.partialorder %v1497, %v1499
    %v1501 = vsel %vm1500, %v1496, inf
    %1502 = vmin.xlane.f32.xlu0 %v1501
    %v1503 = vpop.xlane.xlu0 %1502
    %v1504 = vcvt.f32.s32 %v1503
    %v1505 = vcvt.f32.s32 %v1499
    %v1506 = vshll.u32 %v1505, 16
    %v1507 = vadd.s32 %v1506, %v1504
    %v1508 = vand.u32 %v1465, 65535
    %v1509 = vshra.s32 %v1465, 16
    %v1510 = vcvt.s32.f32 %v1508
    %v1511 = vcvt.s32.f32 %v1509
    %1512 = vmin.xlane.f32.xlu0 %v1511
    %v1513 = vpop.xlane.xlu0 %1512
    %vm1514 = vcmp.eq.f32.partialorder %v1511, %v1513
    %v1515 = vsel %vm1514, %v1510, inf
    %1516 = vmin.xlane.f32.xlu0 %v1515
    %v1517 = vpop.xlane.xlu0 %1516
    %v1518 = vcvt.f32.s32 %v1517
    %v1519 = vcvt.f32.s32 %v1513
    %v1520 = vshll.u32 %v1519, 16
    %v1521 = vadd.s32 %v1520, %v1518
    %vm1522 = vcmp.eq.s32.totalorder %v472, %v1479
    %vm1523 = vcmp.eq.s32.totalorder %v472, %v1493
    %vm1524 = vcmp.eq.s32.totalorder %v472, %v1507
    %vm1525 = vcmp.eq.s32.totalorder %v472, %v1521
    %v1526 = vsel %vm1522, 1, 0
    %v1527 = vsel %vm1523, 1, 0
    %v1528 = vsel %vm1524, 1, 0
    %v1529 = vsel %vm1525, 1, 0
    %v1530 = vcvt.s32.f32 %v1526
    %v1531 = vcvt.s32.f32 %v1527
    %v1532 = vcvt.s32.f32 %v1528
    %v1533 = vcvt.s32.f32 %v1529
    %v1534 = vsel %vm1438, %v453, -1e+30
    %v1535 = vsel %vm1439, %v458, -1e+30
    %v1536 = vsel %vm1440, %v463, -1e+30
    %v1537 = vsel %vm1441, %v468, -1e+30
    %1538 = vmax.xlane.f32.xlu0 %v1534
    %v1539 = vpop.xlane.xlu0 %1538
    %1540 = vmax.xlane.f32.xlu0 %v1535
    %v1541 = vpop.xlane.xlu0 %1540
    %1542 = vmax.xlane.f32.xlu0 %v1536
    %v1543 = vpop.xlane.xlu0 %1542
    %1544 = vmax.xlane.f32.xlu0 %v1537
    %v1545 = vpop.xlane.xlu0 %1544
    %vm1546 = vcmp.eq.f32.partialorder %v1534, %v1539
    %vm1547 = vcmp.eq.f32.partialorder %v1535, %v1541
    %vm1548 = vcmp.eq.f32.partialorder %v1536, %v1543
    %vm1549 = vcmp.eq.f32.partialorder %v1537, %v1545
    %v1550 = vsel %vm1546, %v472, 128
    %v1551 = vsel %vm1547, %v472, 128
    %v1552 = vsel %vm1548, %v472, 128
    %v1553 = vsel %vm1549, %v472, 128
    %v1554 = vand.u32 %v1550, 65535
    %v1555 = vshra.s32 %v1550, 16
    %v1556 = vcvt.s32.f32 %v1554
    %v1557 = vcvt.s32.f32 %v1555
    %1558 = vmin.xlane.f32.xlu0 %v1557
    %v1559 = vpop.xlane.xlu0 %1558
    %vm1560 = vcmp.eq.f32.partialorder %v1557, %v1559
    %v1561 = vsel %vm1560, %v1556, inf
    %1562 = vmin.xlane.f32.xlu0 %v1561
    %v1563 = vpop.xlane.xlu0 %1562
    %v1564 = vcvt.f32.s32 %v1563
    %v1565 = vcvt.f32.s32 %v1559
    %v1566 = vshll.u32 %v1565, 16
    %v1567 = vadd.s32 %v1566, %v1564
    %v1568 = vand.u32 %v1551, 65535
    %v1569 = vshra.s32 %v1551, 16
    %v1570 = vcvt.s32.f32 %v1568
    %v1571 = vcvt.s32.f32 %v1569
    %1572 = vmin.xlane.f32.xlu0 %v1571
    %v1573 = vpop.xlane.xlu0 %1572
    %vm1574 = vcmp.eq.f32.partialorder %v1571, %v1573
    %v1575 = vsel %vm1574, %v1570, inf
    %1576 = vmin.xlane.f32.xlu0 %v1575
    %v1577 = vpop.xlane.xlu0 %1576
    %v1578 = vcvt.f32.s32 %v1577
    %v1579 = vcvt.f32.s32 %v1573
    %v1580 = vshll.u32 %v1579, 16
    %v1581 = vadd.s32 %v1580, %v1578
    %v1582 = vand.u32 %v1552, 65535
    %v1583 = vshra.s32 %v1552, 16
    %v1584 = vcvt.s32.f32 %v1582
    %v1585 = vcvt.s32.f32 %v1583
    %1586 = vmin.xlane.f32.xlu0 %v1585
    %v1587 = vpop.xlane.xlu0 %1586
    %vm1588 = vcmp.eq.f32.partialorder %v1585, %v1587
    %v1589 = vsel %vm1588, %v1584, inf
    %1590 = vmin.xlane.f32.xlu0 %v1589
    %v1591 = vpop.xlane.xlu0 %1590
    %v1592 = vcvt.f32.s32 %v1591
    %v1593 = vcvt.f32.s32 %v1587
    %v1594 = vshll.u32 %v1593, 16
    %v1595 = vadd.s32 %v1594, %v1592
    %v1596 = vand.u32 %v1553, 65535
    %v1597 = vshra.s32 %v1553, 16
    %v1598 = vcvt.s32.f32 %v1596
    %v1599 = vcvt.s32.f32 %v1597
    %1600 = vmin.xlane.f32.xlu0 %v1599
    %v1601 = vpop.xlane.xlu0 %1600
    %vm1602 = vcmp.eq.f32.partialorder %v1599, %v1601
    %v1603 = vsel %vm1602, %v1598, inf
    %1604 = vmin.xlane.f32.xlu0 %v1603
    %v1605 = vpop.xlane.xlu0 %1604
    %v1606 = vcvt.f32.s32 %v1605
    %v1607 = vcvt.f32.s32 %v1601
    %v1608 = vshll.u32 %v1607, 16
    %v1609 = vadd.s32 %v1608, %v1606
    %vm1610 = vcmp.eq.s32.totalorder %v472, %v1567
    %vm1611 = vcmp.eq.s32.totalorder %v472, %v1581
    %vm1612 = vcmp.eq.s32.totalorder %v472, %v1595
    %vm1613 = vcmp.eq.s32.totalorder %v472, %v1609
    %v1614 = vsel %vm1610, 1, 0
    %v1615 = vsel %vm1611, 1, 0
    %v1616 = vsel %vm1612, 1, 0
    %v1617 = vsel %vm1613, 1, 0
    %v1618 = vcvt.s32.f32 %v1614
    %v1619 = vcvt.s32.f32 %v1615
    %v1620 = vcvt.s32.f32 %v1616
    %v1621 = vcvt.s32.f32 %v1617
    %v1622 = vsel %vm1434, 1, 0
    %v1623 = vsel %vm1435, 1, 0
    %v1624 = vsel %vm1436, 1, 0
    %v1625 = vsel %vm1437, 1, 0
    %v1626 = vcvt.s32.f32 %v1622
    %v1627 = vcvt.s32.f32 %v1623
    %v1628 = vcvt.s32.f32 %v1624
    %v1629 = vcvt.s32.f32 %v1625
    %1630 = vmax.xlane.f32.xlu0 %v1626
    %v1631 = vpop.xlane.xlu0 %1630
    %1632 = vmax.xlane.f32.xlu0 %v1627
    %v1633 = vpop.xlane.xlu0 %1632
    %1634 = vmax.xlane.f32.xlu0 %v1628
    %v1635 = vpop.xlane.xlu0 %1634
    %1636 = vmax.xlane.f32.xlu0 %v1629
    %v1637 = vpop.xlane.xlu0 %1636
    %v1638 = vsel %vm1438, 1, 0
    %v1639 = vsel %vm1439, 1, 0
    %v1640 = vsel %vm1440, 1, 0
    %v1641 = vsel %vm1441, 1, 0
    %v1642 = vcvt.s32.f32 %v1638
    %v1643 = vcvt.s32.f32 %v1639
    %v1644 = vcvt.s32.f32 %v1640
    %v1645 = vcvt.s32.f32 %v1641
    %1646 = vmax.xlane.f32.xlu0 %v1642
    %v1647 = vpop.xlane.xlu0 %1646
    %1648 = vmax.xlane.f32.xlu0 %v1643
    %v1649 = vpop.xlane.xlu0 %1648
    %1650 = vmax.xlane.f32.xlu0 %v1644
    %v1651 = vpop.xlane.xlu0 %1650
    %1652 = vmax.xlane.f32.xlu0 %v1645
    %v1653 = vpop.xlane.xlu0 %1652
    %v1654 = vsub.f32 0.0, %v1647
    %v1655 = vsub.f32 0.0, %v1649
    %v1656 = vsub.f32 0.0, %v1651
    %v1657 = vsub.f32 0.0, %v1653
    %v1658 = vld [vmem:[#allocation18] sm:$0x1]
    %v1659 = vmul.f32 %v1631, %v1530
    %v1660 = vmul.f32 %v1633, %v1531
    %v1661 = vmul.f32 %v1635, %v1532
    %v1662 = vmul.f32 %v1637, %v1533
    %v1663 = vmul.f32 %v1654, %v1618
    %v1664 = vmul.f32 %v1655, %v1619
    %v1665 = vmul.f32 %v1656, %v1620
    %v1666 = vmul.f32 %v1657, %v1621
    %v1667 = vadd.f32 %v1659, %v1663
    %v1668 = vadd.f32 %v1660, %v1664
    %v1669 = vadd.f32 %v1661, %v1665
    %v1670 = vadd.f32 %v1662, %v1666
    %v1671 = vmul.f32 %v1667, %v368
    %v1672 = vmul.f32 %v1668, %v373
    %v1673 = vmul.f32 %v1669, %v378
    %v1674 = vmul.f32 %v1670, %v383
    %v1675 = vadd.f32 %v1671, %v1672
    %v1676 = vadd.f32 %v1675, %v1673
    %v1677 = vadd.f32 %v1676, %v1674
    %1678 = vadd.xlane.f32.xlu0 %v1677
    %v1679 = vpop.xlane.xlu0 %1678
    %v1680 = vrot.slane %v1679, 4
    %v1681 = vadd.f32 %v1679, %v1680
    %v1682 = vrot.slane %v1681, 2
    %v1683 = vadd.f32 %v1681, %v1682
    %v1684 = vrot.slane %v1683, 1
    %v1685 = vadd.f32 %v1683, %v1684
    %s1686 = vtos %v1685
    %v1687 = vstv %s1686
    %v1688 = vadd.f32 %v1658, %v1687
    %1689 = vst.msk [vmem:[#allocation18] sm:$0x1] %vm741, %v1688
    %1690 = vmax.xlane.f32.xlu0 %v1442
    %v1691 = vpop.xlane.xlu0 %1690
    %1692 = vmax.xlane.f32.xlu0 %v1443
    %v1693 = vpop.xlane.xlu0 %1692
    %1694 = vmax.xlane.f32.xlu0 %v1444
    %v1695 = vpop.xlane.xlu0 %1694
    %1696 = vmax.xlane.f32.xlu0 %v1445
    %v1697 = vpop.xlane.xlu0 %1696
    %vm1698 = vcmp.eq.f32.partialorder %v1442, %v1691
    %vm1699 = vcmp.eq.f32.partialorder %v1443, %v1693
    %vm1700 = vcmp.eq.f32.partialorder %v1444, %v1695
    %vm1701 = vcmp.eq.f32.partialorder %v1445, %v1697
    %v1702 = vsel %vm1698, %v472, 128
    %v1703 = vsel %vm1699, %v472, 128
    %v1704 = vsel %vm1700, %v472, 128
    %v1705 = vsel %vm1701, %v472, 128
    %v1706 = vand.u32 %v1702, 65535
    %v1707 = vshra.s32 %v1702, 16
    %v1708 = vcvt.s32.f32 %v1706
    %v1709 = vcvt.s32.f32 %v1707
    %1710 = vmin.xlane.f32.xlu0 %v1709
    %v1711 = vpop.xlane.xlu0 %1710
    %vm1712 = vcmp.eq.f32.partialorder %v1709, %v1711
    %v1713 = vsel %vm1712, %v1708, inf
    %1714 = vmin.xlane.f32.xlu0 %v1713
    %v1715 = vpop.xlane.xlu0 %1714
    %v1716 = vcvt.f32.s32 %v1715
    %v1717 = vcvt.f32.s32 %v1711
    %v1718 = vshll.u32 %v1717, 16
    %v1719 = vadd.s32 %v1718, %v1716
    %v1720 = vand.u32 %v1703, 65535
    %v1721 = vshra.s32 %v1703, 16
    %v1722 = vcvt.s32.f32 %v1720
    %v1723 = vcvt.s32.f32 %v1721
    %1724 = vmin.xlane.f32.xlu0 %v1723
    %v1725 = vpop.xlane.xlu0 %1724
    %vm1726 = vcmp.eq.f32.partialorder %v1723, %v1725
    %v1727 = vsel %vm1726, %v1722, inf
    %1728 = vmin.xlane.f32.xlu0 %v1727
    %v1729 = vpop.xlane.xlu0 %1728
    %v1730 = vcvt.f32.s32 %v1729
    %v1731 = vcvt.f32.s32 %v1725
    %v1732 = vshll.u32 %v1731, 16
    %v1733 = vadd.s32 %v1732, %v1730
    %v1734 = vand.u32 %v1704, 65535
    %v1735 = vshra.s32 %v1704, 16
    %v1736 = vcvt.s32.f32 %v1734
    %v1737 = vcvt.s32.f32 %v1735
    %1738 = vmin.xlane.f32.xlu0 %v1737
    %v1739 = vpop.xlane.xlu0 %1738
    %vm1740 = vcmp.eq.f32.partialorder %v1737, %v1739
    %v1741 = vsel %vm1740, %v1736, inf
    %1742 = vmin.xlane.f32.xlu0 %v1741
    %v1743 = vpop.xlane.xlu0 %1742
    %v1744 = vcvt.f32.s32 %v1743
    %v1745 = vcvt.f32.s32 %v1739
    %v1746 = vshll.u32 %v1745, 16
    %v1747 = vadd.s32 %v1746, %v1744
    %v1748 = vand.u32 %v1705, 65535
    %v1749 = vshra.s32 %v1705, 16
    %v1750 = vcvt.s32.f32 %v1748
    %v1751 = vcvt.s32.f32 %v1749
    %1752 = vmin.xlane.f32.xlu0 %v1751
    %v1753 = vpop.xlane.xlu0 %1752
    %vm1754 = vcmp.eq.f32.partialorder %v1751, %v1753
    %v1755 = vsel %vm1754, %v1750, inf
    %1756 = vmin.xlane.f32.xlu0 %v1755
    %v1757 = vpop.xlane.xlu0 %1756
    %v1758 = vcvt.f32.s32 %v1757
    %v1759 = vcvt.f32.s32 %v1753
    %v1760 = vshll.u32 %v1759, 16
    %v1761 = vadd.s32 %v1760, %v1758
    %vm1762 = vcmp.eq.s32.totalorder %v472, %v1719
    %vm1763 = vcmp.eq.s32.totalorder %v472, %v1733
    %vm1764 = vcmp.eq.s32.totalorder %v472, %v1747
    %vm1765 = vcmp.eq.s32.totalorder %v472, %v1761
    %v1766 = vsel %vm1762, 1, 0
    %v1767 = vsel %vm1763, 1, 0
    %v1768 = vsel %vm1764, 1, 0
    %v1769 = vsel %vm1765, 1, 0
    %v1770 = vcvt.s32.f32 %v1766
    %v1771 = vcvt.s32.f32 %v1767
    %v1772 = vcvt.s32.f32 %v1768
    %v1773 = vcvt.s32.f32 %v1769
    %v1774 = vmul.f32 %v1770, %v1442
    %v1775 = vmul.f32 %v1771, %v1443
    %v1776 = vmul.f32 %v1772, %v1444
    %v1777 = vmul.f32 %v1773, %v1445
    %vm1778 = vcmp.gt.f32.partialorder %v1774, 0.0
    %vm1779 = vcmp.gt.f32.partialorder %v1775, 0.0
    %vm1780 = vcmp.gt.f32.partialorder %v1776, 0.0
    %vm1781 = vcmp.gt.f32.partialorder %v1777, 0.0
    %v1782 = vsel %vm1778, 1.0, 0.0
    %v1783 = vsel %vm1779, 1.0, 0.0
    %v1784 = vsel %vm1780, 1.0, 0.0
    %v1785 = vsel %vm1781, 1.0, 0.0
    %v1786 = vmul.f32 %v1782, 0.5
    %v1787 = vmul.f32 %v1783, 0.5
    %v1788 = vmul.f32 %v1784, 0.5
    %v1789 = vmul.f32 %v1785, 0.5
    %v1790 = vsub.f32 1.0, %v1786
    %v1791 = vsub.f32 1.0, %v1787
    %v1792 = vsub.f32 1.0, %v1788
    %v1793 = vsub.f32 1.0, %v1789
    %v1794 = vmul.f32 %v1786, %v1790
    %v1795 = vmul.f32 %v1787, %v1791
    %v1796 = vmul.f32 %v1788, %v1792
    %v1797 = vmul.f32 %v1789, %v1793
    %v1798 = vmul.f32 %v1794, 2.0
    %v1799 = vmul.f32 %v1795, 2.0
    %v1800 = vmul.f32 %v1796, 2.0
    %v1801 = vmul.f32 %v1797, 2.0
    %v1802 = vsub.f32 %v368, 1.0
    %v1803 = vsub.f32 %v373, 1.0
    %v1804 = vsub.f32 %v378, 1.0
    %v1805 = vsub.f32 %v383, 1.0
    %v1806 = vmul.f32 %v1798, %v1802
    %v1807 = vmul.f32 %v1799, %v1803
    %v1808 = vmul.f32 %v1800, %v1804
    %v1809 = vmul.f32 %v1801, %v1805
    %v1810 = vadd.f32 %v1806, 1.0
    %v1811 = vadd.f32 %v1807, 1.0
    %v1812 = vadd.f32 %v1808, 1.0
    %v1813 = vadd.f32 %v1809, 1.0
    %v1814 = vmax.f32 %v1810, 1e-24
    %v1815 = vmax.f32 %v1811, 1e-24
    %v1816 = vmax.f32 %v1812, 1e-24
    %v1817 = vmax.f32 %v1813, 1e-24
    %v1818 = vrsqrt.pop %v1814
    %v1819 = vrsqrt.pop %v1815
    %v1820 = vrsqrt.pop %v1816
    %v1821 = vrsqrt.pop %v1817
    %v1822 = vld [vmem:[#allocation15] sm:$0xff]
    %v1823 = vld [vmem:[#allocation15 + $0x8] sm:$0xff]
    %v1824 = vld [vmem:[#allocation15 + $0x10] sm:$0xff]
    %v1825 = vld [vmem:[#allocation15 + $0x18] sm:$0xff]
    %v1826 = vld [vmem:[#allocation15 + $0x20] sm:$0xff]
    %v1827 = vld [vmem:[#allocation15 + $0x28] sm:$0xff]
    %v1828 = vld [vmem:[#allocation15 + $0x30] sm:$0xff]
    %v1829 = vld [vmem:[#allocation15 + $0x38] sm:$0xff]
    %v1830 = vld [vmem:[#allocation15 + $0x40] sm:$0xff]
    %v1831 = vld [vmem:[#allocation15 + $0x48] sm:$0xff]
    %v1832 = vld [vmem:[#allocation15 + $0x50] sm:$0xff]
    %v1833 = vld [vmem:[#allocation15 + $0x58] sm:$0xff]
    %v1834 = vld [vmem:[#allocation15 + $0x60] sm:$0xff]
    %v1835 = vld [vmem:[#allocation15 + $0x68] sm:$0xff]
    %v1836 = vld [vmem:[#allocation15 + $0x70] sm:$0xff]
    %v1837 = vld [vmem:[#allocation15 + $0x78] sm:$0xff]
    %v1838 = vmul.f32 %v1790, %v1818
    %v1839 = vmul.f32 %v1791, %v1819
    %v1840 = vmul.f32 %v1792, %v1820
    %v1841 = vmul.f32 %v1793, %v1821
    %1842 = vxpose.xlu0.b32.start [1/16] %v1838, 128
    %1843 = vxpose.xlu0.b32.cont [2/16] %v1839, 128
    %1844 = vxpose.xlu0.b32.cont [3/16] %v1840, 128
    %1845 = vxpose.xlu0.b32.cont [4/16] %v1841, 128
    %1846 = vxpose.xlu0.b32.cont [5/16] 0.0, 128
    %1847 = vxpose.xlu0.b32.cont [6/16] 0.0, 128
    %1848 = vxpose.xlu0.b32.cont [7/16] 0.0, 128
    %1849 = vxpose.xlu0.b32.cont [8/16] 0.0, 128
    %1850 = vxpose.xlu0.b32.cont [9/16] 0.0, 128
    %1851 = vxpose.xlu0.b32.cont [10/16] 0.0, 128
    %1852 = vxpose.xlu0.b32.cont [11/16] 0.0, 128
    %1853 = vxpose.xlu0.b32.cont [12/16] 0.0, 128
    %1854 = vxpose.xlu0.b32.cont [13/16] 0.0, 128
    %1855 = vxpose.xlu0.b32.cont [14/16] 0.0, 128
    %1856 = vxpose.xlu0.b32.cont [15/16] 0.0, 128
    %1857 = vxpose.xlu0.b32.end [16/16] 0.0, 128
    %v1858 = vpop.trf.xlu0
    %v1859 = vpop.trf.xlu0
    %v1860 = vpop.trf.xlu0
    %v1861 = vpop.trf.xlu0
    %v1862 = vpop.trf.xlu0
    %v1863 = vpop.trf.xlu0
    %v1864 = vpop.trf.xlu0
    %v1865 = vpop.trf.xlu0
    %v1866 = vpop.trf.xlu0
    %v1867 = vpop.trf.xlu0
    %v1868 = vpop.trf.xlu0
    %v1869 = vpop.trf.xlu0
    %v1870 = vpop.trf.xlu0
    %v1871 = vpop.trf.xlu0
    %v1872 = vpop.trf.xlu0
    %v1873 = vpop.trf.xlu0
    %v1875 = vsel %vm855, %v1858, 0
    %v1878 = vsel %vm855, %v1859, 0
    %v1881 = vsel %vm855, %v1860, 0
    %v1884 = vsel %vm855, %v1861, 0
    %v1887 = vsel %vm855, %v1862, 0
    %v1890 = vsel %vm855, %v1863, 0
    %v1893 = vsel %vm855, %v1864, 0
    %v1896 = vsel %vm855, %v1865, 0
    %v1899 = vsel %vm855, %v1866, 0
    %v1902 = vsel %vm855, %v1867, 0
    %v1905 = vsel %vm855, %v1868, 0
    %v1908 = vsel %vm855, %v1869, 0
    %v1911 = vsel %vm855, %v1870, 0
    %v1914 = vsel %vm855, %v1871, 0
    %v1917 = vsel %vm855, %v1872, 0
    %v1920 = vsel %vm855, %v1873, 0
    %1922 = vmatprep.subr.mxu0 0.0
    %1923 = vmatpush1.msra.mxu0 1.0
    %1924 = vmatprep.subr.mxu0 0.0
    %1925 = vmatpush1.msra.mxu0 1.0
    %1926 = vmatprep.subr.mxu0 0.0
    %1927 = vmatpush1.msra.mxu0 1.0
    %1928 = vmatprep.subr.mxu0 0.0
    %1929 = vmatpush1.msra.mxu0 1.0
    %1930 = vmatprep.subr.mxu0 0.0
    %1931 = vmatpush1.msra.mxu0 0.0
    %1932 = vmatprep.subr.mxu0 0.0
    %1933 = vmatpush1.msra.mxu0 0.0
    %1934 = vmatprep.subr.mxu0 0.0
    %1935 = vmatpush1.msra.mxu0 0.0
    %1936 = vmatprep.subr.mxu0 0.0
    %1937 = vmatpush1.msra.mxu0 0.0
    %1938 = vmatprep.subr.mxu0 0.0
    %1939 = vmatpush1.msra.mxu0 0.0
    %1940 = vmatprep.subr.mxu0 0.0
    %1941 = vmatpush1.msra.mxu0 0.0
    %1942 = vmatprep.subr.mxu0 0.0
    %1943 = vmatpush1.msra.mxu0 0.0
    %1944 = vmatprep.subr.mxu0 0.0
    %1945 = vmatpush1.msra.mxu0 0.0
    %1946 = vmatprep.subr.mxu0 0.0
    %1947 = vmatpush1.msra.mxu0 0.0
    %1948 = vmatprep.subr.mxu0 0.0
    %1949 = vmatpush1.msra.mxu0 0.0
    %1950 = vmatprep.subr.mxu0 0.0
    %1951 = vmatpush1.msra.mxu0 0.0
    %1952 = vmatprep.subr.mxu0 0.0
    %1953 = vmatpush1.msra.mxu0 0.0
    %1954 = vmatprep.subr.mxu0 0.0
    %1955 = vmatpush1.msra.mxu0 0.0
    %1956 = vmatprep.subr.mxu0 0.0
    %1957 = vmatpush1.msra.mxu0 0.0
    %1958 = vmatprep.subr.mxu0 0.0
    %1959 = vmatpush1.msra.mxu0 0.0
    %1960 = vmatprep.subr.mxu0 0.0
    %1961 = vmatpush1.msra.mxu0 0.0
    %1962 = vmatprep.subr.mxu0 0.0
    %1963 = vmatpush1.msra.mxu0 0.0
    %1964 = vmatprep.subr.mxu0 0.0
    %1965 = vmatpush1.msra.mxu0 0.0
    %1966 = vmatprep.subr.mxu0 0.0
    %1967 = vmatpush1.msra.mxu0 0.0
    %1968 = vmatprep.subr.mxu0 0.0
    %1969 = vmatpush1.msra.mxu0 0.0
    %1970 = vmatprep.subr.mxu0 0.0
    %1971 = vmatpush1.msra.mxu0 0.0
    %1972 = vmatprep.subr.mxu0 0.0
    %1973 = vmatpush1.msra.mxu0 0.0
    %1974 = vmatprep.subr.mxu0 0.0
    %1975 = vmatpush1.msra.mxu0 0.0
    %1976 = vmatprep.subr.mxu0 0.0
    %1977 = vmatpush1.msra.mxu0 0.0
    %1978 = vmatprep.subr.mxu0 0.0
    %1979 = vmatpush1.msra.mxu0 0.0
    %1980 = vmatprep.subr.mxu0 0.0
    %1981 = vmatpush1.msra.mxu0 0.0
    %1982 = vmatprep.subr.mxu0 0.0
    %1983 = vmatpush1.msra.mxu0 0.0
    %1984 = vmatprep.subr.mxu0 0.0
    %1985 = vmatpush1.msra.mxu0 0.0
    %1986 = vmatprep.mubr.f32.mxu0 0.0
    %1987 = vmatmul.mubr.f32.gmra.mrb[0].mxu0 %v1875
    %v1988 = vpop.f32.mrb[0].mxu0
    %v1989 = vadd.f32 0.0, %v1988
    %v1990 = vpop.f32.mrb[0].mxu0
    %1991 = vmatprep.mubr.f32.mxu0 0.0
    %1992 = vmatmul.mubr.f32.gmra.mrb[0].mxu0 %v1878
    %v1993 = vpop.f32.mrb[0].mxu0
    %v1994 = vadd.f32 0.0, %v1993
    %v1995 = vpop.f32.mrb[0].mxu0
    %1996 = vmatprep.mubr.f32.mxu0 0.0
    %1997 = vmatmul.mubr.f32.gmra.mrb[0].mxu0 %v1881
    %v1998 = vpop.f32.mrb[0].mxu0
    %v1999 = vadd.f32 0.0, %v1998
    %v2000 = vpop.f32.mrb[0].mxu0
    %2001 = vmatprep.mubr.f32.mxu0 0.0
    %2002 = vmatmul.mubr.f32.gmra.mrb[0].mxu0 %v1884
    %v2003 = vpop.f32.mrb[0].mxu0
    %v2004 = vadd.f32 0.0, %v2003
    %v2005 = vpop.f32.mrb[0].mxu0
    %2006 = vmatprep.mubr.f32.mxu0 0.0
    %2007 = vmatmul.mubr.f32.gmra.mrb[0].mxu0 %v1887
    %v2008 = vpop.f32.mrb[0].mxu0
    %v2009 = vadd.f32 0.0, %v2008
    %v2010 = vpop.f32.mrb[0].mxu0
    %2011 = vmatprep.mubr.f32.mxu0 0.0
    %2012 = vmatmul.mubr.f32.gmra.mrb[0].mxu0 %v1890
    %v2013 = vpop.f32.mrb[0].mxu0
    %v2014 = vadd.f32 0.0, %v2013
    %v2015 = vpop.f32.mrb[0].mxu0
    %2016 = vmatprep.mubr.f32.mxu0 0.0
    %2017 = vmatmul.mubr.f32.gmra.mrb[0].mxu0 %v1893
    %v2018 = vpop.f32.mrb[0].mxu0
    %v2019 = vadd.f32 0.0, %v2018
    %v2020 = vpop.f32.mrb[0].mxu0
    %2021 = vmatprep.mubr.f32.mxu0 0.0
    %2022 = vmatmul.mubr.f32.gmra.mrb[0].mxu0 %v1896
    %v2023 = vpop.f32.mrb[0].mxu0
    %v2024 = vadd.f32 0.0, %v2023
    %v2025 = vpop.f32.mrb[0].mxu0
    %2026 = vmatprep.mubr.f32.mxu0 0.0
    %2027 = vmatmul.mubr.f32.gmra.mrb[0].mxu0 %v1899
    %v2028 = vpop.f32.mrb[0].mxu0
    %v2029 = vadd.f32 0.0, %v2028
    %v2030 = vpop.f32.mrb[0].mxu0
    %2031 = vmatprep.mubr.f32.mxu0 0.0
    %2032 = vmatmul.mubr.f32.gmra.mrb[0].mxu0 %v1902
    %v2033 = vpop.f32.mrb[0].mxu0
    %v2034 = vadd.f32 0.0, %v2033
    %v2035 = vpop.f32.mrb[0].mxu0
    %2036 = vmatprep.mubr.f32.mxu0 0.0
    %2037 = vmatmul.mubr.f32.gmra.mrb[0].mxu0 %v1905
    %v2038 = vpop.f32.mrb[0].mxu0
    %v2039 = vadd.f32 0.0, %v2038
    %v2040 = vpop.f32.mrb[0].mxu0
    %2041 = vmatprep.mubr.f32.mxu0 0.0
    %2042 = vmatmul.mubr.f32.gmra.mrb[0].mxu0 %v1908
    %v2043 = vpop.f32.mrb[0].mxu0
    %v2044 = vadd.f32 0.0, %v2043
    %v2045 = vpop.f32.mrb[0].mxu0
    %2046 = vmatprep.mubr.f32.mxu0 0.0
    %2047 = vmatmul.mubr.f32.gmra.mrb[0].mxu0 %v1911
    %v2048 = vpop.f32.mrb[0].mxu0
    %v2049 = vadd.f32 0.0, %v2048
    %v2050 = vpop.f32.mrb[0].mxu0
    %2051 = vmatprep.mubr.f32.mxu0 0.0
    %2052 = vmatmul.mubr.f32.gmra.mrb[0].mxu0 %v1914
    %v2053 = vpop.f32.mrb[0].mxu0
    %v2054 = vadd.f32 0.0, %v2053
    %v2055 = vpop.f32.mrb[0].mxu0
    %2056 = vmatprep.mubr.f32.mxu0 0.0
    %2057 = vmatmul.mubr.f32.gmra.mrb[0].mxu0 %v1917
    %v2058 = vpop.f32.mrb[0].mxu0
    %v2059 = vadd.f32 0.0, %v2058
    %v2060 = vpop.f32.mrb[0].mxu0
    %2061 = vmatprep.mubr.f32.mxu0 0.0
    %2062 = vmatmul.mubr.f32.gmra.mrb[0].mxu0 %v1920
    %v2063 = vpop.f32.mrb[0].mxu0
    %v2064 = vadd.f32 0.0, %v2063
    %v2065 = vpop.f32.mrb[0].mxu0
    %2066 = vdwg.mxu0
    %2068 = vset.pattern.permute.xlu0 0
    %2069 = vperm.xlu0 %2068, %v1989
    %v2070 = vpop.permute.xlu0 %2069
    %2073 = vset.pattern.permute.xlu0 0
    %2074 = vperm.xlu0 %2073, %v1994
    %v2075 = vpop.permute.xlu0 %2074
    %2078 = vset.pattern.permute.xlu0 0
    %2079 = vperm.xlu0 %2078, %v1999
    %v2080 = vpop.permute.xlu0 %2079
    %2083 = vset.pattern.permute.xlu0 0
    %2084 = vperm.xlu0 %2083, %v2004
    %v2085 = vpop.permute.xlu0 %2084
    %2088 = vset.pattern.permute.xlu0 0
    %2089 = vperm.xlu0 %2088, %v2009
    %v2090 = vpop.permute.xlu0 %2089
    %2093 = vset.pattern.permute.xlu0 0
    %2094 = vperm.xlu0 %2093, %v2014
    %v2095 = vpop.permute.xlu0 %2094
    %2098 = vset.pattern.permute.xlu0 0
    %2099 = vperm.xlu0 %2098, %v2019
    %v2100 = vpop.permute.xlu0 %2099
    %2103 = vset.pattern.permute.xlu0 0
    %2104 = vperm.xlu0 %2103, %v2024
    %v2105 = vpop.permute.xlu0 %2104
    %2108 = vset.pattern.permute.xlu0 0
    %2109 = vperm.xlu0 %2108, %v2029
    %v2110 = vpop.permute.xlu0 %2109
    %2113 = vset.pattern.permute.xlu0 0
    %2114 = vperm.xlu0 %2113, %v2034
    %v2115 = vpop.permute.xlu0 %2114
    %2118 = vset.pattern.permute.xlu0 0
    %2119 = vperm.xlu0 %2118, %v2039
    %v2120 = vpop.permute.xlu0 %2119
    %2123 = vset.pattern.permute.xlu0 0
    %2124 = vperm.xlu0 %2123, %v2044
    %v2125 = vpop.permute.xlu0 %2124
    %2128 = vset.pattern.permute.xlu0 0
    %2129 = vperm.xlu0 %2128, %v2049
    %v2130 = vpop.permute.xlu0 %2129
    %2133 = vset.pattern.permute.xlu0 0
    %2134 = vperm.xlu0 %2133, %v2054
    %v2135 = vpop.permute.xlu0 %2134
    %2138 = vset.pattern.permute.xlu0 0
    %2139 = vperm.xlu0 %2138, %v2059
    %v2140 = vpop.permute.xlu0 %2139
    %2143 = vset.pattern.permute.xlu0 0
    %2144 = vperm.xlu0 %2143, %v2064
    %v2145 = vpop.permute.xlu0 %2144
    %v2147 = vmul.f32 %v2070, %v153
    %v2148 = vmul.f32 %v2075, %v154
    %v2149 = vmul.f32 %v2080, %v155
    %v2150 = vmul.f32 %v2085, %v156
    %v2151 = vmul.f32 %v2090, %v157
    %v2152 = vmul.f32 %v2095, %v158
    %v2153 = vmul.f32 %v2100, %v159
    %v2154 = vmul.f32 %v2105, %v160
    %v2155 = vmul.f32 %v2110, %v161
    %v2156 = vmul.f32 %v2115, %v162
    %v2157 = vmul.f32 %v2120, %v163
    %v2158 = vmul.f32 %v2125, %v164
    %v2159 = vmul.f32 %v2130, %v165
    %v2160 = vmul.f32 %v2135, %v166
    %v2161 = vmul.f32 %v2140, %v167
    %v2162 = vmul.f32 %v2145, %v168
    %v2163 = vmul.f32 %v1786, %v1818
    %v2164 = vmul.f32 %v1787, %v1819
    %v2165 = vmul.f32 %v1788, %v1820
    %v2166 = vmul.f32 %v1789, %v1821
    %2167 = vxpose.xlu0.b32.start [1/16] %v2163, 128
    %2168 = vxpose.xlu0.b32.cont [2/16] %v2164, 128
    %2169 = vxpose.xlu0.b32.cont [3/16] %v2165, 128
    %2170 = vxpose.xlu0.b32.cont [4/16] %v2166, 128
    %2171 = vxpose.xlu0.b32.cont [5/16] 0.0, 128
    %2172 = vxpose.xlu0.b32.cont [6/16] 0.0, 128
    %2173 = vxpose.xlu0.b32.cont [7/16] 0.0, 128
    %2174 = vxpose.xlu0.b32.cont [8/16] 0.0, 128
    %2175 = vxpose.xlu0.b32.cont [9/16] 0.0, 128
    %2176 = vxpose.xlu0.b32.cont [10/16] 0.0, 128
    %2177 = vxpose.xlu0.b32.cont [11/16] 0.0, 128
    %2178 = vxpose.xlu0.b32.cont [12/16] 0.0, 128
    %2179 = vxpose.xlu0.b32.cont [13/16] 0.0, 128
    %2180 = vxpose.xlu0.b32.cont [14/16] 0.0, 128
    %2181 = vxpose.xlu0.b32.cont [15/16] 0.0, 128
    %2182 = vxpose.xlu0.b32.end [16/16] 0.0, 128
    %v2183 = vpop.trf.xlu0
    %v2184 = vpop.trf.xlu0
    %v2185 = vpop.trf.xlu0
    %v2186 = vpop.trf.xlu0
    %v2187 = vpop.trf.xlu0
    %v2188 = vpop.trf.xlu0
    %v2189 = vpop.trf.xlu0
    %v2190 = vpop.trf.xlu0
    %v2191 = vpop.trf.xlu0
    %v2192 = vpop.trf.xlu0
    %v2193 = vpop.trf.xlu0
    %v2194 = vpop.trf.xlu0
    %v2195 = vpop.trf.xlu0
    %v2196 = vpop.trf.xlu0
    %v2197 = vpop.trf.xlu0
    %v2198 = vpop.trf.xlu0
    %v2200 = vsel %vm855, %v2183, 0
    %v2203 = vsel %vm855, %v2184, 0
    %v2206 = vsel %vm855, %v2185, 0
    %v2209 = vsel %vm855, %v2186, 0
    %v2212 = vsel %vm855, %v2187, 0
    %v2215 = vsel %vm855, %v2188, 0
    %v2218 = vsel %vm855, %v2189, 0
    %v2221 = vsel %vm855, %v2190, 0
    %v2224 = vsel %vm855, %v2191, 0
    %v2227 = vsel %vm855, %v2192, 0
    %v2230 = vsel %vm855, %v2193, 0
    %v2233 = vsel %vm855, %v2194, 0
    %v2236 = vsel %vm855, %v2195, 0
    %v2239 = vsel %vm855, %v2196, 0
    %v2242 = vsel %vm855, %v2197, 0
    %v2245 = vsel %vm855, %v2198, 0
    %2247 = vmatprep.subr.mxu0 0.0
    %2248 = vmatpush1.msra.mxu0 %v234
    %2249 = vmatprep.subr.mxu0 0.0
    %2250 = vmatpush1.msra.mxu0 %v236
    %2251 = vmatprep.subr.mxu0 0.0
    %2252 = vmatpush1.msra.mxu0 %v238
    %2253 = vmatprep.subr.mxu0 0.0
    %2254 = vmatpush1.msra.mxu0 %v240
    %2255 = vmatprep.subr.mxu0 0.0
    %2256 = vmatpush1.msra.mxu0 0.0
    %2257 = vmatprep.subr.mxu0 0.0
    %2258 = vmatpush1.msra.mxu0 0.0
    %2259 = vmatprep.subr.mxu0 0.0
    %2260 = vmatpush1.msra.mxu0 0.0
    %2261 = vmatprep.subr.mxu0 0.0
    %2262 = vmatpush1.msra.mxu0 0.0
    %2263 = vmatprep.subr.mxu0 0.0
    %2264 = vmatpush1.msra.mxu0 0.0
    %2265 = vmatprep.subr.mxu0 0.0
    %2266 = vmatpush1.msra.mxu0 0.0
    %2267 = vmatprep.subr.mxu0 0.0
    %2268 = vmatpush1.msra.mxu0 0.0
    %2269 = vmatprep.subr.mxu0 0.0
    %2270 = vmatpush1.msra.mxu0 0.0
    %2271 = vmatprep.subr.mxu0 0.0
    %2272 = vmatpush1.msra.mxu0 0.0
    %2273 = vmatprep.subr.mxu0 0.0
    %2274 = vmatpush1.msra.mxu0 0.0
    %2275 = vmatprep.subr.mxu0 0.0
    %2276 = vmatpush1.msra.mxu0 0.0
    %2277 = vmatprep.subr.mxu0 0.0
    %2278 = vmatpush1.msra.mxu0 0.0
    %2279 = vmatprep.subr.mxu0 0.0
    %2280 = vmatpush1.msra.mxu0 0.0
    %2281 = vmatprep.subr.mxu0 0.0
    %2282 = vmatpush1.msra.mxu0 0.0
    %2283 = vmatprep.subr.mxu0 0.0
    %2284 = vmatpush1.msra.mxu0 0.0
    %2285 = vmatprep.subr.mxu0 0.0
    %2286 = vmatpush1.msra.mxu0 0.0
    %2287 = vmatprep.subr.mxu0 0.0
    %2288 = vmatpush1.msra.mxu0 0.0
    %2289 = vmatprep.subr.mxu0 0.0
    %2290 = vmatpush1.msra.mxu0 0.0
    %2291 = vmatprep.subr.mxu0 0.0
    %2292 = vmatpush1.msra.mxu0 0.0
    %2293 = vmatprep.subr.mxu0 0.0
    %2294 = vmatpush1.msra.mxu0 0.0
    %2295 = vmatprep.subr.mxu0 0.0
    %2296 = vmatpush1.msra.mxu0 0.0
    %2297 = vmatprep.subr.mxu0 0.0
    %2298 = vmatpush1.msra.mxu0 0.0
    %2299 = vmatprep.subr.mxu0 0.0
    %2300 = vmatpush1.msra.mxu0 0.0
    %2301 = vmatprep.subr.mxu0 0.0
    %2302 = vmatpush1.msra.mxu0 0.0
    %2303 = vmatprep.subr.mxu0 0.0
    %2304 = vmatpush1.msra.mxu0 0.0
    %2305 = vmatprep.subr.mxu0 0.0
    %2306 = vmatpush1.msra.mxu0 0.0
    %2307 = vmatprep.subr.mxu0 0.0
    %2308 = vmatpush1.msra.mxu0 0.0
    %2309 = vmatprep.subr.mxu0 0.0
    %2310 = vmatpush1.msra.mxu0 0.0
    %2311 = vmatprep.mubr.f32.mxu0 0.0
    %2312 = vmatmul.mubr.f32.gmra.mrb[0].mxu0 %v2200
    %v2313 = vpop.f32.mrb[0].mxu0
    %v2314 = vadd.f32 0.0, %v2313
    %v2315 = vpop.f32.mrb[0].mxu0
    %2316 = vmatprep.mubr.f32.mxu0 0.0
    %2317 = vmatmul.mubr.f32.gmra.mrb[0].mxu0 %v2203
    %v2318 = vpop.f32.mrb[0].mxu0
    %v2319 = vadd.f32 0.0, %v2318
    %v2320 = vpop.f32.mrb[0].mxu0
    %2321 = vmatprep.mubr.f32.mxu0 0.0
    %2322 = vmatmul.mubr.f32.gmra.mrb[0].mxu0 %v2206
    %v2323 = vpop.f32.mrb[0].mxu0
    %v2324 = vadd.f32 0.0, %v2323
    %v2325 = vpop.f32.mrb[0].mxu0
    %2326 = vmatprep.mubr.f32.mxu0 0.0
    %2327 = vmatmul.mubr.f32.gmra.mrb[0].mxu0 %v2209
    %v2328 = vpop.f32.mrb[0].mxu0
    %v2329 = vadd.f32 0.0, %v2328
    %v2330 = vpop.f32.mrb[0].mxu0
    %2331 = vmatprep.mubr.f32.mxu0 0.0
    %2332 = vmatmul.mubr.f32.gmra.mrb[0].mxu0 %v2212
    %v2333 = vpop.f32.mrb[0].mxu0
    %v2334 = vadd.f32 0.0, %v2333
    %v2335 = vpop.f32.mrb[0].mxu0
    %2336 = vmatprep.mubr.f32.mxu0 0.0
    %2337 = vmatmul.mubr.f32.gmra.mrb[0].mxu0 %v2215
    %v2338 = vpop.f32.mrb[0].mxu0
    %v2339 = vadd.f32 0.0, %v2338
    %v2340 = vpop.f32.mrb[0].mxu0
    %2341 = vmatprep.mubr.f32.mxu0 0.0
    %2342 = vmatmul.mubr.f32.gmra.mrb[0].mxu0 %v2218
    %v2343 = vpop.f32.mrb[0].mxu0
    %v2344 = vadd.f32 0.0, %v2343
    %v2345 = vpop.f32.mrb[0].mxu0
    %2346 = vmatprep.mubr.f32.mxu0 0.0
    %2347 = vmatmul.mubr.f32.gmra.mrb[0].mxu0 %v2221
    %v2348 = vpop.f32.mrb[0].mxu0
    %v2349 = vadd.f32 0.0, %v2348
    %v2350 = vpop.f32.mrb[0].mxu0
    %2351 = vmatprep.mubr.f32.mxu0 0.0
    %2352 = vmatmul.mubr.f32.gmra.mrb[0].mxu0 %v2224
    %v2353 = vpop.f32.mrb[0].mxu0
    %v2354 = vadd.f32 0.0, %v2353
    %v2355 = vpop.f32.mrb[0].mxu0
    %2356 = vmatprep.mubr.f32.mxu0 0.0
    %2357 = vmatmul.mubr.f32.gmra.mrb[0].mxu0 %v2227
    %v2358 = vpop.f32.mrb[0].mxu0
    %v2359 = vadd.f32 0.0, %v2358
    %v2360 = vpop.f32.mrb[0].mxu0
    %2361 = vmatprep.mubr.f32.mxu0 0.0
    %2362 = vmatmul.mubr.f32.gmra.mrb[0].mxu0 %v2230
    %v2363 = vpop.f32.mrb[0].mxu0
    %v2364 = vadd.f32 0.0, %v2363
    %v2365 = vpop.f32.mrb[0].mxu0
    %2366 = vmatprep.mubr.f32.mxu0 0.0
    %2367 = vmatmul.mubr.f32.gmra.mrb[0].mxu0 %v2233
    %v2368 = vpop.f32.mrb[0].mxu0
    %v2369 = vadd.f32 0.0, %v2368
    %v2370 = vpop.f32.mrb[0].mxu0
    %2371 = vmatprep.mubr.f32.mxu0 0.0
    %2372 = vmatmul.mubr.f32.gmra.mrb[0].mxu0 %v2236
    %v2373 = vpop.f32.mrb[0].mxu0
    %v2374 = vadd.f32 0.0, %v2373
    %v2375 = vpop.f32.mrb[0].mxu0
    %2376 = vmatprep.mubr.f32.mxu0 0.0
    %2377 = vmatmul.mubr.f32.gmra.mrb[0].mxu0 %v2239
    %v2378 = vpop.f32.mrb[0].mxu0
    %v2379 = vadd.f32 0.0, %v2378
    %v2380 = vpop.f32.mrb[0].mxu0
    %2381 = vmatprep.mubr.f32.mxu0 0.0
    %2382 = vmatmul.mubr.f32.gmra.mrb[0].mxu0 %v2242
    %v2383 = vpop.f32.mrb[0].mxu0
    %v2384 = vadd.f32 0.0, %v2383
    %v2385 = vpop.f32.mrb[0].mxu0
    %2386 = vmatprep.mubr.f32.mxu0 0.0
    %2387 = vmatmul.mubr.f32.gmra.mrb[0].mxu0 %v2245
    %v2388 = vpop.f32.mrb[0].mxu0
    %v2389 = vadd.f32 0.0, %v2388
    %v2390 = vpop.f32.mrb[0].mxu0
    %2391 = vdwg.mxu0
    %v2392 = vadd.f32 %v2147, %v2314
    %v2393 = vadd.f32 %v2148, %v2319
    %v2394 = vadd.f32 %v2149, %v2324
    %v2395 = vadd.f32 %v2150, %v2329
    %v2396 = vadd.f32 %v2151, %v2334
    %v2397 = vadd.f32 %v2152, %v2339
    %v2398 = vadd.f32 %v2153, %v2344
    %v2399 = vadd.f32 %v2154, %v2349
    %v2400 = vadd.f32 %v2155, %v2354
    %v2401 = vadd.f32 %v2156, %v2359
    %v2402 = vadd.f32 %v2157, %v2364
    %v2403 = vadd.f32 %v2158, %v2369
    %v2404 = vadd.f32 %v2159, %v2374
    %v2405 = vadd.f32 %v2160, %v2379
    %v2406 = vadd.f32 %v2161, %v2384
    %v2407 = vadd.f32 %v2162, %v2389
    %v2408 = vadd.f32 %v1822, %v2392
    %v2409 = vadd.f32 %v1823, %v2393
    %v2410 = vadd.f32 %v1824, %v2394
    %v2411 = vadd.f32 %v1825, %v2395
    %v2412 = vadd.f32 %v1826, %v2396
    %v2413 = vadd.f32 %v1827, %v2397
    %v2414 = vadd.f32 %v1828, %v2398
    %v2415 = vadd.f32 %v1829, %v2399
    %v2416 = vadd.f32 %v1830, %v2400
    %v2417 = vadd.f32 %v1831, %v2401
    %v2418 = vadd.f32 %v1832, %v2402
    %v2419 = vadd.f32 %v1833, %v2403
    %v2420 = vadd.f32 %v1834, %v2404
    %v2421 = vadd.f32 %v1835, %v2405
    %v2422 = vadd.f32 %v1836, %v2406
    %v2423 = vadd.f32 %v1837, %v2407
    %2424 = vst [vmem:[#allocation15] sm:$0xff] %v2408
    %2425 = vst [vmem:[#allocation15 + $0x8] sm:$0xff] %v2409
    %2426 = vst [vmem:[#allocation15 + $0x10] sm:$0xff] %v2410
    %2427 = vst [vmem:[#allocation15 + $0x18] sm:$0xff] %v2411
    %2428 = vst [vmem:[#allocation15 + $0x20] sm:$0xff] %v2412
    %2429 = vst [vmem:[#allocation15 + $0x28] sm:$0xff] %v2413
    %2430 = vst [vmem:[#allocation15 + $0x30] sm:$0xff] %v2414
    %2431 = vst [vmem:[#allocation15 + $0x38] sm:$0xff] %v2415
    %2432 = vst [vmem:[#allocation15 + $0x40] sm:$0xff] %v2416
    %2433 = vst [vmem:[#allocation15 + $0x48] sm:$0xff] %v2417
    %2434 = vst [vmem:[#allocation15 + $0x50] sm:$0xff] %v2418
    %2435 = vst [vmem:[#allocation15 + $0x58] sm:$0xff] %v2419
    %2436 = vst [vmem:[#allocation15 + $0x60] sm:$0xff] %v2420
    %2437 = vst [vmem:[#allocation15 + $0x68] sm:$0xff] %v2421
    %2438 = vst [vmem:[#allocation15 + $0x70] sm:$0xff] %v2422
    %2439 = vst [vmem:[#allocation15 + $0x78] sm:$0xff] %v2423
    %2440 = vmatprep.subr.mxu0 0.0
    %2441 = vmatpush1.msra.mxu0 %v169
    %2442 = vmatprep.subr.mxu0 0.0
    %2443 = vmatpush1.msra.mxu0 %v170
    %2444 = vmatprep.subr.mxu0 0.0
    %2445 = vmatpush1.msra.mxu0 %v171
    %2446 = vmatprep.subr.mxu0 0.0
    %2447 = vmatpush1.msra.mxu0 %v172
    %2448 = vmatprep.subr.mxu0 0.0
    %2449 = vmatpush1.msra.mxu0 %v173
    %2450 = vmatprep.subr.mxu0 0.0
    %2451 = vmatpush1.msra.mxu0 %v174
    %2452 = vmatprep.subr.mxu0 0.0
    %2453 = vmatpush1.msra.mxu0 %v175
    %2454 = vmatprep.subr.mxu0 0.0
    %2455 = vmatpush1.msra.mxu0 %v176
    %2456 = vmatprep.subr.mxu0 0.0
    %2457 = vmatpush1.msra.mxu0 %v177
    %2458 = vmatprep.subr.mxu0 0.0
    %2459 = vmatpush1.msra.mxu0 %v178
    %2460 = vmatprep.subr.mxu0 0.0
    %2461 = vmatpush1.msra.mxu0 %v179
    %2462 = vmatprep.subr.mxu0 0.0
    %2463 = vmatpush1.msra.mxu0 %v180
    %2464 = vmatprep.subr.mxu0 0.0
    %2465 = vmatpush1.msra.mxu0 %v181
    %2466 = vmatprep.subr.mxu0 0.0
    %2467 = vmatpush1.msra.mxu0 %v182
    %2468 = vmatprep.subr.mxu0 0.0
    %2469 = vmatpush1.msra.mxu0 %v183
    %2470 = vmatprep.subr.mxu0 0.0
    %2471 = vmatpush1.msra.mxu0 %v184
    %2472 = vmatprep.subr.mxu0 0.0
    %2473 = vmatpush1.msra.mxu0 0.0
    %2474 = vmatprep.subr.mxu0 0.0
    %2475 = vmatpush1.msra.mxu0 0.0
    %2476 = vmatprep.subr.mxu0 0.0
    %2477 = vmatpush1.msra.mxu0 0.0
    %2478 = vmatprep.subr.mxu0 0.0
    %2479 = vmatpush1.msra.mxu0 0.0
    %2480 = vmatprep.subr.mxu0 0.0
    %2481 = vmatpush1.msra.mxu0 0.0
    %2482 = vmatprep.subr.mxu0 0.0
    %2483 = vmatpush1.msra.mxu0 0.0
    %2484 = vmatprep.subr.mxu0 0.0
    %2485 = vmatpush1.msra.mxu0 0.0
    %2486 = vmatprep.subr.mxu0 0.0
    %2487 = vmatpush1.msra.mxu0 0.0
    %2488 = vmatprep.subr.mxu0 0.0
    %2489 = vmatpush1.msra.mxu0 0.0
    %2490 = vmatprep.subr.mxu0 0.0
    %2491 = vmatpush1.msra.mxu0 0.0
    %2492 = vmatprep.subr.mxu0 0.0
    %2493 = vmatpush1.msra.mxu0 0.0
    %2494 = vmatprep.subr.mxu0 0.0
    %2495 = vmatpush1.msra.mxu0 0.0
    %2496 = vmatprep.subr.mxu0 0.0
    %2497 = vmatpush1.msra.mxu0 0.0
    %2498 = vmatprep.subr.mxu0 0.0
    %2499 = vmatpush1.msra.mxu0 0.0
    %2500 = vmatprep.subr.mxu0 0.0
    %2501 = vmatpush1.msra.mxu0 0.0
    %2502 = vmatprep.subr.mxu0 0.0
    %2503 = vmatpush1.msra.mxu0 0.0
    %2504 = vmatprep.mubr.f32.mxu0 0.0
    %2505 = vmatmul.mubr.f32.gmra.mrb[0].mxu0 %v494
    %v2506 = vpop.f32.mrb[0].mxu0
    %v2507 = vadd.f32 0.0, %v2506
    %v2508 = vpop.f32.mrb[0].mxu0
    %2509 = vmatprep.mubr.f32.mxu0 0.0
    %2510 = vmatmul.mubr.f32.gmra.mrb[0].mxu0 %v495
    %v2511 = vpop.f32.mrb[0].mxu0
    %v2512 = vadd.f32 0.0, %v2511
    %v2513 = vpop.f32.mrb[0].mxu0
    %2514 = vmatprep.mubr.f32.mxu0 0.0
    %2515 = vmatmul.mubr.f32.gmra.mrb[0].mxu0 %v496
    %v2516 = vpop.f32.mrb[0].mxu0
    %v2517 = vadd.f32 0.0, %v2516
    %v2518 = vpop.f32.mrb[0].mxu0
    %2519 = vmatprep.mubr.f32.mxu0 0.0
    %2520 = vmatmul.mubr.f32.gmra.mrb[0].mxu0 %v497
    %v2521 = vpop.f32.mrb[0].mxu0
    %v2522 = vadd.f32 0.0, %v2521
    %v2523 = vpop.f32.mrb[0].mxu0
    %2524 = vdwg.mxu0
    %v2525 = vadd.f32 %v290, %v2507
    %v2526 = vadd.f32 %v292, %v2512
    %v2527 = vadd.f32 %v294, %v2517
    %v2528 = vadd.f32 %v296, %v2522
    %v2529 = vmul.f32 %v2525, %v2525
    %v2530 = vmul.f32 %v2526, %v2526
    %v2531 = vmul.f32 %v2527, %v2527
    %v2532 = vmul.f32 %v2528, %v2528
    %2533 = vadd.xlane.f32.xlu0 %v2529
    %v2534 = vpop.xlane.xlu0 %2533
    %2535 = vadd.xlane.f32.xlu0 %v2530
    %v2536 = vpop.xlane.xlu0 %2535
    %2537 = vadd.xlane.f32.xlu0 %v2531
    %v2538 = vpop.xlane.xlu0 %2537
    %2539 = vadd.xlane.f32.xlu0 %v2532
    %v2540 = vpop.xlane.xlu0 %2539
    %v2541 = vrsqrt.pop %v2534
    %v2542 = vmul.f32 %v2534, %v2541
    %vm2543 = vcmp.eq.f32.partialorder %v2534, inf
    %v2544 = vsel %vm2543, %v2534, %v2542
    %vm2545 = vcmp.eq.f32.partialorder %v2534, 0.0
    %v2546 = vand.u32 %v2534, 2147483648
    %v2547 = vsel %vm2545, %v2546, %v2544
    %v2548 = vrsqrt.pop %v2536
    %v2549 = vmul.f32 %v2536, %v2548
    %vm2550 = vcmp.eq.f32.partialorder %v2536, inf
    %v2551 = vsel %vm2550, %v2536, %v2549
    %vm2552 = vcmp.eq.f32.partialorder %v2536, 0.0
    %v2553 = vand.u32 %v2536, 2147483648
    %v2554 = vsel %vm2552, %v2553, %v2551
    %v2555 = vrsqrt.pop %v2538
    %v2556 = vmul.f32 %v2538, %v2555
    %vm2557 = vcmp.eq.f32.partialorder %v2538, inf
    %v2558 = vsel %vm2557, %v2538, %v2556
    %vm2559 = vcmp.eq.f32.partialorder %v2538, 0.0
    %v2560 = vand.u32 %v2538, 2147483648
    %v2561 = vsel %vm2559, %v2560, %v2558
    %v2562 = vrsqrt.pop %v2540
    %v2563 = vmul.f32 %v2540, %v2562
    %vm2564 = vcmp.eq.f32.partialorder %v2540, inf
    %v2565 = vsel %vm2564, %v2540, %v2563
    %vm2566 = vcmp.eq.f32.partialorder %v2540, 0.0
    %v2567 = vand.u32 %v2540, 2147483648
    %v2568 = vsel %vm2566, %v2567, %v2565
    %v2569 = vmax.f32 %v2547, 1e-12
    %v2570 = vmax.f32 %v2554, 1e-12
    %v2571 = vmax.f32 %v2561, 1e-12
    %v2572 = vmax.f32 %v2568, 1e-12
    %v2573 = vrcp.pop %v2569
    %v2574 = vmul.f32 %v2525, %v2573
    %v2575 = vrcp.pop %v2570
    %v2576 = vmul.f32 %v2526, %v2575
    %v2577 = vrcp.pop %v2571
    %v2578 = vmul.f32 %v2527, %v2577
    %v2579 = vrcp.pop %v2572
    %v2580 = vmul.f32 %v2528, %v2579
    %2581 = vst [vmem:[#allocation13] sm:$0xff] %v2574
    %2582 = vst [vmem:[#allocation13 + $0x8] sm:$0xff] %v2576
    %2583 = vst [vmem:[#allocation13 + $0x10] sm:$0xff] %v2578
    %2584 = vst [vmem:[#allocation13 + $0x18] sm:$0xff] %v2580
    %v2585 = vsub.f32 %v453, %v368
    %v2586 = vsub.f32 %v458, %v373
    %v2587 = vsub.f32 %v463, %v378
    %v2588 = vsub.f32 %v468, %v383
    %v2589 = vld [vmem:[#allocation21] sm:$0x1]
    %v2590 = vmul.f32 %v2585, %v2585
    %v2591 = vmul.f32 %v2586, %v2586
    %v2592 = vmul.f32 %v2587, %v2587
    %v2593 = vmul.f32 %v2588, %v2588
    %v2594 = vadd.f32 %v2590, %v2591
    %v2595 = vadd.f32 %v2594, %v2592
    %v2596 = vadd.f32 %v2595, %v2593
    %2597 = vadd.xlane.f32.xlu0 %v2596
    %v2598 = vpop.xlane.xlu0 %2597
    %v2599 = vrot.slane %v2598, 4
    %v2600 = vadd.f32 %v2598, %v2599
    %v2601 = vrot.slane %v2600, 2
    %v2602 = vadd.f32 %v2600, %v2601
    %v2603 = vrot.slane %v2602, 1
    %v2604 = vadd.f32 %v2602, %v2603
    %s2605 = vtos %v2604
    %v2606 = vstv %s2605
    %v2607 = vadd.f32 %v2589, %v2606
    %2608 = vst.msk [vmem:[#allocation21] sm:$0x1] %vm741, %v2607
    // Predicated region
    $region46: #{tpu_custom_call.1} parent=1 // pred_check
      _
    $region47: #{tpu_custom_call.1} parent=1 // pred_check_branch
      %2610 = sbr.rel (0) target = $region49
    $region48: #{tpu_custom_call.1} parent=1 // pred_region
      %s2611 = sadd.s32 0, 0
      %s2612 = smul.u32 4, %s2611
      %s2614 = ssub.s32 512, 512
      %2615 = vsyncadd [#allocation4], %s2614
      %s2616 = smul.addr %s2612, 128
      %s2617 = scalar_lea.hbm %s5, %s2616
      %s2618 = sshll.u32 [#allocation12], 4
      %s2619 = int_to_ptr.vmem [resolvable:$true] %s2618
      %2624 = dma.vmem_to_hbm [thread:$0]  %s2619, 512, %s2617, [#allocation4], 128, 128, 8
    $region49: #{tpu_custom_call.1} parent=1 // pred_fallthru
      _
    // Predicated region
    $region50: #{tpu_custom_call.1} parent=1 // pred_check
      _
    $region51: #{tpu_custom_call.1} parent=1 // pred_check_branch
      %2626 = sbr.rel (0) target = $region53
    $region52: #{tpu_custom_call.1} parent=1 // pred_region
      %s2627 = sadd.s32 0, 0
      %s2628 = smul.u32 4, %s2627
      %s2630 = ssub.s32 512, 512
      %2631 = vsyncadd [#allocation14], %s2630
      %s2632 = smul.addr %s2628, 128
      %s2633 = scalar_lea.hbm %s6, %s2632
      %s2634 = sshll.u32 [#allocation13], 4
      %s2635 = int_to_ptr.vmem [resolvable:$true] %s2634
      %2640 = dma.vmem_to_hbm [thread:$0]  %s2635, 512, %s2633, [#allocation14], 128, 128, 8
    $region53: #{tpu_custom_call.1} parent=1 // pred_fallthru
      _
    // Predicated region
    $region54: #{tpu_custom_call.1} parent=1 // pred_check
      _
    $region55: #{tpu_custom_call.1} parent=1 // pred_check_branch
      %2642 = sbr.rel (0) target = $region57
    $region56: #{tpu_custom_call.1} parent=1 // pred_region
      %s2644 = ssub.s32 2048, 2048
      %2645 = vsyncadd [#allocation14], %s2644
      %s2646 = sshll.u32 [#allocation15], 4
      %s2647 = int_to_ptr.vmem [resolvable:$true] %s2646
      %2652 = dma.vmem_to_hbm [thread:$0]  %s2647, 2048, %s7, [#allocation14], 128, 128, 8
    $region57: #{tpu_custom_call.1} parent=1 // pred_fallthru
      _
    // Predicated region
    $region58: #{tpu_custom_call.1} parent=1 // pred_check
      _
    $region59: #{tpu_custom_call.1} parent=1 // pred_check_branch
      %2654 = sbr.rel (0) target = $region61
    $region60: #{tpu_custom_call.1} parent=1 // pred_region
      %s2656 = ssub.s32 2048, 2048
      %2657 = vsyncadd [#allocation17], %s2656
      %s2658 = sshll.u32 [#allocation16], 4
      %s2659 = int_to_ptr.vmem [resolvable:$true] %s2658
      %2664 = dma.vmem_to_hbm [thread:$0]  %s2659, 2048, %s8, [#allocation17], 128, 128, 8
    $region61: #{tpu_custom_call.1} parent=1 // pred_fallthru
      _
    // Predicated region
    $region62: #{tpu_custom_call.1} parent=1 // pred_check
      _
    $region63: #{tpu_custom_call.1} parent=1 // pred_check_branch
      %2666 = sbr.rel (0) target = $region65
    $region64: #{tpu_custom_call.1} parent=1 // pred_region
      %s2668 = ssub.s32 16, 16
      %2669 = vsyncadd [#allocation17], %s2668
      %s2671 = sshll.u32 [#allocation18], 4
      %s2672 = int_to_ptr.vmem [resolvable:$true] %s2671
      %2674 = dma.vmem_to_hbm [thread:$0]  %s2672, 16, %s9, [#allocation17]
    $region65: #{tpu_custom_call.1} parent=1 // pred_fallthru
      _
    // Predicated region
    $region66: #{tpu_custom_call.1} parent=1 // pred_check
      _
    $region67: #{tpu_custom_call.1} parent=1 // pred_check_branch
      %2676 = sbr.rel (0) target = $region69
    $region68: #{tpu_custom_call.1} parent=1 // pred_region
      %s2678 = ssub.s32 16, 16
      %2679 = vsyncadd [#allocation20], %s2678
      %s2681 = sshll.u32 [#allocation19], 4
      %s2682 = int_to_ptr.vmem [resolvable:$true] %s2681
      %2684 = dma.vmem_to_hbm [thread:$0]  %s2682, 16, %s10, [#allocation20]
    $region69: #{tpu_custom_call.1} parent=1 // pred_fallthru
      _
    // Predicated region
    $region70: #{tpu_custom_call.1} parent=1 // pred_check
      _
    $region71: #{tpu_custom_call.1} parent=1 // pred_check_branch
      %2686 = sbr.rel (0) target = $region73
    $region72: #{tpu_custom_call.1} parent=1 // pred_region
      %s2688 = ssub.s32 16, 16
      %2689 = vsyncadd [#allocation20], %s2688
      %s2691 = sshll.u32 [#allocation21], 4
      %s2692 = int_to_ptr.vmem [resolvable:$true] %s2691
      %2694 = dma.vmem_to_hbm [thread:$0]  %s2692, 16, %s11, [#allocation20]
    $region73: #{tpu_custom_call.1} parent=1 // pred_fallthru
      _
    // Predicated region
    $region74: #{tpu_custom_call.1} parent=1 // pred_check
      _
    $region75: #{tpu_custom_call.1} parent=1 // pred_check_branch
      %2696 = sbr.rel (0) target = $region77
    $region76: #{tpu_custom_call.1} parent=1 // pred_region
      %2697 = dma.done [#allocation4], 512
    $region77: #{tpu_custom_call.1} parent=1 // pred_fallthru
      _
    // Predicated region
    $region78: #{tpu_custom_call.1} parent=1 // pred_check
      _
    $region79: #{tpu_custom_call.1} parent=1 // pred_check_branch
      %2699 = sbr.rel (0) target = $region81
    $region80: #{tpu_custom_call.1} parent=1 // pred_region
      %2700 = dma.done [#allocation14], 512
    $region81: #{tpu_custom_call.1} parent=1 // pred_fallthru
      _
    // Predicated region
    $region82: #{tpu_custom_call.1} parent=1 // pred_check
      _
    $region83: #{tpu_custom_call.1} parent=1 // pred_check_branch
      %2702 = sbr.rel (0) target = $region85
    $region84: #{tpu_custom_call.1} parent=1 // pred_region
      %2703 = dma.done [#allocation14], 2048
    $region85: #{tpu_custom_call.1} parent=1 // pred_fallthru
      _
    // Predicated region
    $region86: #{tpu_custom_call.1} parent=1 // pred_check
      _
    $region87: #{tpu_custom_call.1} parent=1 // pred_check_branch
      %2705 = sbr.rel (0) target = $region89
    $region88: #{tpu_custom_call.1} parent=1 // pred_region
      %2706 = dma.done [#allocation17], 2048
    $region89: #{tpu_custom_call.1} parent=1 // pred_fallthru
      _
    // Predicated region
    $region90: #{tpu_custom_call.1} parent=1 // pred_check
      _
    $region91: #{tpu_custom_call.1} parent=1 // pred_check_branch
      %2708 = sbr.rel (0) target = $region93
    $region92: #{tpu_custom_call.1} parent=1 // pred_region
      %2709 = dma.done [#allocation17], 16
    $region93: #{tpu_custom_call.1} parent=1 // pred_fallthru
      _
    // Predicated region
    $region94: #{tpu_custom_call.1} parent=1 // pred_check
      _
    $region95: #{tpu_custom_call.1} parent=1 // pred_check_branch
      %2711 = sbr.rel (0) target = $region97
    $region96: #{tpu_custom_call.1} parent=1 // pred_region
      %2712 = dma.done [#allocation20], 16
    $region97: #{tpu_custom_call.1} parent=1 // pred_fallthru
      _
    // Predicated region
    $region98: #{tpu_custom_call.1} parent=1 // pred_check
      _
    $region99: #{tpu_custom_call.1} parent=1 // pred_check_branch
      %2714 = sbr.rel (0) target = $region101
    $region100: #{tpu_custom_call.1} parent=1 // pred_region
      %2715 = dma.done [#allocation20], 16
    $region101: #{tpu_custom_call.1} parent=1 // pred_fallthru
      _
    %2716 = vsyncpa [#allocation3], 1
    %2717 = vsyncpa [#allocation8], 1
    %2718 = vsyncpa [#allocation11], 1
    %2719 = vsyncpa [#allocation4], 1
    %2720 = vsyncpa [#allocation14], 1
    %2721 = vsyncpa [#allocation17], 1
    %2722 = vsyncpa [#allocation20], 1
    %2723 = vsyncpa [#allocation5], 1

</llo_original>
